<compile_context>
chip_gen: v6e
topology: v6e:2x2x1
jax: 0.10.0
libtpu: 0.0.40
codegen_flags: <defaults>
</compile_context>

<pallas_src>
import jax
import jax.numpy as jnp
from jax import lax
from jax.experimental import pallas as pl
from jax.experimental.pallas import tpu as pltpu

N = 2                      # batch
C_IN = 10                  # conv-transpose in channels  (fixed by the module)
C_OUT = 10                 # conv-transpose out channels (fixed by the module)
K = 3                      # kernel size
H_IN = W_IN = 16           # small spatial size
H_OUT = H_IN + K - 1       # 18  (stride=1, padding=0, output_padding=0, dilation=1)
W_OUT = W_IN + K - 1       # 18
P = K - 1                  # 2   zero-pad for the equivalent VALID correlation
H_PAD = H_IN + 2 * P       # 20
W_PAD = W_IN + 2 * P       # 20
FLAT = N * H_PAD * W_PAD   # 800  flattened (n, p, q) padded grid
SUB = 16                   # channel rows padded to a sublane multiple
RED_PAD = K * K * SUB      # 144  padded contraction length (ki, kj, c)
LANES_OUT = 768            # 6*128; covers every valid flat index (max is 757)
LANES_IN = 896             # 7*128 >= LANES_OUT + max tap shift (42)
N_VALID = N * H_OUT * W_OUT  # 648 real output pixels
BN_EPS = 1e-5
TAPS = tuple((ki, kj) for ki in range(K) for kj in range(K))


def _convT_bn_relu_kernel(w_ref, x_ref, p_ref, o_ref, rhs_ref):
    # w_ref   : (C_OUT, RED_PAD) = (10, 144)  flipped weight, cols (ki, kj, c[pad 16])
    # x_ref   : (SUB, LANES_IN)  = (16, 896)  channel-major, zero-padded, flattened input
    # p_ref   : (C_OUT, 2)                    per-channel [bn_weight, bn_bias]
    # o_ref   : (C_OUT, LANES_OUT) = (10, 768)
    # rhs_ref : (RED_PAD, LANES_OUT)          VMEM scratch (im2col slab, built here)

    # --- in-kernel im2col: 9 statically lane-shifted copies of the input ---
    for t, (ki, kj) in enumerate(TAPS):
        s = ki * W_PAD + kj                                    # static shift, 0..42
        rhs_ref[t * SUB:(t + 1) * SUB, :] = x_ref[:, s:s + LANES_OUT]

    # --- conv-transpose: a single MXU push over the whole contraction ---
    y = jnp.dot(w_ref[...], rhs_ref[...],
                preferred_element_type=jnp.float32,
                precision=lax.Precision.HIGHEST)               # (10, 768)
    # NOTE: conv bias intentionally omitted — training-mode BN cancels it exactly.

    # --- BatchNorm2d (training mode: batch stats, biased variance) ---
    # All padded / invalid lane columns are exactly zero after the dot, so
    # lane sums with the true divisor (648) give exact batch statistics.
    inv_n = jnp.float32(1.0 / N_VALID)
    mean = jnp.sum(y, axis=1, keepdims=True) * inv_n           # (10, 1)
    ex2 = jnp.sum(y * y, axis=1, keepdims=True) * inv_n        # (10, 1)
    var = ex2 - mean * mean
    # Fold BN affine into one per-channel FMA (rsqrt -> EUP slot).
    s_ = p_ref[:, 0:1] * lax.rsqrt(var + BN_EPS)               # scale (10, 1)
    t_ = p_ref[:, 1:2] - mean * s_                             # shift (10, 1)

    # --- ReLU, lane-dense (6x128) unmasked stores ---
    o_ref[...] = jnp.maximum(y * s_ + t_, 0.0).astype(o_ref.dtype)


@jax.jit
def bn_after_conv_transpose(x, conv_w, conv_b, bn_w, bn_b):
    # conv_b is mathematically cancelled by training-mode BN in the forward
    # output; it only affects the (unmodeled) running-stat buffers.
    del conv_b
    # TODO(synk): BatchNorm running_mean/var buffer updates (training side
    # effect) are not modeled; the forward output uses batch statistics as
    # PyTorch does in train mode.

    # ---- weight packing (tiny; layout only) ----
    # ConvTranspose2d(stride=1, pad=0) == VALID correlation of the (K-1)-padded
    # input with the spatially flipped, channel-swapped weight.
    wflip = conv_w[:, :, ::-1, ::-1].transpose(1, 0, 2, 3)           # (o, c, ki, kj)
    w_tap = wflip.transpose(0, 2, 3, 1)                              # (o, ki, kj, c)
    w_tap = jnp.pad(w_tap, ((0, 0), (0, 0), (0, 0), (0, SUB - C_IN)))
    w_packed = w_tap.reshape(C_OUT, RED_PAD)                         # (10, 144)

    # ---- input packing: one small channel-major transpose + zero pads.
    #      No im2col slab is ever written to / read back from HBM. ----
    xcm = jnp.transpose(x, (1, 0, 2, 3))                             # (10, 2, 16, 16)
    xp = jnp.pad(xcm, ((0, SUB - C_IN), (0, 0), (P, P), (P, P)))     # (16, 2, 20, 20)
    x_flat = jnp.pad(xp.reshape(SUB, FLAT),
                     ((0, 0), (0, LANES_IN - FLAT)))                 # (16, 896)

    params = jnp.stack([bn_w, bn_b], axis=1)                         # (10, 2)

    vmem = pl.BlockSpec(memory_space=pltpu.MemorySpace.VMEM)
    y = pl.pallas_call(
        _convT_bn_relu_kernel,
        out_shape=jax.ShapeDtypeStruct((C_OUT, LANES_OUT), jnp.float32),
        in_specs=[vmem, vmem, vmem],
        out_specs=vmem,
        scratch_shapes=[pltpu.VMEM((RED_PAD, LANES_OUT), jnp.float32)],
        cost_estimate=pl.CostEstimate(
            flops=2 * C_OUT * RED_PAD * LANES_OUT,
            transcendentals=C_OUT,
            bytes_accessed=4 * (SUB * LANES_IN + C_OUT * RED_PAD
                                + 2 * C_OUT + C_OUT * LANES_OUT)),
    )(w_packed, x_flat, params)

    # (10, 768) -> pad to the full padded flat grid -> crop valid -> NCHW.
    y = jnp.pad(y, ((0, 0), (0, FLAT - LANES_OUT)))                  # (10, 800)
    y = y.reshape(C_OUT, N, H_PAD, W_PAD)[:, :, :H_OUT, :W_OUT]      # (10, 2, 18, 18)
    return jnp.transpose(y, (1, 0, 2, 3))                            # (2, 10, 18, 18)


if __name__ == "__main__":
    key = jax.random.PRNGKey(0)
    kx, kw, kb, kg, kc = jax.random.split(key, 5)

    # Deterministic synthetic inputs/parameters (shapes from the module __init__).
    x = jax.random.normal(kx, (N, C_IN, H_IN, W_IN), jnp.float32)
    conv_w = jax.random.normal(kw, (C_IN, C_OUT, K, K), jnp.float32) / jnp.sqrt(
        float(C_IN * K * K))
    conv_b = 0.05 * jax.random.normal(kb, (C_OUT,), jnp.float32)
    bn_w = 1.0 + 0.1 * jax.random.normal(kg, (C_OUT,), jnp.float32)
    bn_b = 0.1 * jax.random.normal(kc, (C_OUT,), jnp.float32)

    out = jax.block_until_ready(
        bn_after_conv_transpose(x, conv_w, conv_b, bn_w, bn_b))

    # ---- Pure-JAX reference, built from the DIRECT scatter definition of
    # ConvTranspose2d (independent of the kernel's pad/flip/im2col path),
    # including the conv bias. ----
    y_ref = jnp.zeros((N, C_OUT, H_OUT, W_OUT), jnp.float32)
    for ki in range(K):
        for kj in range(K):
            tap = jnp.einsum('nchw,co->nohw', x, conv_w[:, :, ki, kj],
                             precision=lax.Precision.HIGHEST)
            y_ref = y_ref.at[:, :, ki:ki + H_IN, kj:kj + W_IN].add(tap)
    y_ref = y_ref + conv_b[None, :, None, None]
    m = jnp.mean(y_ref, axis=(0, 2, 3), keepdims=True)
    v = jnp.mean((y_ref - m) ** 2, axis=(0, 2, 3), keepdims=True)
    ref = (y_ref - m) / jnp.sqrt(v + BN_EPS)
    ref = ref * bn_w[None, :, None, None] + bn_b[None, :, None, None]
    ref = jnp.maximum(ref, 0.0)

    assert out.shape == (N, C_OUT, H_OUT, W_OUT), out.shape
    assert jnp.allclose(out, ref, atol=1e-4, rtol=1e-4), \
        float(jnp.max(jnp.abs(out - ref)))
    print("KERNEL_OK")
</pallas_src>

<mosaic_0001>
module attributes {stable_mosaic.version = 11 : i64} {
  func.func @_convT_bn_relu_kernel(%arg0: memref<10x144xf32, #tpu.memory_space<vmem>>, %arg1: memref<16x896xf32, #tpu.memory_space<vmem>>, %arg2: memref<10x2xf32, #tpu.memory_space<vmem>>, %arg3: memref<10x768xf32, #tpu.memory_space<vmem>>, %arg4: memref<144x768xf32, #tpu.memory_space<vmem>>) attributes {dimension_semantics = [], scalar_prefetch = 0 : i64, scratch_operands = 1 : i64, tpu.core_type = #tpu.core_type<tc>} {
    %c0 = arith.constant 0 : index
    %c0_0 = arith.constant 0 : index
    %0 = vector.load %arg1[%c0, %c0_0] : memref<16x896xf32, #tpu.memory_space<vmem>>, vector<16x768xf32>
    %c0_1 = arith.constant 0 : index
    %c0_2 = arith.constant 0 : index
    %1 = vector.load %arg4[%c0_1, %c0_2] : memref<144x768xf32, #tpu.memory_space<vmem>>, vector<16x768xf32>
    tpu.vector_store %arg4[%c0_1, %c0_2], %0 {strides = array<i32>} : memref<144x768xf32, #tpu.memory_space<vmem>>, vector<16x768xf32>,
    %c0_3 = arith.constant 0 : index
    %c1 = arith.constant 1 : index
    %2 = vector.load %arg1[%c0_3, %c1] : memref<16x896xf32, #tpu.memory_space<vmem>>, vector<16x768xf32>
    %c16 = arith.constant 16 : index
    %c0_4 = arith.constant 0 : index
    %3 = vector.load %arg4[%c16, %c0_4] : memref<144x768xf32, #tpu.memory_space<vmem>>, vector<16x768xf32>
    tpu.vector_store %arg4[%c16, %c0_4], %2 {strides = array<i32>} : memref<144x768xf32, #tpu.memory_space<vmem>>, vector<16x768xf32>,
    %c0_5 = arith.constant 0 : index
    %c2 = arith.constant 2 : index
    %4 = vector.load %arg1[%c0_5, %c2] : memref<16x896xf32, #tpu.memory_space<vmem>>, vector<16x768xf32>
    %c32 = arith.constant 32 : index
    %c0_6 = arith.constant 0 : index
    %5 = vector.load %arg4[%c32, %c0_6] : memref<144x768xf32, #tpu.memory_space<vmem>>, vector<16x768xf32>
    tpu.vector_store %arg4[%c32, %c0_6], %4 {strides = array<i32>} : memref<144x768xf32, #tpu.memory_space<vmem>>, vector<16x768xf32>,
    %c0_7 = arith.constant 0 : index
    %c20 = arith.constant 20 : index
    %6 = vector.load %arg1[%c0_7, %c20] : memref<16x896xf32, #tpu.memory_space<vmem>>, vector<16x768xf32>
    %c48 = arith.constant 48 : index
    %c0_8 = arith.constant 0 : index
    %7 = vector.load %arg4[%c48, %c0_8] : memref<144x768xf32, #tpu.memory_space<vmem>>, vector<16x768xf32>
    tpu.vector_store %arg4[%c48, %c0_8], %6 {strides = array<i32>} : memref<144x768xf32, #tpu.memory_space<vmem>>, vector<16x768xf32>,
    %c0_9 = arith.constant 0 : index
    %c21 = arith.constant 21 : index
    %8 = vector.load %arg1[%c0_9, %c21] : memref<16x896xf32, #tpu.memory_space<vmem>>, vector<16x768xf32>
    %c64 = arith.constant 64 : index
    %c0_10 = arith.constant 0 : index
    %9 = vector.load %arg4[%c64, %c0_10] : memref<144x768xf32, #tpu.memory_space<vmem>>, vector<16x768xf32>
    tpu.vector_store %arg4[%c64, %c0_10], %8 {strides = array<i32>} : memref<144x768xf32, #tpu.memory_space<vmem>>, vector<16x768xf32>,
    %c0_11 = arith.constant 0 : index
    %c22 = arith.constant 22 : index
    %10 = vector.load %arg1[%c0_11, %c22] : memref<16x896xf32, #tpu.memory_space<vmem>>, vector<16x768xf32>
    %c80 = arith.constant 80 : index
    %c0_12 = arith.constant 0 : index
    %11 = vector.load %arg4[%c80, %c0_12] : memref<144x768xf32, #tpu.memory_space<vmem>>, vector<16x768xf32>
    tpu.vector_store %arg4[%c80, %c0_12], %10 {strides = array<i32>} : memref<144x768xf32, #tpu.memory_space<vmem>>, vector<16x768xf32>,
    %c0_13 = arith.constant 0 : index
    %c40 = arith.constant 40 : index
    %12 = vector.load %arg1[%c0_13, %c40] : memref<16x896xf32, #tpu.memory_space<vmem>>, vector<16x768xf32>
    %c96 = arith.constant 96 : index
    %c0_14 = arith.constant 0 : index
    %13 = vector.load %arg4[%c96, %c0_14] : memref<144x768xf32, #tpu.memory_space<vmem>>, vector<16x768xf32>
    tpu.vector_store %arg4[%c96, %c0_14], %12 {strides = array<i32>} : memref<144x768xf32, #tpu.memory_space<vmem>>, vector<16x768xf32>,
    %c0_15 = arith.constant 0 : index
    %c41 = arith.constant 41 : index
    %14 = vector.load %arg1[%c0_15, %c41] : memref<16x896xf32, #tpu.memory_space<vmem>>, vector<16x768xf32>
    %c112 = arith.constant 112 : index
    %c0_16 = arith.constant 0 : index
    %15 = vector.load %arg4[%c112, %c0_16] : memref<144x768xf32, #tpu.memory_space<vmem>>, vector<16x768xf32>
    tpu.vector_store %arg4[%c112, %c0_16], %14 {strides = array<i32>} : memref<144x768xf32, #tpu.memory_space<vmem>>, vector<16x768xf32>,
    %c0_17 = arith.constant 0 : index
    %c42 = arith.constant 42 : index
    %16 = vector.load %arg1[%c0_17, %c42] : memref<16x896xf32, #tpu.memory_space<vmem>>, vector<16x768xf32>
    %c128 = arith.constant 128 : index
    %c0_18 = arith.constant 0 : index
    %17 = vector.load %arg4[%c128, %c0_18] : memref<144x768xf32, #tpu.memory_space<vmem>>, vector<16x768xf32>
    tpu.vector_store %arg4[%c128, %c0_18], %16 {strides = array<i32>} : memref<144x768xf32, #tpu.memory_space<vmem>>, vector<16x768xf32>,
    %c0_19 = arith.constant 0 : index
    %c0_20 = arith.constant 0 : index
    %18 = vector.load %arg0[%c0_19, %c0_20] : memref<10x144xf32, #tpu.memory_space<vmem>>, vector<10x144xf32>
    %c0_21 = arith.constant 0 : index
    %c0_22 = arith.constant 0 : index
    %19 = vector.load %arg4[%c0_21, %c0_22] : memref<144x768xf32, #tpu.memory_space<vmem>>, vector<144x768xf32>
    %cst = arith.constant dense<0.000000e+00> : vector<10x768xf32>
    %20 = tpu.matmul %18, %19, %cst {dimension_numbers = #tpu.dot_dimension_numbers<[1], [0], [0], [1], [0, 0, 1, 1], [], []>, precision = #tpu.contract_precision<fp32>} : vector<10x144xf32>, vector<144x768xf32>, vector<10x768xf32> -> vector<10x768xf32>
    %cst_23 = arith.constant dense<0.000000e+00> : vector<10xf32>
    %21 = vector.multi_reduction <add>, %20, %cst_23 [1] : vector<10x768xf32> to vector<10xf32>
    %22 = vector.shape_cast %21 : vector<10xf32> to vector<10x1xf32>
    %cst_24 = arith.constant 0.00154320989 : f32
    %23 = vector.broadcast %cst_24 : f32 to vector<10x1xf32>
    %24 = arith.mulf %22, %23 : vector<10x1xf32>
    %25 = arith.mulf %20, %20 : vector<10x768xf32>
    %cst_25 = arith.constant dense<0.000000e+00> : vector<10xf32>
    %26 = vector.multi_reduction <add>, %25, %cst_25 [1] : vector<10x768xf32> to vector<10xf32>
    %27 = vector.shape_cast %26 : vector<10xf32> to vector<10x1xf32>
    %cst_26 = arith.constant 0.00154320989 : f32
    %28 = vector.broadcast %cst_26 : f32 to vector<10x1xf32>
    %29 = arith.mulf %27, %28 : vector<10x1xf32>
    %30 = arith.mulf %24, %24 : vector<10x1xf32>
    %31 = arith.subf %29, %30 : vector<10x1xf32>
    %c0_27 = arith.constant 0 : index
    %c0_28 = arith.constant 0 : index
    %32 = vector.load %arg2[%c0_27, %c0_28] : memref<10x2xf32, #tpu.memory_space<vmem>>, vector<10x1xf32>
    %cst_29 = arith.constant 9.99999974E-6 : f32
    %33 = vector.broadcast %cst_29 : f32 to vector<10x1xf32>
    %34 = arith.addf %31, %33 : vector<10x1xf32>
    %35 = math.rsqrt %34 : vector<10x1xf32>
    %36 = arith.mulf %32, %35 : vector<10x1xf32>
    %c0_30 = arith.constant 0 : index
    %c1_31 = arith.constant 1 : index
    %37 = vector.load %arg2[%c0_30, %c1_31] : memref<10x2xf32, #tpu.memory_space<vmem>>, vector<10x1xf32>
    %38 = arith.mulf %24, %36 : vector<10x1xf32>
    %39 = arith.subf %37, %38 : vector<10x1xf32>
    %40 = vector.broadcast %36 : vector<10x1xf32> to vector<10x768xf32>
    %41 = arith.mulf %20, %40 : vector<10x768xf32>
    %42 = vector.broadcast %39 : vector<10x1xf32> to vector<10x768xf32>
    %43 = arith.addf %41, %42 : vector<10x768xf32>
    %cst_32 = arith.constant 0.000000e+00 : f32
    %44 = vector.broadcast %cst_32 : f32 to vector<10x768xf32>
    %45 = arith.maximumf %43, %44 : vector<10x768xf32>
    %c0_33 = arith.constant 0 : index
    %c0_34 = arith.constant 0 : index
    %46 = vector.load %arg3[%c0_33, %c0_34] : memref<10x768xf32, #tpu.memory_space<vmem>>, vector<10x768xf32>
    tpu.vector_store %arg3[%c0_33, %c0_34], %45 {strides = array<i32>} : memref<10x768xf32, #tpu.memory_space<vmem>>, vector<10x768xf32>,
    return
  }
}

</mosaic_0001>

<llo_original>
// kernel: bn_after_conv_transpose.1
$region0: #{bn_after_conv_transpose.1}
  #allocation0 [shape = 'u32[]', space=smem, size = 0x4, offset = 0x4, fixed_abs, tag = 'smem constant byte address 0x4 - core index']
  #allocation1 [shape = 'u32[144,128]{1,0:T(1,128)}', space=vmem, size = 0x12000, scoped, tag = 'internal scratch']
  #allocation2 [shape = 'f32[144,768]{1,0:T(8,128)}', space=vmem, size = 0x6c000, scoped, tag = 'scratch operand']
  %s0 = inlined_call_operand.vmem [shape: f32[10,144], index: 0, kind: input, shape index: {}]
  %s1 = inlined_call_operand.vmem [shape: f32[16,896], index: 1, kind: input, shape index: {}]
  %s2 = inlined_call_operand.vmem [shape: f32[10,2], index: 2, kind: input, shape index: {}]
  %s3 = inlined_call_operand.vmem [shape: f32[10,768], index: 3, kind: output, shape index: {}]
  %s4 = sld [smem:[#allocation0]]
  $region22: #{bn_after_conv_transpose.1} parent=0
    _
  %s6 = ssub.s32 1, %s4
  %s7 = scalar_select 0, %s6, %s4
  // Predicated region
  $region2: #{bn_after_conv_transpose.1} parent=0 // pred_check
    _
  $region3: #{bn_after_conv_transpose.1} parent=0 // pred_check_branch
    %9 = sbr.rel (0) target = $region5
  $region4: #{bn_after_conv_transpose.1} parent=0 // pred_region
    _
  $region5: #{bn_after_conv_transpose.1} parent=0 // pred_fallthru
    _
  // Predicated region
  $region6: #{bn_after_conv_transpose.1} parent=0 // pred_check
    _
  $region7: #{bn_after_conv_transpose.1} parent=0 // pred_check_branch
    %11 = sbr.rel (0) target = $region9
  $region8: #{bn_after_conv_transpose.1} parent=0 // pred_region
    _
  $region9: #{bn_after_conv_transpose.1} parent=0 // pred_fallthru
    _
  // Predicated region
  $region10: #{bn_after_conv_transpose.1} parent=0 // pred_check
    _
  $region11: #{bn_after_conv_transpose.1} parent=0 // pred_check_branch
    %13 = sbr.rel (0) target = $region13
  $region12: #{bn_after_conv_transpose.1} parent=0 // pred_region
    _
  $region13: #{bn_after_conv_transpose.1} parent=0 // pred_fallthru
    _
  %v14 = vld [vmem:[%s1] sm:$0xff]
  %v15 = vld [vmem:[%s1 + $0x8] sm:$0xff]
  %v16 = vld [vmem:[%s1 + $0x10] sm:$0xff]
  %v17 = vld [vmem:[%s1 + $0x18] sm:$0xff]
  %v18 = vld [vmem:[%s1 + $0x20] sm:$0xff]
  %v19 = vld [vmem:[%s1 + $0x28] sm:$0xff]
  %v20 = vld [vmem:[%s1 + $0x38] sm:$0xff]
  %v21 = vld [vmem:[%s1 + $0x40] sm:$0xff]
  %v22 = vld [vmem:[%s1 + $0x48] sm:$0xff]
  %v23 = vld [vmem:[%s1 + $0x50] sm:$0xff]
  %v24 = vld [vmem:[%s1 + $0x58] sm:$0xff]
  %v25 = vld [vmem:[%s1 + $0x60] sm:$0xff]
  %26 = vst [vmem:[#allocation2] sm:$0xff] %v14
  %27 = vst [vmem:[#allocation2 + $0x8] sm:$0xff] %v15
  %28 = vst [vmem:[#allocation2 + $0x10] sm:$0xff] %v16
  %29 = vst [vmem:[#allocation2 + $0x18] sm:$0xff] %v17
  %30 = vst [vmem:[#allocation2 + $0x20] sm:$0xff] %v18
  %31 = vst [vmem:[#allocation2 + $0x28] sm:$0xff] %v19
  %32 = vst [vmem:[#allocation2 + $0x30] sm:$0xff] %v20
  %33 = vst [vmem:[#allocation2 + $0x38] sm:$0xff] %v21
  %34 = vst [vmem:[#allocation2 + $0x40] sm:$0xff] %v22
  %35 = vst [vmem:[#allocation2 + $0x48] sm:$0xff] %v23
  %36 = vst [vmem:[#allocation2 + $0x50] sm:$0xff] %v24
  %37 = vst [vmem:[#allocation2 + $0x58] sm:$0xff] %v25
  %v38 = vld [vmem:[%s1] sm:$0xff]
  %v39 = vld [vmem:[%s1 + $0x8] sm:$0xff]
  %v40 = vld [vmem:[%s1 + $0x10] sm:$0xff]
  %v41 = vld [vmem:[%s1 + $0x18] sm:$0xff]
  %v42 = vld [vmem:[%s1 + $0x20] sm:$0xff]
  %v43 = vld [vmem:[%s1 + $0x28] sm:$0xff]
  %v44 = vld [vmem:[%s1 + $0x30] sm:$0xff]
  %v45 = vld [vmem:[%s1 + $0x38] sm:$0xff]
  %v46 = vld [vmem:[%s1 + $0x40] sm:$0xff]
  %v47 = vld [vmem:[%s1 + $0x48] sm:$0xff]
  %v48 = vld [vmem:[%s1 + $0x50] sm:$0xff]
  %v49 = vld [vmem:[%s1 + $0x58] sm:$0xff]
  %v50 = vld [vmem:[%s1 + $0x60] sm:$0xff]
  %v51 = vld [vmem:[%s1 + $0x68] sm:$0xff]
  %66 = vrot.lane.b32.xlu0 %v38, 127
  %v67 = vpop.permute.xlu0 %66
  %68 = vrot.lane.b32.xlu0 %v39, 127
  %v69 = vpop.permute.xlu0 %68
  %70 = vrot.lane.b32.xlu0 %v40, 127
  %v71 = vpop.permute.xlu0 %70
  %72 = vrot.lane.b32.xlu0 %v41, 127
  %v73 = vpop.permute.xlu0 %72
  %74 = vrot.lane.b32.xlu0 %v42, 127
  %v75 = vpop.permute.xlu0 %74
  %76 = vrot.lane.b32.xlu0 %v43, 127
  %v77 = vpop.permute.xlu0 %76
  %78 = vrot.lane.b32.xlu0 %v44, 127
  %v79 = vpop.permute.xlu0 %78
  %80 = vrot.lane.b32.xlu0 %v45, 127
  %v81 = vpop.permute.xlu0 %80
  %82 = vrot.lane.b32.xlu0 %v46, 127
  %v83 = vpop.permute.xlu0 %82
  %84 = vrot.lane.b32.xlu0 %v47, 127
  %v85 = vpop.permute.xlu0 %84
  %86 = vrot.lane.b32.xlu0 %v48, 127
  %v87 = vpop.permute.xlu0 %86
  %88 = vrot.lane.b32.xlu0 %v49, 127
  %v89 = vpop.permute.xlu0 %88
  %90 = vrot.lane.b32.xlu0 %v50, 127
  %v91 = vpop.permute.xlu0 %90
  %92 = vrot.lane.b32.xlu0 %v51, 127
  %v93 = vpop.permute.xlu0 %92
  %vm94 = vcmask 1039360
  %v95 = vsel %vm94, %v67, %v69
  %v96 = vsel %vm94, %v69, %v71
  %v97 = vsel %vm94, %v71, %v73
  %v98 = vsel %vm94, %v73, %v75
  %v99 = vsel %vm94, %v75, %v77
  %v100 = vsel %vm94, %v77, %v79
  %v101 = vsel %vm94, %v81, %v83
  %v102 = vsel %vm94, %v83, %v85
  %v103 = vsel %vm94, %v85, %v87
  %v104 = vsel %vm94, %v87, %v89
  %v105 = vsel %vm94, %v89, %v91
  %v106 = vsel %vm94, %v91, %v93
  %119 = vst [vmem:[#allocation2 + $0x60] sm:$0xff] %v95
  %120 = vst [vmem:[#allocation2 + $0x68] sm:$0xff] %v96
  %121 = vst [vmem:[#allocation2 + $0x70] sm:$0xff] %v97
  %122 = vst [vmem:[#allocation2 + $0x78] sm:$0xff] %v98
  %123 = vst [vmem:[#allocation2 + $0x80] sm:$0xff] %v99
  %124 = vst [vmem:[#allocation2 + $0x88] sm:$0xff] %v100
  %125 = vst [vmem:[#allocation2 + $0x90] sm:$0xff] %v101
  %126 = vst [vmem:[#allocation2 + $0x98] sm:$0xff] %v102
  %127 = vst [vmem:[#allocation2 + $0xa0] sm:$0xff] %v103
  %128 = vst [vmem:[#allocation2 + $0xa8] sm:$0xff] %v104
  %129 = vst [vmem:[#allocation2 + $0xb0] sm:$0xff] %v105
  %130 = vst [vmem:[#allocation2 + $0xb8] sm:$0xff] %v106
  %v131 = vld [vmem:[%s1] sm:$0xff]
  %v132 = vld [vmem:[%s1 + $0x8] sm:$0xff]
  %v133 = vld [vmem:[%s1 + $0x10] sm:$0xff]
  %v134 = vld [vmem:[%s1 + $0x18] sm:$0xff]
  %v135 = vld [vmem:[%s1 + $0x20] sm:$0xff]
  %v136 = vld [vmem:[%s1 + $0x28] sm:$0xff]
  %v137 = vld [vmem:[%s1 + $0x30] sm:$0xff]
  %v138 = vld [vmem:[%s1 + $0x38] sm:$0xff]
  %v139 = vld [vmem:[%s1 + $0x40] sm:$0xff]
  %v140 = vld [vmem:[%s1 + $0x48] sm:$0xff]
  %v141 = vld [vmem:[%s1 + $0x50] sm:$0xff]
  %v142 = vld [vmem:[%s1 + $0x58] sm:$0xff]
  %v143 = vld [vmem:[%s1 + $0x60] sm:$0xff]
  %v144 = vld [vmem:[%s1 + $0x68] sm:$0xff]
  %159 = vrot.lane.b32.xlu0 %v131, 126
  %v160 = vpop.permute.xlu0 %159
  %161 = vrot.lane.b32.xlu0 %v132, 126
  %v162 = vpop.permute.xlu0 %161
  %163 = vrot.lane.b32.xlu0 %v133, 126
  %v164 = vpop.permute.xlu0 %163
  %165 = vrot.lane.b32.xlu0 %v134, 126
  %v166 = vpop.permute.xlu0 %165
  %167 = vrot.lane.b32.xlu0 %v135, 126
  %v168 = vpop.permute.xlu0 %167
  %169 = vrot.lane.b32.xlu0 %v136, 126
  %v170 = vpop.permute.xlu0 %169
  %171 = vrot.lane.b32.xlu0 %v137, 126
  %v172 = vpop.permute.xlu0 %171
  %173 = vrot.lane.b32.xlu0 %v138, 126
  %v174 = vpop.permute.xlu0 %173
  %175 = vrot.lane.b32.xlu0 %v139, 126
  %v176 = vpop.permute.xlu0 %175
  %177 = vrot.lane.b32.xlu0 %v140, 126
  %v178 = vpop.permute.xlu0 %177
  %179 = vrot.lane.b32.xlu0 %v141, 126
  %v180 = vpop.permute.xlu0 %179
  %181 = vrot.lane.b32.xlu0 %v142, 126
  %v182 = vpop.permute.xlu0 %181
  %183 = vrot.lane.b32.xlu0 %v143, 126
  %v184 = vpop.permute.xlu0 %183
  %185 = vrot.lane.b32.xlu0 %v144, 126
  %v186 = vpop.permute.xlu0 %185
  %vm187 = vcmask 1031168
  %v188 = vsel %vm187, %v160, %v162
  %v189 = vsel %vm187, %v162, %v164
  %v190 = vsel %vm187, %v164, %v166
  %v191 = vsel %vm187, %v166, %v168
  %v192 = vsel %vm187, %v168, %v170
  %v193 = vsel %vm187, %v170, %v172
  %v194 = vsel %vm187, %v174, %v176
  %v195 = vsel %vm187, %v176, %v178
  %v196 = vsel %vm187, %v178, %v180
  %v197 = vsel %vm187, %v180, %v182
  %v198 = vsel %vm187, %v182, %v184
  %v199 = vsel %vm187, %v184, %v186
  %212 = vst [vmem:[#allocation2 + $0xc0] sm:$0xff] %v188
  %213 = vst [vmem:[#allocation2 + $0xc8] sm:$0xff] %v189
  %214 = vst [vmem:[#allocation2 + $0xd0] sm:$0xff] %v190
  %215 = vst [vmem:[#allocation2 + $0xd8] sm:$0xff] %v191
  %216 = vst [vmem:[#allocation2 + $0xe0] sm:$0xff] %v192
  %217 = vst [vmem:[#allocation2 + $0xe8] sm:$0xff] %v193
  %218 = vst [vmem:[#allocation2 + $0xf0] sm:$0xff] %v194
  %219 = vst [vmem:[#allocation2 + $0xf8] sm:$0xff] %v195
  %220 = vst [vmem:[#allocation2 + $0x100] sm:$0xff] %v196
  %221 = vst [vmem:[#allocation2 + $0x108] sm:$0xff] %v197
  %222 = vst [vmem:[#allocation2 + $0x110] sm:$0xff] %v198
  %223 = vst [vmem:[#allocation2 + $0x118] sm:$0xff] %v199
  %v224 = vld [vmem:[%s1] sm:$0xff]
  %v225 = vld [vmem:[%s1 + $0x8] sm:$0xff]
  %v226 = vld [vmem:[%s1 + $0x10] sm:$0xff]
  %v227 = vld [vmem:[%s1 + $0x18] sm:$0xff]
  %v228 = vld [vmem:[%s1 + $0x20] sm:$0xff]
  %v229 = vld [vmem:[%s1 + $0x28] sm:$0xff]
  %v230 = vld [vmem:[%s1 + $0x30] sm:$0xff]
  %v231 = vld [vmem:[%s1 + $0x38] sm:$0xff]
  %v232 = vld [vmem:[%s1 + $0x40] sm:$0xff]
  %v233 = vld [vmem:[%s1 + $0x48] sm:$0xff]
  %v234 = vld [vmem:[%s1 + $0x50] sm:$0xff]
  %v235 = vld [vmem:[%s1 + $0x58] sm:$0xff]
  %v236 = vld [vmem:[%s1 + $0x60] sm:$0xff]
  %v237 = vld [vmem:[%s1 + $0x68] sm:$0xff]
  %252 = vrot.lane.b32.xlu0 %v224, 108
  %v253 = vpop.permute.xlu0 %252
  %254 = vrot.lane.b32.xlu0 %v225, 108
  %v255 = vpop.permute.xlu0 %254
  %256 = vrot.lane.b32.xlu0 %v226, 108
  %v257 = vpop.permute.xlu0 %256
  %258 = vrot.lane.b32.xlu0 %v227, 108
  %v259 = vpop.permute.xlu0 %258
  %260 = vrot.lane.b32.xlu0 %v228, 108
  %v261 = vpop.permute.xlu0 %260
  %262 = vrot.lane.b32.xlu0 %v229, 108
  %v263 = vpop.permute.xlu0 %262
  %264 = vrot.lane.b32.xlu0 %v230, 108
  %v265 = vpop.permute.xlu0 %264
  %266 = vrot.lane.b32.xlu0 %v231, 108
  %v267 = vpop.permute.xlu0 %266
  %268 = vrot.lane.b32.xlu0 %v232, 108
  %v269 = vpop.permute.xlu0 %268
  %270 = vrot.lane.b32.xlu0 %v233, 108
  %v271 = vpop.permute.xlu0 %270
  %272 = vrot.lane.b32.xlu0 %v234, 108
  %v273 = vpop.permute.xlu0 %272
  %274 = vrot.lane.b32.xlu0 %v235, 108
  %v275 = vpop.permute.xlu0 %274
  %276 = vrot.lane.b32.xlu0 %v236, 108
  %v277 = vpop.permute.xlu0 %276
  %278 = vrot.lane.b32.xlu0 %v237, 108
  %v279 = vpop.permute.xlu0 %278
  %vm280 = vcmask 883712
  %v281 = vsel %vm280, %v253, %v255
  %v282 = vsel %vm280, %v255, %v257
  %v283 = vsel %vm280, %v257, %v259
  %v284 = vsel %vm280, %v259, %v261
  %v285 = vsel %vm280, %v261, %v263
  %v286 = vsel %vm280, %v263, %v265
  %v287 = vsel %vm280, %v267, %v269
  %v288 = vsel %vm280, %v269, %v271
  %v289 = vsel %vm280, %v271, %v273
  %v290 = vsel %vm280, %v273, %v275
  %v291 = vsel %vm280, %v275, %v277
  %v292 = vsel %vm280, %v277, %v279
  %305 = vst [vmem:[#allocation2 + $0x120] sm:$0xff] %v281
  %306 = vst [vmem:[#allocation2 + $0x128] sm:$0xff] %v282
  %307 = vst [vmem:[#allocation2 + $0x130] sm:$0xff] %v283
  %308 = vst [vmem:[#allocation2 + $0x138] sm:$0xff] %v284
  %309 = vst [vmem:[#allocation2 + $0x140] sm:$0xff] %v285
  %310 = vst [vmem:[#allocation2 + $0x148] sm:$0xff] %v286
  %311 = vst [vmem:[#allocation2 + $0x150] sm:$0xff] %v287
  %312 = vst [vmem:[#allocation2 + $0x158] sm:$0xff] %v288
  %313 = vst [vmem:[#allocation2 + $0x160] sm:$0xff] %v289
  %314 = vst [vmem:[#allocation2 + $0x168] sm:$0xff] %v290
  %315 = vst [vmem:[#allocation2 + $0x170] sm:$0xff] %v291
  %316 = vst [vmem:[#allocation2 + $0x178] sm:$0xff] %v292
  %v317 = vld [vmem:[%s1] sm:$0xff]
  %v318 = vld [vmem:[%s1 + $0x8] sm:$0xff]
  %v319 = vld [vmem:[%s1 + $0x10] sm:$0xff]
  %v320 = vld [vmem:[%s1 + $0x18] sm:$0xff]
  %v321 = vld [vmem:[%s1 + $0x20] sm:$0xff]
  %v322 = vld [vmem:[%s1 + $0x28] sm:$0xff]
  %v323 = vld [vmem:[%s1 + $0x30] sm:$0xff]
  %v324 = vld [vmem:[%s1 + $0x38] sm:$0xff]
  %v325 = vld [vmem:[%s1 + $0x40] sm:$0xff]
  %v326 = vld [vmem:[%s1 + $0x48] sm:$0xff]
  %v327 = vld [vmem:[%s1 + $0x50] sm:$0xff]
  %v328 = vld [vmem:[%s1 + $0x58] sm:$0xff]
  %v329 = vld [vmem:[%s1 + $0x60] sm:$0xff]
  %v330 = vld [vmem:[%s1 + $0x68] sm:$0xff]
  %345 = vrot.lane.b32.xlu0 %v317, 107
  %v346 = vpop.permute.xlu0 %345
  %347 = vrot.lane.b32.xlu0 %v318, 107
  %v348 = vpop.permute.xlu0 %347
  %349 = vrot.lane.b32.xlu0 %v319, 107
  %v350 = vpop.permute.xlu0 %349
  %351 = vrot.lane.b32.xlu0 %v320, 107
  %v352 = vpop.permute.xlu0 %351
  %353 = vrot.lane.b32.xlu0 %v321, 107
  %v354 = vpop.permute.xlu0 %353
  %355 = vrot.lane.b32.xlu0 %v322, 107
  %v356 = vpop.permute.xlu0 %355
  %357 = vrot.lane.b32.xlu0 %v323, 107
  %v358 = vpop.permute.xlu0 %357
  %359 = vrot.lane.b32.xlu0 %v324, 107
  %v360 = vpop.permute.xlu0 %359
  %361 = vrot.lane.b32.xlu0 %v325, 107
  %v362 = vpop.permute.xlu0 %361
  %363 = vrot.lane.b32.xlu0 %v326, 107
  %v364 = vpop.permute.xlu0 %363
  %365 = vrot.lane.b32.xlu0 %v327, 107
  %v366 = vpop.permute.xlu0 %365
  %367 = vrot.lane.b32.xlu0 %v328, 107
  %v368 = vpop.permute.xlu0 %367
  %369 = vrot.lane.b32.xlu0 %v329, 107
  %v370 = vpop.permute.xlu0 %369
  %371 = vrot.lane.b32.xlu0 %v330, 107
  %v372 = vpop.permute.xlu0 %371
  %vm373 = vcmask 875520
  %v374 = vsel %vm373, %v346, %v348
  %v375 = vsel %vm373, %v348, %v350
  %v376 = vsel %vm373, %v350, %v352
  %v377 = vsel %vm373, %v352, %v354
  %v378 = vsel %vm373, %v354, %v356
  %v379 = vsel %vm373, %v356, %v358
  %v380 = vsel %vm373, %v360, %v362
  %v381 = vsel %vm373, %v362, %v364
  %v382 = vsel %vm373, %v364, %v366
  %v383 = vsel %vm373, %v366, %v368
  %v384 = vsel %vm373, %v368, %v370
  %v385 = vsel %vm373, %v370, %v372
  %398 = vst [vmem:[#allocation2 + $0x180] sm:$0xff] %v374
  %399 = vst [vmem:[#allocation2 + $0x188] sm:$0xff] %v375
  %400 = vst [vmem:[#allocation2 + $0x190] sm:$0xff] %v376
  %401 = vst [vmem:[#allocation2 + $0x198] sm:$0xff] %v377
  %402 = vst [vmem:[#allocation2 + $0x1a0] sm:$0xff] %v378
  %403 = vst [vmem:[#allocation2 + $0x1a8] sm:$0xff] %v379
  %404 = vst [vmem:[#allocation2 + $0x1b0] sm:$0xff] %v380
  %405 = vst [vmem:[#allocation2 + $0x1b8] sm:$0xff] %v381
  %406 = vst [vmem:[#allocation2 + $0x1c0] sm:$0xff] %v382
  %407 = vst [vmem:[#allocation2 + $0x1c8] sm:$0xff] %v383
  %408 = vst [vmem:[#allocation2 + $0x1d0] sm:$0xff] %v384
  %409 = vst [vmem:[#allocation2 + $0x1d8] sm:$0xff] %v385
  %v410 = vld [vmem:[%s1] sm:$0xff]
  %v411 = vld [vmem:[%s1 + $0x8] sm:$0xff]
  %v412 = vld [vmem:[%s1 + $0x10] sm:$0xff]
  %v413 = vld [vmem:[%s1 + $0x18] sm:$0xff]
  %v414 = vld [vmem:[%s1 + $0x20] sm:$0xff]
  %v415 = vld [vmem:[%s1 + $0x28] sm:$0xff]
  %v416 = vld [vmem:[%s1 + $0x30] sm:$0xff]
  %v417 = vld [vmem:[%s1 + $0x38] sm:$0xff]
  %v418 = vld [vmem:[%s1 + $0x40] sm:$0xff]
  %v419 = vld [vmem:[%s1 + $0x48] sm:$0xff]
  %v420 = vld [vmem:[%s1 + $0x50] sm:$0xff]
  %v421 = vld [vmem:[%s1 + $0x58] sm:$0xff]
  %v422 = vld [vmem:[%s1 + $0x60] sm:$0xff]
  %v423 = vld [vmem:[%s1 + $0x68] sm:$0xff]
  %438 = vrot.lane.b32.xlu0 %v410, 106
  %v439 = vpop.permute.xlu0 %438
  %440 = vrot.lane.b32.xlu0 %v411, 106
  %v441 = vpop.permute.xlu0 %440
  %442 = vrot.lane.b32.xlu0 %v412, 106
  %v443 = vpop.permute.xlu0 %442
  %444 = vrot.lane.b32.xlu0 %v413, 106
  %v445 = vpop.permute.xlu0 %444
  %446 = vrot.lane.b32.xlu0 %v414, 106
  %v447 = vpop.permute.xlu0 %446
  %448 = vrot.lane.b32.xlu0 %v415, 106
  %v449 = vpop.permute.xlu0 %448
  %450 = vrot.lane.b32.xlu0 %v416, 106
  %v451 = vpop.permute.xlu0 %450
  %452 = vrot.lane.b32.xlu0 %v417, 106
  %v453 = vpop.permute.xlu0 %452
  %454 = vrot.lane.b32.xlu0 %v418, 106
  %v455 = vpop.permute.xlu0 %454
  %456 = vrot.lane.b32.xlu0 %v419, 106
  %v457 = vpop.permute.xlu0 %456
  %458 = vrot.lane.b32.xlu0 %v420, 106
  %v459 = vpop.permute.xlu0 %458
  %460 = vrot.lane.b32.xlu0 %v421, 106
  %v461 = vpop.permute.xlu0 %460
  %462 = vrot.lane.b32.xlu0 %v422, 106
  %v463 = vpop.permute.xlu0 %462
  %464 = vrot.lane.b32.xlu0 %v423, 106
  %v465 = vpop.permute.xlu0 %464
  %vm466 = vcmask 867328
  %v467 = vsel %vm466, %v439, %v441
  %v468 = vsel %vm466, %v441, %v443
  %v469 = vsel %vm466, %v443, %v445
  %v470 = vsel %vm466, %v445, %v447
  %v471 = vsel %vm466, %v447, %v449
  %v472 = vsel %vm466, %v449, %v451
  %v473 = vsel %vm466, %v453, %v455
  %v474 = vsel %vm466, %v455, %v457
  %v475 = vsel %vm466, %v457, %v459
  %v476 = vsel %vm466, %v459, %v461
  %v477 = vsel %vm466, %v461, %v463
  %v478 = vsel %vm466, %v463, %v465
  %491 = vst [vmem:[#allocation2 + $0x1e0] sm:$0xff] %v467
  %492 = vst [vmem:[#allocation2 + $0x1e8] sm:$0xff] %v468
  %493 = vst [vmem:[#allocation2 + $0x1f0] sm:$0xff] %v469
  %494 = vst [vmem:[#allocation2 + $0x1f8] sm:$0xff] %v470
  %495 = vst [vmem:[#allocation2 + $0x200] sm:$0xff] %v471
  %496 = vst [vmem:[#allocation2 + $0x208] sm:$0xff] %v472
  %497 = vst [vmem:[#allocation2 + $0x210] sm:$0xff] %v473
  %498 = vst [vmem:[#allocation2 + $0x218] sm:$0xff] %v474
  %499 = vst [vmem:[#allocation2 + $0x220] sm:$0xff] %v475
  %500 = vst [vmem:[#allocation2 + $0x228] sm:$0xff] %v476
  %501 = vst [vmem:[#allocation2 + $0x230] sm:$0xff] %v477
  %502 = vst [vmem:[#allocation2 + $0x238] sm:$0xff] %v478
  %v503 = vld [vmem:[%s1] sm:$0xff]
  %v504 = vld [vmem:[%s1 + $0x8] sm:$0xff]
  %v505 = vld [vmem:[%s1 + $0x10] sm:$0xff]
  %v506 = vld [vmem:[%s1 + $0x18] sm:$0xff]
  %v507 = vld [vmem:[%s1 + $0x20] sm:$0xff]
  %v508 = vld [vmem:[%s1 + $0x28] sm:$0xff]
  %v509 = vld [vmem:[%s1 + $0x30] sm:$0xff]
  %v510 = vld [vmem:[%s1 + $0x38] sm:$0xff]
  %v511 = vld [vmem:[%s1 + $0x40] sm:$0xff]
  %v512 = vld [vmem:[%s1 + $0x48] sm:$0xff]
  %v513 = vld [vmem:[%s1 + $0x50] sm:$0xff]
  %v514 = vld [vmem:[%s1 + $0x58] sm:$0xff]
  %v515 = vld [vmem:[%s1 + $0x60] sm:$0xff]
  %v516 = vld [vmem:[%s1 + $0x68] sm:$0xff]
  %531 = vrot.lane.b32.xlu0 %v503, 88
  %v532 = vpop.permute.xlu0 %531
  %533 = vrot.lane.b32.xlu0 %v504, 88
  %v534 = vpop.permute.xlu0 %533
  %535 = vrot.lane.b32.xlu0 %v505, 88
  %v536 = vpop.permute.xlu0 %535
  %537 = vrot.lane.b32.xlu0 %v506, 88
  %v538 = vpop.permute.xlu0 %537
  %539 = vrot.lane.b32.xlu0 %v507, 88
  %v540 = vpop.permute.xlu0 %539
  %541 = vrot.lane.b32.xlu0 %v508, 88
  %v542 = vpop.permute.xlu0 %541
  %543 = vrot.lane.b32.xlu0 %v509, 88
  %v544 = vpop.permute.xlu0 %543
  %545 = vrot.lane.b32.xlu0 %v510, 88
  %v546 = vpop.permute.xlu0 %545
  %547 = vrot.lane.b32.xlu0 %v511, 88
  %v548 = vpop.permute.xlu0 %547
  %549 = vrot.lane.b32.xlu0 %v512, 88
  %v550 = vpop.permute.xlu0 %549
  %551 = vrot.lane.b32.xlu0 %v513, 88
  %v552 = vpop.permute.xlu0 %551
  %553 = vrot.lane.b32.xlu0 %v514, 88
  %v554 = vpop.permute.xlu0 %553
  %555 = vrot.lane.b32.xlu0 %v515, 88
  %v556 = vpop.permute.xlu0 %555
  %557 = vrot.lane.b32.xlu0 %v516, 88
  %v558 = vpop.permute.xlu0 %557
  %vm559 = vcmask 719872
  %v560 = vsel %vm559, %v532, %v534
  %v561 = vsel %vm559, %v534, %v536
  %v562 = vsel %vm559, %v536, %v538
  %v563 = vsel %vm559, %v538, %v540
  %v564 = vsel %vm559, %v540, %v542
  %v565 = vsel %vm559, %v542, %v544
  %v566 = vsel %vm559, %v546, %v548
  %v567 = vsel %vm559, %v548, %v550
  %v568 = vsel %vm559, %v550, %v552
  %v569 = vsel %vm559, %v552, %v554
  %v570 = vsel %vm559, %v554, %v556
  %v571 = vsel %vm559, %v556, %v558
  %584 = vst [vmem:[#allocation2 + $0x240] sm:$0xff] %v560
  %585 = vst [vmem:[#allocation2 + $0x248] sm:$0xff] %v561
  %586 = vst [vmem:[#allocation2 + $0x250] sm:$0xff] %v562
  %587 = vst [vmem:[#allocation2 + $0x258] sm:$0xff] %v563
  %588 = vst [vmem:[#allocation2 + $0x260] sm:$0xff] %v564
  %589 = vst [vmem:[#allocation2 + $0x268] sm:$0xff] %v565
  %590 = vst [vmem:[#allocation2 + $0x270] sm:$0xff] %v566
  %591 = vst [vmem:[#allocation2 + $0x278] sm:$0xff] %v567
  %592 = vst [vmem:[#allocation2 + $0x280] sm:$0xff] %v568
  %593 = vst [vmem:[#allocation2 + $0x288] sm:$0xff] %v569
  %594 = vst [vmem:[#allocation2 + $0x290] sm:$0xff] %v570
  %595 = vst [vmem:[#allocation2 + $0x298] sm:$0xff] %v571
  %v596 = vld [vmem:[%s1] sm:$0xff]
  %v597 = vld [vmem:[%s1 + $0x8] sm:$0xff]
  %v598 = vld [vmem:[%s1 + $0x10] sm:$0xff]
  %v599 = vld [vmem:[%s1 + $0x18] sm:$0xff]
  %v600 = vld [vmem:[%s1 + $0x20] sm:$0xff]
  %v601 = vld [vmem:[%s1 + $0x28] sm:$0xff]
  %v602 = vld [vmem:[%s1 + $0x30] sm:$0xff]
  %v603 = vld [vmem:[%s1 + $0x38] sm:$0xff]
  %v604 = vld [vmem:[%s1 + $0x40] sm:$0xff]
  %v605 = vld [vmem:[%s1 + $0x48] sm:$0xff]
  %v606 = vld [vmem:[%s1 + $0x50] sm:$0xff]
  %v607 = vld [vmem:[%s1 + $0x58] sm:$0xff]
  %v608 = vld [vmem:[%s1 + $0x60] sm:$0xff]
  %v609 = vld [vmem:[%s1 + $0x68] sm:$0xff]
  %624 = vrot.lane.b32.xlu0 %v596, 87
  %v625 = vpop.permute.xlu0 %624
  %626 = vrot.lane.b32.xlu0 %v597, 87
  %v627 = vpop.permute.xlu0 %626
  %628 = vrot.lane.b32.xlu0 %v598, 87
  %v629 = vpop.permute.xlu0 %628
  %630 = vrot.lane.b32.xlu0 %v599, 87
  %v631 = vpop.permute.xlu0 %630
  %632 = vrot.lane.b32.xlu0 %v600, 87
  %v633 = vpop.permute.xlu0 %632
  %634 = vrot.lane.b32.xlu0 %v601, 87
  %v635 = vpop.permute.xlu0 %634
  %636 = vrot.lane.b32.xlu0 %v602, 87
  %v637 = vpop.permute.xlu0 %636
  %638 = vrot.lane.b32.xlu0 %v603, 87
  %v639 = vpop.permute.xlu0 %638
  %640 = vrot.lane.b32.xlu0 %v604, 87
  %v641 = vpop.permute.xlu0 %640
  %642 = vrot.lane.b32.xlu0 %v605, 87
  %v643 = vpop.permute.xlu0 %642
  %644 = vrot.lane.b32.xlu0 %v606, 87
  %v645 = vpop.permute.xlu0 %644
  %646 = vrot.lane.b32.xlu0 %v607, 87
  %v647 = vpop.permute.xlu0 %646
  %648 = vrot.lane.b32.xlu0 %v608, 87
  %v649 = vpop.permute.xlu0 %648
  %650 = vrot.lane.b32.xlu0 %v609, 87
  %v651 = vpop.permute.xlu0 %650
  %vm652 = vcmask 711680
  %v653 = vsel %vm652, %v625, %v627
  %v654 = vsel %vm652, %v627, %v629
  %v655 = vsel %vm652, %v629, %v631
  %v656 = vsel %vm652, %v631, %v633
  %v657 = vsel %vm652, %v633, %v635
  %v658 = vsel %vm652, %v635, %v637
  %v659 = vsel %vm652, %v639, %v641
  %v660 = vsel %vm652, %v641, %v643
  %v661 = vsel %vm652, %v643, %v645
  %v662 = vsel %vm652, %v645, %v647
  %v663 = vsel %vm652, %v647, %v649
  %v664 = vsel %vm652, %v649, %v651
  %677 = vst [vmem:[#allocation2 + $0x2a0] sm:$0xff] %v653
  %678 = vst [vmem:[#allocation2 + $0x2a8] sm:$0xff] %v654
  %679 = vst [vmem:[#allocation2 + $0x2b0] sm:$0xff] %v655
  %680 = vst [vmem:[#allocation2 + $0x2b8] sm:$0xff] %v656
  %681 = vst [vmem:[#allocation2 + $0x2c0] sm:$0xff] %v657
  %682 = vst [vmem:[#allocation2 + $0x2c8] sm:$0xff] %v658
  %683 = vst [vmem:[#allocation2 + $0x2d0] sm:$0xff] %v659
  %684 = vst [vmem:[#allocation2 + $0x2d8] sm:$0xff] %v660
  %685 = vst [vmem:[#allocation2 + $0x2e0] sm:$0xff] %v661
  %686 = vst [vmem:[#allocation2 + $0x2e8] sm:$0xff] %v662
  %687 = vst [vmem:[#allocation2 + $0x2f0] sm:$0xff] %v663
  %688 = vst [vmem:[#allocation2 + $0x2f8] sm:$0xff] %v664
  %v689 = vld [vmem:[%s1] sm:$0xff]
  %v690 = vld [vmem:[%s1 + $0x8] sm:$0xff]
  %v691 = vld [vmem:[%s1 + $0x10] sm:$0xff]
  %v692 = vld [vmem:[%s1 + $0x18] sm:$0xff]
  %v693 = vld [vmem:[%s1 + $0x20] sm:$0xff]
  %v694 = vld [vmem:[%s1 + $0x28] sm:$0xff]
  %v695 = vld [vmem:[%s1 + $0x30] sm:$0xff]
  %v696 = vld [vmem:[%s1 + $0x38] sm:$0xff]
  %v697 = vld [vmem:[%s1 + $0x40] sm:$0xff]
  %v698 = vld [vmem:[%s1 + $0x48] sm:$0xff]
  %v699 = vld [vmem:[%s1 + $0x50] sm:$0xff]
  %v700 = vld [vmem:[%s1 + $0x58] sm:$0xff]
  %v701 = vld [vmem:[%s1 + $0x60] sm:$0xff]
  %v702 = vld [vmem:[%s1 + $0x68] sm:$0xff]
  %717 = vrot.lane.b32.xlu0 %v689, 86
  %v718 = vpop.permute.xlu0 %717
  %719 = vrot.lane.b32.xlu0 %v690, 86
  %v720 = vpop.permute.xlu0 %719
  %721 = vrot.lane.b32.xlu0 %v691, 86
  %v722 = vpop.permute.xlu0 %721
  %723 = vrot.lane.b32.xlu0 %v692, 86
  %v724 = vpop.permute.xlu0 %723
  %725 = vrot.lane.b32.xlu0 %v693, 86
  %v726 = vpop.permute.xlu0 %725
  %727 = vrot.lane.b32.xlu0 %v694, 86
  %v728 = vpop.permute.xlu0 %727
  %729 = vrot.lane.b32.xlu0 %v695, 86
  %v730 = vpop.permute.xlu0 %729
  %731 = vrot.lane.b32.xlu0 %v696, 86
  %v732 = vpop.permute.xlu0 %731
  %733 = vrot.lane.b32.xlu0 %v697, 86
  %v734 = vpop.permute.xlu0 %733
  %735 = vrot.lane.b32.xlu0 %v698, 86
  %v736 = vpop.permute.xlu0 %735
  %737 = vrot.lane.b32.xlu0 %v699, 86
  %v738 = vpop.permute.xlu0 %737
  %739 = vrot.lane.b32.xlu0 %v700, 86
  %v740 = vpop.permute.xlu0 %739
  %741 = vrot.lane.b32.xlu0 %v701, 86
  %v742 = vpop.permute.xlu0 %741
  %743 = vrot.lane.b32.xlu0 %v702, 86
  %v744 = vpop.permute.xlu0 %743
  %vm745 = vcmask 703488
  %v746 = vsel %vm745, %v718, %v720
  %v747 = vsel %vm745, %v720, %v722
  %v748 = vsel %vm745, %v722, %v724
  %v749 = vsel %vm745, %v724, %v726
  %v750 = vsel %vm745, %v726, %v728
  %v751 = vsel %vm745, %v728, %v730
  %v752 = vsel %vm745, %v732, %v734
  %v753 = vsel %vm745, %v734, %v736
  %v754 = vsel %vm745, %v736, %v738
  %v755 = vsel %vm745, %v738, %v740
  %v756 = vsel %vm745, %v740, %v742
  %v757 = vsel %vm745, %v742, %v744
  %770 = vst [vmem:[#allocation2 + $0x300] sm:$0xff] %v746
  %771 = vst [vmem:[#allocation2 + $0x308] sm:$0xff] %v747
  %772 = vst [vmem:[#allocation2 + $0x310] sm:$0xff] %v748
  %773 = vst [vmem:[#allocation2 + $0x318] sm:$0xff] %v749
  %774 = vst [vmem:[#allocation2 + $0x320] sm:$0xff] %v750
  %775 = vst [vmem:[#allocation2 + $0x328] sm:$0xff] %v751
  %776 = vst [vmem:[#allocation2 + $0x330] sm:$0xff] %v752
  %777 = vst [vmem:[#allocation2 + $0x338] sm:$0xff] %v753
  %778 = vst [vmem:[#allocation2 + $0x340] sm:$0xff] %v754
  %779 = vst [vmem:[#allocation2 + $0x348] sm:$0xff] %v755
  %780 = vst [vmem:[#allocation2 + $0x350] sm:$0xff] %v756
  %781 = vst [vmem:[#allocation2 + $0x358] sm:$0xff] %v757
  %v782 = vld [vmem:[%s0] sm:$0xff]
  %v783 = vld [vmem:[%s0 + $0x8] sm:$0xff]
  %v784 = vld [vmem:[%s0 + $0x10] sm:$0x3]
  %v785 = vld [vmem:[%s0 + $0x18] sm:$0x3]
  %v786 = vld [vmem:[#allocation2] sm:$0xff]
  %v787 = vld [vmem:[#allocation2 + $0x8] sm:$0xff]
  %v788 = vld [vmem:[#allocation2 + $0x10] sm:$0xff]
  %v789 = vld [vmem:[#allocation2 + $0x18] sm:$0xff]
  %v790 = vld [vmem:[#allocation2 + $0x20] sm:$0xff]
  %v791 = vld [vmem:[#allocation2 + $0x28] sm:$0xff]
  %v792 = vld [vmem:[#allocation2 + $0x30] sm:$0xff]
  %v793 = vld [vmem:[#allocation2 + $0x38] sm:$0xff]
  %v794 = vld [vmem:[#allocation2 + $0x40] sm:$0xff]
  %v795 = vld [vmem:[#allocation2 + $0x48] sm:$0xff]
  %v796 = vld [vmem:[#allocation2 + $0x50] sm:$0xff]
  %v797 = vld [vmem:[#allocation2 + $0x58] sm:$0xff]
  %v798 = vld [vmem:[#allocation2 + $0x60] sm:$0xff]
  %v799 = vld [vmem:[#allocation2 + $0x68] sm:$0xff]
  %v800 = vld [vmem:[#allocation2 + $0x70] sm:$0xff]
  %v801 = vld [vmem:[#allocation2 + $0x78] sm:$0xff]
  %v802 = vld [vmem:[#allocation2 + $0x80] sm:$0xff]
  %v803 = vld [vmem:[#allocation2 + $0x88] sm:$0xff]
  %v804 = vld [vmem:[#allocation2 + $0x90] sm:$0xff]
  %v805 = vld [vmem:[#allocation2 + $0x98] sm:$0xff]
  %v806 = vld [vmem:[#allocation2 + $0xa0] sm:$0xff]
  %v807 = vld [vmem:[#allocation2 + $0xa8] sm:$0xff]
  %v808 = vld [vmem:[#allocation2 + $0xb0] sm:$0xff]
  %v809 = vld [vmem:[#allocation2 + $0xb8] sm:$0xff]
  %v810 = vld [vmem:[#allocation2 + $0xc0] sm:$0xff]
  %v811 = vld [vmem:[#allocation2 + $0xc8] sm:$0xff]
  %v812 = vld [vmem:[#allocation2 + $0xd0] sm:$0xff]
  %v813 = vld [vmem:[#allocation2 + $0xd8] sm:$0xff]
  %v814 = vld [vmem:[#allocation2 + $0xe0] sm:$0xff]
  %v815 = vld [vmem:[#allocation2 + $0xe8] sm:$0xff]
  %v816 = vld [vmem:[#allocation2 + $0xf0] sm:$0xff]
  %v817 = vld [vmem:[#allocation2 + $0xf8] sm:$0xff]
  %v818 = vld [vmem:[#allocation2 + $0x100] sm:$0xff]
  %v819 = vld [vmem:[#allocation2 + $0x108] sm:$0xff]
  %v820 = vld [vmem:[#allocation2 + $0x110] sm:$0xff]
  %v821 = vld [vmem:[#allocation2 + $0x118] sm:$0xff]
  %v822 = vld [vmem:[#allocation2 + $0x120] sm:$0xff]
  %v823 = vld [vmem:[#allocation2 + $0x128] sm:$0xff]
  %v824 = vld [vmem:[#allocation2 + $0x130] sm:$0xff]
  %v825 = vld [vmem:[#allocation2 + $0x138] sm:$0xff]
  %v826 = vld [vmem:[#allocation2 + $0x140] sm:$0xff]
  %v827 = vld [vmem:[#allocation2 + $0x148] sm:$0xff]
  %v828 = vld [vmem:[#allocation2 + $0x150] sm:$0xff]
  %v829 = vld [vmem:[#allocation2 + $0x158] sm:$0xff]
  %v830 = vld [vmem:[#allocation2 + $0x160] sm:$0xff]
  %v831 = vld [vmem:[#allocation2 + $0x168] sm:$0xff]
  %v832 = vld [vmem:[#allocation2 + $0x170] sm:$0xff]
  %v833 = vld [vmem:[#allocation2 + $0x178] sm:$0xff]
  %v834 = vld [vmem:[#allocation2 + $0x180] sm:$0xff]
  %v835 = vld [vmem:[#allocation2 + $0x188] sm:$0xff]
  %v836 = vld [vmem:[#allocation2 + $0x190] sm:$0xff]
  %v837 = vld [vmem:[#allocation2 + $0x198] sm:$0xff]
  %v838 = vld [vmem:[#allocation2 + $0x1a0] sm:$0xff]
  %v839 = vld [vmem:[#allocation2 + $0x1a8] sm:$0xff]
  %v840 = vld [vmem:[#allocation2 + $0x1b0] sm:$0xff]
  %v841 = vld [vmem:[#allocation2 + $0x1b8] sm:$0xff]
  %v842 = vld [vmem:[#allocation2 + $0x1c0] sm:$0xff]
  %v843 = vld [vmem:[#allocation2 + $0x1c8] sm:$0xff]
  %v844 = vld [vmem:[#allocation2 + $0x1d0] sm:$0xff]
  %v845 = vld [vmem:[#allocation2 + $0x1d8] sm:$0xff]
  %v846 = vld [vmem:[#allocation2 + $0x1e0] sm:$0xff]
  %v847 = vld [vmem:[#allocation2 + $0x1e8] sm:$0xff]
  %v848 = vld [vmem:[#allocation2 + $0x1f0] sm:$0xff]
  %v849 = vld [vmem:[#allocation2 + $0x1f8] sm:$0xff]
  %v850 = vld [vmem:[#allocation2 + $0x200] sm:$0xff]
  %v851 = vld [vmem:[#allocation2 + $0x208] sm:$0xff]
  %v852 = vld [vmem:[#allocation2 + $0x210] sm:$0xff]
  %v853 = vld [vmem:[#allocation2 + $0x218] sm:$0xff]
  %v854 = vld [vmem:[#allocation2 + $0x220] sm:$0xff]
  %v855 = vld [vmem:[#allocation2 + $0x228] sm:$0xff]
  %v856 = vld [vmem:[#allocation2 + $0x230] sm:$0xff]
  %v857 = vld [vmem:[#allocation2 + $0x238] sm:$0xff]
  %v858 = vld [vmem:[#allocation2 + $0x240] sm:$0xff]
  %v859 = vld [vmem:[#allocation2 + $0x248] sm:$0xff]
  %v860 = vld [vmem:[#allocation2 + $0x250] sm:$0xff]
  %v861 = vld [vmem:[#allocation2 + $0x258] sm:$0xff]
  %v862 = vld [vmem:[#allocation2 + $0x260] sm:$0xff]
  %v863 = vld [vmem:[#allocation2 + $0x268] sm:$0xff]
  %v864 = vld [vmem:[#allocation2 + $0x270] sm:$0xff]
  %v865 = vld [vmem:[#allocation2 + $0x278] sm:$0xff]
  %v866 = vld [vmem:[#allocation2 + $0x280] sm:$0xff]
  %v867 = vld [vmem:[#allocation2 + $0x288] sm:$0xff]
  %v868 = vld [vmem:[#allocation2 + $0x290] sm:$0xff]
  %v869 = vld [vmem:[#allocation2 + $0x298] sm:$0xff]
  %v870 = vld [vmem:[#allocation2 + $0x2a0] sm:$0xff]
  %v871 = vld [vmem:[#allocation2 + $0x2a8] sm:$0xff]
  %v872 = vld [vmem:[#allocation2 + $0x2b0] sm:$0xff]
  %v873 = vld [vmem:[#allocation2 + $0x2b8] sm:$0xff]
  %v874 = vld [vmem:[#allocation2 + $0x2c0] sm:$0xff]
  %v875 = vld [vmem:[#allocation2 + $0x2c8] sm:$0xff]
  %v876 = vld [vmem:[#allocation2 + $0x2d0] sm:$0xff]
  %v877 = vld [vmem:[#allocation2 + $0x2d8] sm:$0xff]
  %v878 = vld [vmem:[#allocation2 + $0x2e0] sm:$0xff]
  %v879 = vld [vmem:[#allocation2 + $0x2e8] sm:$0xff]
  %v880 = vld [vmem:[#allocation2 + $0x2f0] sm:$0xff]
  %v881 = vld [vmem:[#allocation2 + $0x2f8] sm:$0xff]
  %v882 = vld [vmem:[#allocation2 + $0x300] sm:$0xff]
  %v883 = vld [vmem:[#allocation2 + $0x308] sm:$0xff]
  %v884 = vld [vmem:[#allocation2 + $0x310] sm:$0xff]
  %v885 = vld [vmem:[#allocation2 + $0x318] sm:$0xff]
  %v886 = vld [vmem:[#allocation2 + $0x320] sm:$0xff]
  %v887 = vld [vmem:[#allocation2 + $0x328] sm:$0xff]
  %v888 = vld [vmem:[#allocation2 + $0x330] sm:$0xff]
  %v889 = vld [vmem:[#allocation2 + $0x338] sm:$0xff]
  %v890 = vld [vmem:[#allocation2 + $0x340] sm:$0xff]
  %v891 = vld [vmem:[#allocation2 + $0x348] sm:$0xff]
  %v892 = vld [vmem:[#allocation2 + $0x350] sm:$0xff]
  %v893 = vld [vmem:[#allocation2 + $0x358] sm:$0xff]
  %vm894 = vcmask 130048
  %v896 = vsel %vm894, %v783, 0
  %v899 = vsel %vm894, %v785, 0
  %v901 = vand.u32 %v877, 4294901760
  %902 = vmatprep.subr.mxu0 %v901
  %v903 = vand.u32 %v876, 4294901760
  %904 = vmatpush1.msra.mxu0 %v903
  %v905 = vand.u32 %v871, 4294901760
  %906 = vmatprep.subr.mxu0 %v905
  %v907 = vand.u32 %v870, 4294901760
  %908 = vmatpush1.msra.mxu0 %v907
  %v909 = vand.u32 %v865, 4294901760
  %910 = vmatprep.subr.mxu0 %v909
  %v911 = vand.u32 %v864, 4294901760
  %912 = vmatpush1.msra.mxu0 %v911
  %v913 = vand.u32 %v859, 4294901760
  %914 = vmatprep.subr.mxu0 %v913
  %v915 = vand.u32 %v858, 4294901760
  %916 = vmatpush1.msra.mxu0 %v915
  %v917 = vand.u32 %v853, 4294901760
  %918 = vmatprep.subr.mxu0 %v917
  %v919 = vand.u32 %v852, 4294901760
  %920 = vmatpush1.msra.mxu0 %v919
  %v921 = vand.u32 %v847, 4294901760
  %922 = vmatprep.subr.mxu0 %v921
  %v923 = vand.u32 %v846, 4294901760
  %924 = vmatpush1.msra.mxu0 %v923
  %v925 = vand.u32 %v841, 4294901760
  %926 = vmatprep.subr.mxu0 %v925
  %v927 = vand.u32 %v840, 4294901760
  %928 = vmatpush1.msra.mxu0 %v927
  %v929 = vand.u32 %v835, 4294901760
  %930 = vmatprep.subr.mxu0 %v929
  %v931 = vand.u32 %v834, 4294901760
  %932 = vmatpush1.msra.mxu0 %v931
  %v933 = vand.u32 %v829, 4294901760
  %934 = vmatprep.subr.mxu0 %v933
  %v935 = vand.u32 %v828, 4294901760
  %936 = vmatpush1.msra.mxu0 %v935
  %v937 = vand.u32 %v823, 4294901760
  %938 = vmatprep.subr.mxu0 %v937
  %v939 = vand.u32 %v822, 4294901760
  %940 = vmatpush1.msra.mxu0 %v939
  %v941 = vand.u32 %v817, 4294901760
  %942 = vmatprep.subr.mxu0 %v941
  %v943 = vand.u32 %v816, 4294901760
  %944 = vmatpush1.msra.mxu0 %v943
  %v945 = vand.u32 %v811, 4294901760
  %946 = vmatprep.subr.mxu0 %v945
  %v947 = vand.u32 %v810, 4294901760
  %948 = vmatpush1.msra.mxu0 %v947
  %v949 = vand.u32 %v805, 4294901760
  %950 = vmatprep.subr.mxu0 %v949
  %v951 = vand.u32 %v804, 4294901760
  %952 = vmatpush1.msra.mxu0 %v951
  %v953 = vand.u32 %v799, 4294901760
  %954 = vmatprep.subr.mxu0 %v953
  %v955 = vand.u32 %v798, 4294901760
  %956 = vmatpush1.msra.mxu0 %v955
  %v957 = vand.u32 %v793, 4294901760
  %958 = vmatprep.subr.mxu0 %v957
  %v959 = vand.u32 %v792, 4294901760
  %960 = vmatpush1.msra.mxu0 %v959
  %v961 = vand.u32 %v787, 4294901760
  %962 = vmatprep.subr.mxu0 %v961
  %v963 = vand.u32 %v786, 4294901760
  %964 = vmatpush1.msra.mxu0 %v963
  %965 = vmatprep.subr.mxu0 0.0
  %966 = vmatpush2.msra.mxu0 0.0
  %967 = vmatprep.subr.mxu0 0.0
  %968 = vmatpush2.msra.mxu0 0.0
  %969 = vmatprep.subr.mxu0 0.0
  %970 = vmatpush2.msra.mxu0 0.0
  %971 = vmatprep.subr.mxu0 0.0
  %972 = vmatpush2.msra.mxu0 0.0
  %973 = vmatprep.subr.mxu0 0.0
  %974 = vmatpush2.msra.mxu0 0.0
  %975 = vmatprep.subr.mxu0 0.0
  %976 = vmatpush2.msra.mxu0 0.0
  %977 = vmatprep.subr.mxu0 0.0
  %978 = vmatpush2.msra.mxu0 0.0
  %979 = vmatprep.subr.mxu0 0.0
  %980 = vmatpush2.msra.mxu0 0.0
  %981 = vmatprep.subr.mxu0 0.0
  %982 = vmatpush2.msra.mxu0 0.0
  %983 = vmatprep.subr.mxu0 0.0
  %984 = vmatpush2.msra.mxu0 0.0
  %985 = vmatprep.subr.mxu0 0.0
  %986 = vmatpush2.msra.mxu0 0.0
  %987 = vmatprep.subr.mxu0 0.0
  %988 = vmatpush2.msra.mxu0 0.0
  %989 = vmatprep.subr.mxu0 0.0
  %990 = vmatpush2.msra.mxu0 0.0
  %991 = vmatprep.subr.mxu0 0.0
  %992 = vmatpush2.msra.mxu0 0.0
  %v993 = vand.u32 %v889, 4294901760
  %994 = vmatprep.subr.mxu0 %v993
  %v995 = vand.u32 %v888, 4294901760
  %996 = vmatpush2.msra.mxu0 %v995
  %v997 = vand.u32 %v883, 4294901760
  %998 = vmatprep.subr.mxu0 %v997
  %v999 = vand.u32 %v882, 4294901760
  %1000 = vmatpush2.msra.mxu0 %v999
  %v1001 = vand.u32 %v896, 4294901760
  %v1002 = vsub.f32 %v896, %v1001
  %v1003 = vand.u32 %v1002, 4294901760
  %v1004 = vsub.f32 %v1002, %v1003
  %v1005 = vand.u32 %v1004, 4294901760
  %1006 = vmatprep.mubr.f32.mxu0 %v1005
  %v1007 = vand.u32 %v782, 4294901760
  %v1008 = vsub.f32 %v782, %v1007
  %v1009 = vand.u32 %v1008, 4294901760
  %v1010 = vsub.f32 %v1008, %v1009
  %v1011 = vand.u32 %v1010, 4294901760
  %1012 = vmatmul.mubr.f32.gmra.mxu0 %v1011
  %v1013 = vpop.f32.mrf.mxu0
  %v1014 = vadd.f32 0.0, %v1013
  %v1015 = vpop.f32.mrf.mxu0
  %v1016 = vadd.f32 0.0, %v1015
  %v1017 = vand.u32 %v899, 4294901760
  %v1018 = vsub.f32 %v899, %v1017
  %v1019 = vand.u32 %v1018, 4294901760
  %v1020 = vsub.f32 %v1018, %v1019
  %v1021 = vand.u32 %v1020, 4294901760
  %1022 = vmatprep.mubr.f32.mxu0 %v1021
  %v1023 = vand.u32 %v784, 4294901760
  %v1024 = vsub.f32 %v784, %v1023
  %v1025 = vand.u32 %v1024, 4294901760
  %v1026 = vsub.f32 %v1024, %v1025
  %v1027 = vand.u32 %v1026, 4294901760
  %1028 = vmatmul.mubr.f32.gmra.mxu0 %v1027
  %v1029 = vpop.f32.mrf.mxu0
  %v1030 = vadd.f32 0.0, %v1029
  %v1031 = vpop.f32.mrf.mxu0
  %v1032 = vadd.f32 0.0, %v1031
  %1033 = vdwg.mxu0
  %v1034 = vand.u32 %v877, 4294901760
  %v1035 = vsub.f32 %v877, %v1034
  %v1036 = vand.u32 %v1035, 4294901760
  %v1037 = vsub.f32 %v1035, %v1036
  %v1038 = vand.u32 %v1037, 4294901760
  %1039 = vmatprep.subr.mxu0 %v1038
  %v1040 = vand.u32 %v876, 4294901760
  %v1041 = vsub.f32 %v876, %v1040
  %v1042 = vand.u32 %v1041, 4294901760
  %v1043 = vsub.f32 %v1041, %v1042
  %v1044 = vand.u32 %v1043, 4294901760
  %1045 = vmatpush1.msra.mxu0 %v1044
  %v1046 = vand.u32 %v871, 4294901760
  %v1047 = vsub.f32 %v871, %v1046
  %v1048 = vand.u32 %v1047, 4294901760
  %v1049 = vsub.f32 %v1047, %v1048
  %v1050 = vand.u32 %v1049, 4294901760
  %1051 = vmatprep.subr.mxu0 %v1050
  %v1052 = vand.u32 %v870, 4294901760
  %v1053 = vsub.f32 %v870, %v1052
  %v1054 = vand.u32 %v1053, 4294901760
  %v1055 = vsub.f32 %v1053, %v1054
  %v1056 = vand.u32 %v1055, 4294901760
  %1057 = vmatpush1.msra.mxu0 %v1056
  %v1058 = vand.u32 %v865, 4294901760
  %v1059 = vsub.f32 %v865, %v1058
  %v1060 = vand.u32 %v1059, 4294901760
  %v1061 = vsub.f32 %v1059, %v1060
  %v1062 = vand.u32 %v1061, 4294901760
  %1063 = vmatprep.subr.mxu0 %v1062
  %v1064 = vand.u32 %v864, 4294901760
  %v1065 = vsub.f32 %v864, %v1064
  %v1066 = vand.u32 %v1065, 4294901760
  %v1067 = vsub.f32 %v1065, %v1066
  %v1068 = vand.u32 %v1067, 4294901760
  %1069 = vmatpush1.msra.mxu0 %v1068
  %v1070 = vand.u32 %v859, 4294901760
  %v1071 = vsub.f32 %v859, %v1070
  %v1072 = vand.u32 %v1071, 4294901760
  %v1073 = vsub.f32 %v1071, %v1072
  %v1074 = vand.u32 %v1073, 4294901760
  %1075 = vmatprep.subr.mxu0 %v1074
  %v1076 = vand.u32 %v858, 4294901760
  %v1077 = vsub.f32 %v858, %v1076
  %v1078 = vand.u32 %v1077, 4294901760
  %v1079 = vsub.f32 %v1077, %v1078
  %v1080 = vand.u32 %v1079, 4294901760
  %1081 = vmatpush1.msra.mxu0 %v1080
  %v1082 = vand.u32 %v853, 4294901760
  %v1083 = vsub.f32 %v853, %v1082
  %v1084 = vand.u32 %v1083, 4294901760
  %v1085 = vsub.f32 %v1083, %v1084
  %v1086 = vand.u32 %v1085, 4294901760
  %1087 = vmatprep.subr.mxu0 %v1086
  %v1088 = vand.u32 %v852, 4294901760
  %v1089 = vsub.f32 %v852, %v1088
  %v1090 = vand.u32 %v1089, 4294901760
  %v1091 = vsub.f32 %v1089, %v1090
  %v1092 = vand.u32 %v1091, 4294901760
  %1093 = vmatpush1.msra.mxu0 %v1092
  %v1094 = vand.u32 %v847, 4294901760
  %v1095 = vsub.f32 %v847, %v1094
  %v1096 = vand.u32 %v1095, 4294901760
  %v1097 = vsub.f32 %v1095, %v1096
  %v1098 = vand.u32 %v1097, 4294901760
  %1099 = vmatprep.subr.mxu0 %v1098
  %v1100 = vand.u32 %v846, 4294901760
  %v1101 = vsub.f32 %v846, %v1100
  %v1102 = vand.u32 %v1101, 4294901760
  %v1103 = vsub.f32 %v1101, %v1102
  %v1104 = vand.u32 %v1103, 4294901760
  %1105 = vmatpush1.msra.mxu0 %v1104
  %v1106 = vand.u32 %v841, 4294901760
  %v1107 = vsub.f32 %v841, %v1106
  %v1108 = vand.u32 %v1107, 4294901760
  %v1109 = vsub.f32 %v1107, %v1108
  %v1110 = vand.u32 %v1109, 4294901760
  %1111 = vmatprep.subr.mxu0 %v1110
  %v1112 = vand.u32 %v840, 4294901760
  %v1113 = vsub.f32 %v840, %v1112
  %v1114 = vand.u32 %v1113, 4294901760
  %v1115 = vsub.f32 %v1113, %v1114
  %v1116 = vand.u32 %v1115, 4294901760
  %1117 = vmatpush1.msra.mxu0 %v1116
  %v1118 = vand.u32 %v835, 4294901760
  %v1119 = vsub.f32 %v835, %v1118
  %v1120 = vand.u32 %v1119, 4294901760
  %v1121 = vsub.f32 %v1119, %v1120
  %v1122 = vand.u32 %v1121, 4294901760
  %1123 = vmatprep.subr.mxu0 %v1122
  %v1124 = vand.u32 %v834, 4294901760
  %v1125 = vsub.f32 %v834, %v1124
  %v1126 = vand.u32 %v1125, 4294901760
  %v1127 = vsub.f32 %v1125, %v1126
  %v1128 = vand.u32 %v1127, 4294901760
  %1129 = vmatpush1.msra.mxu0 %v1128
  %v1130 = vand.u32 %v829, 4294901760
  %v1131 = vsub.f32 %v829, %v1130
  %v1132 = vand.u32 %v1131, 4294901760
  %v1133 = vsub.f32 %v1131, %v1132
  %v1134 = vand.u32 %v1133, 4294901760
  %1135 = vmatprep.subr.mxu0 %v1134
  %v1136 = vand.u32 %v828, 4294901760
  %v1137 = vsub.f32 %v828, %v1136
  %v1138 = vand.u32 %v1137, 4294901760
  %v1139 = vsub.f32 %v1137, %v1138
  %v1140 = vand.u32 %v1139, 4294901760
  %1141 = vmatpush1.msra.mxu0 %v1140
  %v1142 = vand.u32 %v823, 4294901760
  %v1143 = vsub.f32 %v823, %v1142
  %v1144 = vand.u32 %v1143, 4294901760
  %v1145 = vsub.f32 %v1143, %v1144
  %v1146 = vand.u32 %v1145, 4294901760
  %1147 = vmatprep.subr.mxu0 %v1146
  %v1148 = vand.u32 %v822, 4294901760
  %v1149 = vsub.f32 %v822, %v1148
  %v1150 = vand.u32 %v1149, 4294901760
  %v1151 = vsub.f32 %v1149, %v1150
  %v1152 = vand.u32 %v1151, 4294901760
  %1153 = vmatpush1.msra.mxu0 %v1152
  %v1154 = vand.u32 %v817, 4294901760
  %v1155 = vsub.f32 %v817, %v1154
  %v1156 = vand.u32 %v1155, 4294901760
  %v1157 = vsub.f32 %v1155, %v1156
  %v1158 = vand.u32 %v1157, 4294901760
  %1159 = vmatprep.subr.mxu0 %v1158
  %v1160 = vand.u32 %v816, 4294901760
  %v1161 = vsub.f32 %v816, %v1160
  %v1162 = vand.u32 %v1161, 4294901760
  %v1163 = vsub.f32 %v1161, %v1162
  %v1164 = vand.u32 %v1163, 4294901760
  %1165 = vmatpush1.msra.mxu0 %v1164
  %v1166 = vand.u32 %v811, 4294901760
  %v1167 = vsub.f32 %v811, %v1166
  %v1168 = vand.u32 %v1167, 4294901760
  %v1169 = vsub.f32 %v1167, %v1168
  %v1170 = vand.u32 %v1169, 4294901760
  %1171 = vmatprep.subr.mxu0 %v1170
  %v1172 = vand.u32 %v810, 4294901760
  %v1173 = vsub.f32 %v810, %v1172
  %v1174 = vand.u32 %v1173, 4294901760
  %v1175 = vsub.f32 %v1173, %v1174
  %v1176 = vand.u32 %v1175, 4294901760
  %1177 = vmatpush1.msra.mxu0 %v1176
  %v1178 = vand.u32 %v805, 4294901760
  %v1179 = vsub.f32 %v805, %v1178
  %v1180 = vand.u32 %v1179, 4294901760
  %v1181 = vsub.f32 %v1179, %v1180
  %v1182 = vand.u32 %v1181, 4294901760
  %1183 = vmatprep.subr.mxu0 %v1182
  %v1184 = vand.u32 %v804, 4294901760
  %v1185 = vsub.f32 %v804, %v1184
  %v1186 = vand.u32 %v1185, 4294901760
  %v1187 = vsub.f32 %v1185, %v1186
  %v1188 = vand.u32 %v1187, 4294901760
  %1189 = vmatpush1.msra.mxu0 %v1188
  %v1190 = vand.u32 %v799, 4294901760
  %v1191 = vsub.f32 %v799, %v1190
  %v1192 = vand.u32 %v1191, 4294901760
  %v1193 = vsub.f32 %v1191, %v1192
  %v1194 = vand.u32 %v1193, 4294901760
  %1195 = vmatprep.subr.mxu0 %v1194
  %v1196 = vand.u32 %v798, 4294901760
  %v1197 = vsub.f32 %v798, %v1196
  %v1198 = vand.u32 %v1197, 4294901760
  %v1199 = vsub.f32 %v1197, %v1198
  %v1200 = vand.u32 %v1199, 4294901760
  %1201 = vmatpush1.msra.mxu0 %v1200
  %v1202 = vand.u32 %v793, 4294901760
  %v1203 = vsub.f32 %v793, %v1202
  %v1204 = vand.u32 %v1203, 4294901760
  %v1205 = vsub.f32 %v1203, %v1204
  %v1206 = vand.u32 %v1205, 4294901760
  %1207 = vmatprep.subr.mxu0 %v1206
  %v1208 = vand.u32 %v792, 4294901760
  %v1209 = vsub.f32 %v792, %v1208
  %v1210 = vand.u32 %v1209, 4294901760
  %v1211 = vsub.f32 %v1209, %v1210
  %v1212 = vand.u32 %v1211, 4294901760
  %1213 = vmatpush1.msra.mxu0 %v1212
  %v1214 = vand.u32 %v787, 4294901760
  %v1215 = vsub.f32 %v787, %v1214
  %v1216 = vand.u32 %v1215, 4294901760
  %v1217 = vsub.f32 %v1215, %v1216
  %v1218 = vand.u32 %v1217, 4294901760
  %1219 = vmatprep.subr.mxu0 %v1218
  %v1220 = vand.u32 %v786, 4294901760
  %v1221 = vsub.f32 %v786, %v1220
  %v1222 = vand.u32 %v1221, 4294901760
  %v1223 = vsub.f32 %v1221, %v1222
  %v1224 = vand.u32 %v1223, 4294901760
  %1225 = vmatpush1.msra.mxu0 %v1224
  %1226 = vmatprep.subr.mxu0 0.0
  %1227 = vmatpush2.msra.mxu0 0.0
  %1228 = vmatprep.subr.mxu0 0.0
  %1229 = vmatpush2.msra.mxu0 0.0
  %1230 = vmatprep.subr.mxu0 0.0
  %1231 = vmatpush2.msra.mxu0 0.0
  %1232 = vmatprep.subr.mxu0 0.0
  %1233 = vmatpush2.msra.mxu0 0.0
  %1234 = vmatprep.subr.mxu0 0.0
  %1235 = vmatpush2.msra.mxu0 0.0
  %1236 = vmatprep.subr.mxu0 0.0
  %1237 = vmatpush2.msra.mxu0 0.0
  %1238 = vmatprep.subr.mxu0 0.0
  %1239 = vmatpush2.msra.mxu0 0.0
  %1240 = vmatprep.subr.mxu0 0.0
  %1241 = vmatpush2.msra.mxu0 0.0
  %1242 = vmatprep.subr.mxu0 0.0
  %1243 = vmatpush2.msra.mxu0 0.0
  %1244 = vmatprep.subr.mxu0 0.0
  %1245 = vmatpush2.msra.mxu0 0.0
  %1246 = vmatprep.subr.mxu0 0.0
  %1247 = vmatpush2.msra.mxu0 0.0
  %1248 = vmatprep.subr.mxu0 0.0
  %1249 = vmatpush2.msra.mxu0 0.0
  %1250 = vmatprep.subr.mxu0 0.0
  %1251 = vmatpush2.msra.mxu0 0.0
  %1252 = vmatprep.subr.mxu0 0.0
  %1253 = vmatpush2.msra.mxu0 0.0
  %v1254 = vand.u32 %v889, 4294901760
  %v1255 = vsub.f32 %v889, %v1254
  %v1256 = vand.u32 %v1255, 4294901760
  %v1257 = vsub.f32 %v1255, %v1256
  %v1258 = vand.u32 %v1257, 4294901760
  %1259 = vmatprep.subr.mxu0 %v1258
  %v1260 = vand.u32 %v888, 4294901760
  %v1261 = vsub.f32 %v888, %v1260
  %v1262 = vand.u32 %v1261, 4294901760
  %v1263 = vsub.f32 %v1261, %v1262
  %v1264 = vand.u32 %v1263, 4294901760
  %1265 = vmatpush2.msra.mxu0 %v1264
  %v1266 = vand.u32 %v883, 4294901760
  %v1267 = vsub.f32 %v883, %v1266
  %v1268 = vand.u32 %v1267, 4294901760
  %v1269 = vsub.f32 %v1267, %v1268
  %v1270 = vand.u32 %v1269, 4294901760
  %1271 = vmatprep.subr.mxu0 %v1270
  %v1272 = vand.u32 %v882, 4294901760
  %v1273 = vsub.f32 %v882, %v1272
  %v1274 = vand.u32 %v1273, 4294901760
  %v1275 = vsub.f32 %v1273, %v1274
  %v1276 = vand.u32 %v1275, 4294901760
  %1277 = vmatpush2.msra.mxu0 %v1276
  %v1278 = vand.u32 %v896, 4294901760
  %1279 = vmatprep.mubr.f32.mxu0 %v1278
  %v1280 = vand.u32 %v782, 4294901760
  %1281 = vmatmul.mubr.f32.gmra.mxu0 %v1280
  %v1282 = vpop.f32.mrf.mxu0
  %v1283 = vadd.f32 %v1014, %v1282
  %v1284 = vpop.f32.mrf.mxu0
  %v1285 = vadd.f32 %v1016, %v1284
  %v1286 = vand.u32 %v899, 4294901760
  %1287 = vmatprep.mubr.f32.mxu0 %v1286
  %v1288 = vand.u32 %v784, 4294901760
  %1289 = vmatmul.mubr.f32.gmra.mxu0 %v1288
  %v1290 = vpop.f32.mrf.mxu0
  %v1291 = vadd.f32 %v1030, %v1290
  %v1292 = vpop.f32.mrf.mxu0
  %v1293 = vadd.f32 %v1032, %v1292
  %1294 = vdwg.mxu0
  %v1295 = vand.u32 %v877, 4294901760
  %v1296 = vsub.f32 %v877, %v1295
  %1297 = vmatprep.subr.mxu0 %v1296
  %v1298 = vand.u32 %v876, 4294901760
  %v1299 = vsub.f32 %v876, %v1298
  %1300 = vmatpush1.msra.mxu0 %v1299
  %v1301 = vand.u32 %v871, 4294901760
  %v1302 = vsub.f32 %v871, %v1301
  %1303 = vmatprep.subr.mxu0 %v1302
  %v1304 = vand.u32 %v870, 4294901760
  %v1305 = vsub.f32 %v870, %v1304
  %1306 = vmatpush1.msra.mxu0 %v1305
  %v1307 = vand.u32 %v865, 4294901760
  %v1308 = vsub.f32 %v865, %v1307
  %1309 = vmatprep.subr.mxu0 %v1308
  %v1310 = vand.u32 %v864, 4294901760
  %v1311 = vsub.f32 %v864, %v1310
  %1312 = vmatpush1.msra.mxu0 %v1311
  %v1313 = vand.u32 %v859, 4294901760
  %v1314 = vsub.f32 %v859, %v1313
  %1315 = vmatprep.subr.mxu0 %v1314
  %v1316 = vand.u32 %v858, 4294901760
  %v1317 = vsub.f32 %v858, %v1316
  %1318 = vmatpush1.msra.mxu0 %v1317
  %v1319 = vand.u32 %v853, 4294901760
  %v1320 = vsub.f32 %v853, %v1319
  %1321 = vmatprep.subr.mxu0 %v1320
  %v1322 = vand.u32 %v852, 4294901760
  %v1323 = vsub.f32 %v852, %v1322
  %1324 = vmatpush1.msra.mxu0 %v1323
  %v1325 = vand.u32 %v847, 4294901760
  %v1326 = vsub.f32 %v847, %v1325
  %1327 = vmatprep.subr.mxu0 %v1326
  %v1328 = vand.u32 %v846, 4294901760
  %v1329 = vsub.f32 %v846, %v1328
  %1330 = vmatpush1.msra.mxu0 %v1329
  %v1331 = vand.u32 %v841, 4294901760
  %v1332 = vsub.f32 %v841, %v1331
  %1333 = vmatprep.subr.mxu0 %v1332
  %v1334 = vand.u32 %v840, 4294901760
  %v1335 = vsub.f32 %v840, %v1334
  %1336 = vmatpush1.msra.mxu0 %v1335
  %v1337 = vand.u32 %v835, 4294901760
  %v1338 = vsub.f32 %v835, %v1337
  %1339 = vmatprep.subr.mxu0 %v1338
  %v1340 = vand.u32 %v834, 4294901760
  %v1341 = vsub.f32 %v834, %v1340
  %1342 = vmatpush1.msra.mxu0 %v1341
  %v1343 = vand.u32 %v829, 4294901760
  %v1344 = vsub.f32 %v829, %v1343
  %1345 = vmatprep.subr.mxu0 %v1344
  %v1346 = vand.u32 %v828, 4294901760
  %v1347 = vsub.f32 %v828, %v1346
  %1348 = vmatpush1.msra.mxu0 %v1347
  %v1349 = vand.u32 %v823, 4294901760
  %v1350 = vsub.f32 %v823, %v1349
  %1351 = vmatprep.subr.mxu0 %v1350
  %v1352 = vand.u32 %v822, 4294901760
  %v1353 = vsub.f32 %v822, %v1352
  %1354 = vmatpush1.msra.mxu0 %v1353
  %v1355 = vand.u32 %v817, 4294901760
  %v1356 = vsub.f32 %v817, %v1355
  %1357 = vmatprep.subr.mxu0 %v1356
  %v1358 = vand.u32 %v816, 4294901760
  %v1359 = vsub.f32 %v816, %v1358
  %1360 = vmatpush1.msra.mxu0 %v1359
  %v1361 = vand.u32 %v811, 4294901760
  %v1362 = vsub.f32 %v811, %v1361
  %1363 = vmatprep.subr.mxu0 %v1362
  %v1364 = vand.u32 %v810, 4294901760
  %v1365 = vsub.f32 %v810, %v1364
  %1366 = vmatpush1.msra.mxu0 %v1365
  %v1367 = vand.u32 %v805, 4294901760
  %v1368 = vsub.f32 %v805, %v1367
  %1369 = vmatprep.subr.mxu0 %v1368
  %v1370 = vand.u32 %v804, 4294901760
  %v1371 = vsub.f32 %v804, %v1370
  %1372 = vmatpush1.msra.mxu0 %v1371
  %v1373 = vand.u32 %v799, 4294901760
  %v1374 = vsub.f32 %v799, %v1373
  %1375 = vmatprep.subr.mxu0 %v1374
  %v1376 = vand.u32 %v798, 4294901760
  %v1377 = vsub.f32 %v798, %v1376
  %1378 = vmatpush1.msra.mxu0 %v1377
  %v1379 = vand.u32 %v793, 4294901760
  %v1380 = vsub.f32 %v793, %v1379
  %1381 = vmatprep.subr.mxu0 %v1380
  %v1382 = vand.u32 %v792, 4294901760
  %v1383 = vsub.f32 %v792, %v1382
  %1384 = vmatpush1.msra.mxu0 %v1383
  %v1385 = vand.u32 %v787, 4294901760
  %v1386 = vsub.f32 %v787, %v1385
  %1387 = vmatprep.subr.mxu0 %v1386
  %v1388 = vand.u32 %v786, 4294901760
  %v1389 = vsub.f32 %v786, %v1388
  %1390 = vmatpush1.msra.mxu0 %v1389
  %1391 = vmatprep.subr.mxu0 0.0
  %1392 = vmatpush2.msra.mxu0 0.0
  %1393 = vmatprep.subr.mxu0 0.0
  %1394 = vmatpush2.msra.mxu0 0.0
  %1395 = vmatprep.subr.mxu0 0.0
  %1396 = vmatpush2.msra.mxu0 0.0
  %1397 = vmatprep.subr.mxu0 0.0
  %1398 = vmatpush2.msra.mxu0 0.0
  %1399 = vmatprep.subr.mxu0 0.0
  %1400 = vmatpush2.msra.mxu0 0.0
  %1401 = vmatprep.subr.mxu0 0.0
  %1402 = vmatpush2.msra.mxu0 0.0
  %1403 = vmatprep.subr.mxu0 0.0
  %1404 = vmatpush2.msra.mxu0 0.0
  %1405 = vmatprep.subr.mxu0 0.0
  %1406 = vmatpush2.msra.mxu0 0.0
  %1407 = vmatprep.subr.mxu0 0.0
  %1408 = vmatpush2.msra.mxu0 0.0
  %1409 = vmatprep.subr.mxu0 0.0
  %1410 = vmatpush2.msra.mxu0 0.0
  %1411 = vmatprep.subr.mxu0 0.0
  %1412 = vmatpush2.msra.mxu0 0.0
  %1413 = vmatprep.subr.mxu0 0.0
  %1414 = vmatpush2.msra.mxu0 0.0
  %1415 = vmatprep.subr.mxu0 0.0
  %1416 = vmatpush2.msra.mxu0 0.0
  %1417 = vmatprep.subr.mxu0 0.0
  %1418 = vmatpush2.msra.mxu0 0.0
  %v1419 = vand.u32 %v889, 4294901760
  %v1420 = vsub.f32 %v889, %v1419
  %1421 = vmatprep.subr.mxu0 %v1420
  %v1422 = vand.u32 %v888, 4294901760
  %v1423 = vsub.f32 %v888, %v1422
  %1424 = vmatpush2.msra.mxu0 %v1423
  %v1425 = vand.u32 %v883, 4294901760
  %v1426 = vsub.f32 %v883, %v1425
  %1427 = vmatprep.subr.mxu0 %v1426
  %v1428 = vand.u32 %v882, 4294901760
  %v1429 = vsub.f32 %v882, %v1428
  %1430 = vmatpush2.msra.mxu0 %v1429
  %v1431 = vand.u32 %v896, 4294901760
  %v1432 = vsub.f32 %v896, %v1431
  %1433 = vmatprep.mubr.f32.mxu0 %v1432
  %v1434 = vand.u32 %v782, 4294901760
  %v1435 = vsub.f32 %v782, %v1434
  %1436 = vmatmul.mubr.f32.gmra.mxu0 %v1435
  %v1437 = vpop.f32.mrf.mxu0
  %v1438 = vadd.f32 %v1283, %v1437
  %v1439 = vpop.f32.mrf.mxu0
  %v1440 = vadd.f32 %v1285, %v1439
  %v1441 = vand.u32 %v899, 4294901760
  %v1442 = vsub.f32 %v899, %v1441
  %1443 = vmatprep.mubr.f32.mxu0 %v1442
  %v1444 = vand.u32 %v784, 4294901760
  %v1445 = vsub.f32 %v784, %v1444
  %1446 = vmatmul.mubr.f32.gmra.mxu0 %v1445
  %v1447 = vpop.f32.mrf.mxu0
  %v1448 = vadd.f32 %v1291, %v1447
  %v1449 = vpop.f32.mrf.mxu0
  %v1450 = vadd.f32 %v1293, %v1449
  %1451 = vdwg.mxu0
  %v1452 = vand.u32 %v877, 4294901760
  %1453 = vmatprep.subr.mxu0 %v1452
  %v1454 = vand.u32 %v876, 4294901760
  %1455 = vmatpush1.msra.mxu0 %v1454
  %v1456 = vand.u32 %v871, 4294901760
  %1457 = vmatprep.subr.mxu0 %v1456
  %v1458 = vand.u32 %v870, 4294901760
  %1459 = vmatpush1.msra.mxu0 %v1458
  %v1460 = vand.u32 %v865, 4294901760
  %1461 = vmatprep.subr.mxu0 %v1460
  %v1462 = vand.u32 %v864, 4294901760
  %1463 = vmatpush1.msra.mxu0 %v1462
  %v1464 = vand.u32 %v859, 4294901760
  %1465 = vmatprep.subr.mxu0 %v1464
  %v1466 = vand.u32 %v858, 4294901760
  %1467 = vmatpush1.msra.mxu0 %v1466
  %v1468 = vand.u32 %v853, 4294901760
  %1469 = vmatprep.subr.mxu0 %v1468
  %v1470 = vand.u32 %v852, 4294901760
  %1471 = vmatpush1.msra.mxu0 %v1470
  %v1472 = vand.u32 %v847, 4294901760
  %1473 = vmatprep.subr.mxu0 %v1472
  %v1474 = vand.u32 %v846, 4294901760
  %1475 = vmatpush1.msra.mxu0 %v1474
  %v1476 = vand.u32 %v841, 4294901760
  %1477 = vmatprep.subr.mxu0 %v1476
  %v1478 = vand.u32 %v840, 4294901760
  %1479 = vmatpush1.msra.mxu0 %v1478
  %v1480 = vand.u32 %v835, 4294901760
  %1481 = vmatprep.subr.mxu0 %v1480
  %v1482 = vand.u32 %v834, 4294901760
  %1483 = vmatpush1.msra.mxu0 %v1482
  %v1484 = vand.u32 %v829, 4294901760
  %1485 = vmatprep.subr.mxu0 %v1484
  %v1486 = vand.u32 %v828, 4294901760
  %1487 = vmatpush1.msra.mxu0 %v1486
  %v1488 = vand.u32 %v823, 4294901760
  %1489 = vmatprep.subr.mxu0 %v1488
  %v1490 = vand.u32 %v822, 4294901760
  %1491 = vmatpush1.msra.mxu0 %v1490
  %v1492 = vand.u32 %v817, 4294901760
  %1493 = vmatprep.subr.mxu0 %v1492
  %v1494 = vand.u32 %v816, 4294901760
  %1495 = vmatpush1.msra.mxu0 %v1494
  %v1496 = vand.u32 %v811, 4294901760
  %1497 = vmatprep.subr.mxu0 %v1496
  %v1498 = vand.u32 %v810, 4294901760
  %1499 = vmatpush1.msra.mxu0 %v1498
  %v1500 = vand.u32 %v805, 4294901760
  %1501 = vmatprep.subr.mxu0 %v1500
  %v1502 = vand.u32 %v804, 4294901760
  %1503 = vmatpush1.msra.mxu0 %v1502
  %v1504 = vand.u32 %v799, 4294901760
  %1505 = vmatprep.subr.mxu0 %v1504
  %v1506 = vand.u32 %v798, 4294901760
  %1507 = vmatpush1.msra.mxu0 %v1506
  %v1508 = vand.u32 %v793, 4294901760
  %1509 = vmatprep.subr.mxu0 %v1508
  %v1510 = vand.u32 %v792, 4294901760
  %1511 = vmatpush1.msra.mxu0 %v1510
  %v1512 = vand.u32 %v787, 4294901760
  %1513 = vmatprep.subr.mxu0 %v1512
  %v1514 = vand.u32 %v786, 4294901760
  %1515 = vmatpush1.msra.mxu0 %v1514
  %1516 = vmatprep.subr.mxu0 0.0
  %1517 = vmatpush2.msra.mxu0 0.0
  %1518 = vmatprep.subr.mxu0 0.0
  %1519 = vmatpush2.msra.mxu0 0.0
  %1520 = vmatprep.subr.mxu0 0.0
  %1521 = vmatpush2.msra.mxu0 0.0
  %1522 = vmatprep.subr.mxu0 0.0
  %1523 = vmatpush2.msra.mxu0 0.0
  %1524 = vmatprep.subr.mxu0 0.0
  %1525 = vmatpush2.msra.mxu0 0.0
  %1526 = vmatprep.subr.mxu0 0.0
  %1527 = vmatpush2.msra.mxu0 0.0
  %1528 = vmatprep.subr.mxu0 0.0
  %1529 = vmatpush2.msra.mxu0 0.0
  %1530 = vmatprep.subr.mxu0 0.0
  %1531 = vmatpush2.msra.mxu0 0.0
  %1532 = vmatprep.subr.mxu0 0.0
  %1533 = vmatpush2.msra.mxu0 0.0
  %1534 = vmatprep.subr.mxu0 0.0
  %1535 = vmatpush2.msra.mxu0 0.0
  %1536 = vmatprep.subr.mxu0 0.0
  %1537 = vmatpush2.msra.mxu0 0.0
  %1538 = vmatprep.subr.mxu0 0.0
  %1539 = vmatpush2.msra.mxu0 0.0
  %1540 = vmatprep.subr.mxu0 0.0
  %1541 = vmatpush2.msra.mxu0 0.0
  %1542 = vmatprep.subr.mxu0 0.0
  %1543 = vmatpush2.msra.mxu0 0.0
  %v1544 = vand.u32 %v889, 4294901760
  %1545 = vmatprep.subr.mxu0 %v1544
  %v1546 = vand.u32 %v888, 4294901760
  %1547 = vmatpush2.msra.mxu0 %v1546
  %v1548 = vand.u32 %v883, 4294901760
  %1549 = vmatprep.subr.mxu0 %v1548
  %v1550 = vand.u32 %v882, 4294901760
  %1551 = vmatpush2.msra.mxu0 %v1550
  %v1552 = vand.u32 %v896, 4294901760
  %v1553 = vsub.f32 %v896, %v1552
  %v1554 = vand.u32 %v1553, 4294901760
  %1555 = vmatprep.mubr.f32.mxu0 %v1554
  %v1556 = vand.u32 %v782, 4294901760
  %v1557 = vsub.f32 %v782, %v1556
  %v1558 = vand.u32 %v1557, 4294901760
  %1559 = vmatmul.mubr.f32.gmra.mxu0 %v1558
  %v1560 = vpop.f32.mrf.mxu0
  %v1561 = vadd.f32 %v1438, %v1560
  %v1562 = vpop.f32.mrf.mxu0
  %v1563 = vadd.f32 %v1440, %v1562
  %v1564 = vand.u32 %v899, 4294901760
  %v1565 = vsub.f32 %v899, %v1564
  %v1566 = vand.u32 %v1565, 4294901760
  %1567 = vmatprep.mubr.f32.mxu0 %v1566
  %v1568 = vand.u32 %v784, 4294901760
  %v1569 = vsub.f32 %v784, %v1568
  %v1570 = vand.u32 %v1569, 4294901760
  %1571 = vmatmul.mubr.f32.gmra.mxu0 %v1570
  %v1572 = vpop.f32.mrf.mxu0
  %v1573 = vadd.f32 %v1448, %v1572
  %v1574 = vpop.f32.mrf.mxu0
  %v1575 = vadd.f32 %v1450, %v1574
  %1576 = vdwg.mxu0
  %v1577 = vand.u32 %v877, 4294901760
  %v1578 = vsub.f32 %v877, %v1577
  %v1579 = vand.u32 %v1578, 4294901760
  %1580 = vmatprep.subr.mxu0 %v1579
  %v1581 = vand.u32 %v876, 4294901760
  %v1582 = vsub.f32 %v876, %v1581
  %v1583 = vand.u32 %v1582, 4294901760
  %1584 = vmatpush1.msra.mxu0 %v1583
  %v1585 = vand.u32 %v871, 4294901760
  %v1586 = vsub.f32 %v871, %v1585
  %v1587 = vand.u32 %v1586, 4294901760
  %1588 = vmatprep.subr.mxu0 %v1587
  %v1589 = vand.u32 %v870, 4294901760
  %v1590 = vsub.f32 %v870, %v1589
  %v1591 = vand.u32 %v1590, 4294901760
  %1592 = vmatpush1.msra.mxu0 %v1591
  %v1593 = vand.u32 %v865, 4294901760
  %v1594 = vsub.f32 %v865, %v1593
  %v1595 = vand.u32 %v1594, 4294901760
  %1596 = vmatprep.subr.mxu0 %v1595
  %v1597 = vand.u32 %v864, 4294901760
  %v1598 = vsub.f32 %v864, %v1597
  %v1599 = vand.u32 %v1598, 4294901760
  %1600 = vmatpush1.msra.mxu0 %v1599
  %v1601 = vand.u32 %v859, 4294901760
  %v1602 = vsub.f32 %v859, %v1601
  %v1603 = vand.u32 %v1602, 4294901760
  %1604 = vmatprep.subr.mxu0 %v1603
  %v1605 = vand.u32 %v858, 4294901760
  %v1606 = vsub.f32 %v858, %v1605
  %v1607 = vand.u32 %v1606, 4294901760
  %1608 = vmatpush1.msra.mxu0 %v1607
  %v1609 = vand.u32 %v853, 4294901760
  %v1610 = vsub.f32 %v853, %v1609
  %v1611 = vand.u32 %v1610, 4294901760
  %1612 = vmatprep.subr.mxu0 %v1611
  %v1613 = vand.u32 %v852, 4294901760
  %v1614 = vsub.f32 %v852, %v1613
  %v1615 = vand.u32 %v1614, 4294901760
  %1616 = vmatpush1.msra.mxu0 %v1615
  %v1617 = vand.u32 %v847, 4294901760
  %v1618 = vsub.f32 %v847, %v1617
  %v1619 = vand.u32 %v1618, 4294901760
  %1620 = vmatprep.subr.mxu0 %v1619
  %v1621 = vand.u32 %v846, 4294901760
  %v1622 = vsub.f32 %v846, %v1621
  %v1623 = vand.u32 %v1622, 4294901760
  %1624 = vmatpush1.msra.mxu0 %v1623
  %v1625 = vand.u32 %v841, 4294901760
  %v1626 = vsub.f32 %v841, %v1625
  %v1627 = vand.u32 %v1626, 4294901760
  %1628 = vmatprep.subr.mxu0 %v1627
  %v1629 = vand.u32 %v840, 4294901760
  %v1630 = vsub.f32 %v840, %v1629
  %v1631 = vand.u32 %v1630, 4294901760
  %1632 = vmatpush1.msra.mxu0 %v1631
  %v1633 = vand.u32 %v835, 4294901760
  %v1634 = vsub.f32 %v835, %v1633
  %v1635 = vand.u32 %v1634, 4294901760
  %1636 = vmatprep.subr.mxu0 %v1635
  %v1637 = vand.u32 %v834, 4294901760
  %v1638 = vsub.f32 %v834, %v1637
  %v1639 = vand.u32 %v1638, 4294901760
  %1640 = vmatpush1.msra.mxu0 %v1639
  %v1641 = vand.u32 %v829, 4294901760
  %v1642 = vsub.f32 %v829, %v1641
  %v1643 = vand.u32 %v1642, 4294901760
  %1644 = vmatprep.subr.mxu0 %v1643
  %v1645 = vand.u32 %v828, 4294901760
  %v1646 = vsub.f32 %v828, %v1645
  %v1647 = vand.u32 %v1646, 4294901760
  %1648 = vmatpush1.msra.mxu0 %v1647
  %v1649 = vand.u32 %v823, 4294901760
  %v1650 = vsub.f32 %v823, %v1649
  %v1651 = vand.u32 %v1650, 4294901760
  %1652 = vmatprep.subr.mxu0 %v1651
  %v1653 = vand.u32 %v822, 4294901760
  %v1654 = vsub.f32 %v822, %v1653
  %v1655 = vand.u32 %v1654, 4294901760
  %1656 = vmatpush1.msra.mxu0 %v1655
  %v1657 = vand.u32 %v817, 4294901760
  %v1658 = vsub.f32 %v817, %v1657
  %v1659 = vand.u32 %v1658, 4294901760
  %1660 = vmatprep.subr.mxu0 %v1659
  %v1661 = vand.u32 %v816, 4294901760
  %v1662 = vsub.f32 %v816, %v1661
  %v1663 = vand.u32 %v1662, 4294901760
  %1664 = vmatpush1.msra.mxu0 %v1663
  %v1665 = vand.u32 %v811, 4294901760
  %v1666 = vsub.f32 %v811, %v1665
  %v1667 = vand.u32 %v1666, 4294901760
  %1668 = vmatprep.subr.mxu0 %v1667
  %v1669 = vand.u32 %v810, 4294901760
  %v1670 = vsub.f32 %v810, %v1669
  %v1671 = vand.u32 %v1670, 4294901760
  %1672 = vmatpush1.msra.mxu0 %v1671
  %v1673 = vand.u32 %v805, 4294901760
  %v1674 = vsub.f32 %v805, %v1673
  %v1675 = vand.u32 %v1674, 4294901760
  %1676 = vmatprep.subr.mxu0 %v1675
  %v1677 = vand.u32 %v804, 4294901760
  %v1678 = vsub.f32 %v804, %v1677
  %v1679 = vand.u32 %v1678, 4294901760
  %1680 = vmatpush1.msra.mxu0 %v1679
  %v1681 = vand.u32 %v799, 4294901760
  %v1682 = vsub.f32 %v799, %v1681
  %v1683 = vand.u32 %v1682, 4294901760
  %1684 = vmatprep.subr.mxu0 %v1683
  %v1685 = vand.u32 %v798, 4294901760
  %v1686 = vsub.f32 %v798, %v1685
  %v1687 = vand.u32 %v1686, 4294901760
  %1688 = vmatpush1.msra.mxu0 %v1687
  %v1689 = vand.u32 %v793, 4294901760
  %v1690 = vsub.f32 %v793, %v1689
  %v1691 = vand.u32 %v1690, 4294901760
  %1692 = vmatprep.subr.mxu0 %v1691
  %v1693 = vand.u32 %v792, 4294901760
  %v1694 = vsub.f32 %v792, %v1693
  %v1695 = vand.u32 %v1694, 4294901760
  %1696 = vmatpush1.msra.mxu0 %v1695
  %v1697 = vand.u32 %v787, 4294901760
  %v1698 = vsub.f32 %v787, %v1697
  %v1699 = vand.u32 %v1698, 4294901760
  %1700 = vmatprep.subr.mxu0 %v1699
  %v1701 = vand.u32 %v786, 4294901760
  %v1702 = vsub.f32 %v786, %v1701
  %v1703 = vand.u32 %v1702, 4294901760
  %1704 = vmatpush1.msra.mxu0 %v1703
  %1705 = vmatprep.subr.mxu0 0.0
  %1706 = vmatpush2.msra.mxu0 0.0
  %1707 = vmatprep.subr.mxu0 0.0
  %1708 = vmatpush2.msra.mxu0 0.0
  %1709 = vmatprep.subr.mxu0 0.0
  %1710 = vmatpush2.msra.mxu0 0.0
  %1711 = vmatprep.subr.mxu0 0.0
  %1712 = vmatpush2.msra.mxu0 0.0
  %1713 = vmatprep.subr.mxu0 0.0
  %1714 = vmatpush2.msra.mxu0 0.0
  %1715 = vmatprep.subr.mxu0 0.0
  %1716 = vmatpush2.msra.mxu0 0.0
  %1717 = vmatprep.subr.mxu0 0.0
  %1718 = vmatpush2.msra.mxu0 0.0
  %1719 = vmatprep.subr.mxu0 0.0
  %1720 = vmatpush2.msra.mxu0 0.0
  %1721 = vmatprep.subr.mxu0 0.0
  %1722 = vmatpush2.msra.mxu0 0.0
  %1723 = vmatprep.subr.mxu0 0.0
  %1724 = vmatpush2.msra.mxu0 0.0
  %1725 = vmatprep.subr.mxu0 0.0
  %1726 = vmatpush2.msra.mxu0 0.0
  %1727 = vmatprep.subr.mxu0 0.0
  %1728 = vmatpush2.msra.mxu0 0.0
  %1729 = vmatprep.subr.mxu0 0.0
  %1730 = vmatpush2.msra.mxu0 0.0
  %1731 = vmatprep.subr.mxu0 0.0
  %1732 = vmatpush2.msra.mxu0 0.0
  %v1733 = vand.u32 %v889, 4294901760
  %v1734 = vsub.f32 %v889, %v1733
  %v1735 = vand.u32 %v1734, 4294901760
  %1736 = vmatprep.subr.mxu0 %v1735
  %v1737 = vand.u32 %v888, 4294901760
  %v1738 = vsub.f32 %v888, %v1737
  %v1739 = vand.u32 %v1738, 4294901760
  %1740 = vmatpush2.msra.mxu0 %v1739
  %v1741 = vand.u32 %v883, 4294901760
  %v1742 = vsub.f32 %v883, %v1741
  %v1743 = vand.u32 %v1742, 4294901760
  %1744 = vmatprep.subr.mxu0 %v1743
  %v1745 = vand.u32 %v882, 4294901760
  %v1746 = vsub.f32 %v882, %v1745
  %v1747 = vand.u32 %v1746, 4294901760
  %1748 = vmatpush2.msra.mxu0 %v1747
  %v1749 = vand.u32 %v896, 4294901760
  %1750 = vmatprep.mubr.f32.mxu0 %v1749
  %v1751 = vand.u32 %v782, 4294901760
  %1752 = vmatmul.mubr.f32.gmra.mxu0 %v1751
  %v1753 = vpop.f32.mrf.mxu0
  %v1754 = vadd.f32 %v1561, %v1753
  %v1755 = vpop.f32.mrf.mxu0
  %v1756 = vadd.f32 %v1563, %v1755
  %v1757 = vand.u32 %v899, 4294901760
  %1758 = vmatprep.mubr.f32.mxu0 %v1757
  %v1759 = vand.u32 %v784, 4294901760
  %1760 = vmatmul.mubr.f32.gmra.mxu0 %v1759
  %v1761 = vpop.f32.mrf.mxu0
  %v1762 = vadd.f32 %v1573, %v1761
  %v1763 = vpop.f32.mrf.mxu0
  %v1764 = vadd.f32 %v1575, %v1763
  %1765 = vdwg.mxu0
  %v1766 = vand.u32 %v877, 4294901760
  %1767 = vmatprep.subr.mxu0 %v1766
  %v1768 = vand.u32 %v876, 4294901760
  %1769 = vmatpush1.msra.mxu0 %v1768
  %v1770 = vand.u32 %v871, 4294901760
  %1771 = vmatprep.subr.mxu0 %v1770
  %v1772 = vand.u32 %v870, 4294901760
  %1773 = vmatpush1.msra.mxu0 %v1772
  %v1774 = vand.u32 %v865, 4294901760
  %1775 = vmatprep.subr.mxu0 %v1774
  %v1776 = vand.u32 %v864, 4294901760
  %1777 = vmatpush1.msra.mxu0 %v1776
  %v1778 = vand.u32 %v859, 4294901760
  %1779 = vmatprep.subr.mxu0 %v1778
  %v1780 = vand.u32 %v858, 4294901760
  %1781 = vmatpush1.msra.mxu0 %v1780
  %v1782 = vand.u32 %v853, 4294901760
  %1783 = vmatprep.subr.mxu0 %v1782
  %v1784 = vand.u32 %v852, 4294901760
  %1785 = vmatpush1.msra.mxu0 %v1784
  %v1786 = vand.u32 %v847, 4294901760
  %1787 = vmatprep.subr.mxu0 %v1786
  %v1788 = vand.u32 %v846, 4294901760
  %1789 = vmatpush1.msra.mxu0 %v1788
  %v1790 = vand.u32 %v841, 4294901760
  %1791 = vmatprep.subr.mxu0 %v1790
  %v1792 = vand.u32 %v840, 4294901760
  %1793 = vmatpush1.msra.mxu0 %v1792
  %v1794 = vand.u32 %v835, 4294901760
  %1795 = vmatprep.subr.mxu0 %v1794
  %v1796 = vand.u32 %v834, 4294901760
  %1797 = vmatpush1.msra.mxu0 %v1796
  %v1798 = vand.u32 %v829, 4294901760
  %1799 = vmatprep.subr.mxu0 %v1798
  %v1800 = vand.u32 %v828, 4294901760
  %1801 = vmatpush1.msra.mxu0 %v1800
  %v1802 = vand.u32 %v823, 4294901760
  %1803 = vmatprep.subr.mxu0 %v1802
  %v1804 = vand.u32 %v822, 4294901760
  %1805 = vmatpush1.msra.mxu0 %v1804
  %v1806 = vand.u32 %v817, 4294901760
  %1807 = vmatprep.subr.mxu0 %v1806
  %v1808 = vand.u32 %v816, 4294901760
  %1809 = vmatpush1.msra.mxu0 %v1808
  %v1810 = vand.u32 %v811, 4294901760
  %1811 = vmatprep.subr.mxu0 %v1810
  %v1812 = vand.u32 %v810, 4294901760
  %1813 = vmatpush1.msra.mxu0 %v1812
  %v1814 = vand.u32 %v805, 4294901760
  %1815 = vmatprep.subr.mxu0 %v1814
  %v1816 = vand.u32 %v804, 4294901760
  %1817 = vmatpush1.msra.mxu0 %v1816
  %v1818 = vand.u32 %v799, 4294901760
  %1819 = vmatprep.subr.mxu0 %v1818
  %v1820 = vand.u32 %v798, 4294901760
  %1821 = vmatpush1.msra.mxu0 %v1820
  %v1822 = vand.u32 %v793, 4294901760
  %1823 = vmatprep.subr.mxu0 %v1822
  %v1824 = vand.u32 %v792, 4294901760
  %1825 = vmatpush1.msra.mxu0 %v1824
  %v1826 = vand.u32 %v787, 4294901760
  %1827 = vmatprep.subr.mxu0 %v1826
  %v1828 = vand.u32 %v786, 4294901760
  %1829 = vmatpush1.msra.mxu0 %v1828
  %1830 = vmatprep.subr.mxu0 0.0
  %1831 = vmatpush2.msra.mxu0 0.0
  %1832 = vmatprep.subr.mxu0 0.0
  %1833 = vmatpush2.msra.mxu0 0.0
  %1834 = vmatprep.subr.mxu0 0.0
  %1835 = vmatpush2.msra.mxu0 0.0
  %1836 = vmatprep.subr.mxu0 0.0
  %1837 = vmatpush2.msra.mxu0 0.0
  %1838 = vmatprep.subr.mxu0 0.0
  %1839 = vmatpush2.msra.mxu0 0.0
  %1840 = vmatprep.subr.mxu0 0.0
  %1841 = vmatpush2.msra.mxu0 0.0
  %1842 = vmatprep.subr.mxu0 0.0
  %1843 = vmatpush2.msra.mxu0 0.0
  %1844 = vmatprep.subr.mxu0 0.0
  %1845 = vmatpush2.msra.mxu0 0.0
  %1846 = vmatprep.subr.mxu0 0.0
  %1847 = vmatpush2.msra.mxu0 0.0
  %1848 = vmatprep.subr.mxu0 0.0
  %1849 = vmatpush2.msra.mxu0 0.0
  %1850 = vmatprep.subr.mxu0 0.0
  %1851 = vmatpush2.msra.mxu0 0.0
  %1852 = vmatprep.subr.mxu0 0.0
  %1853 = vmatpush2.msra.mxu0 0.0
  %1854 = vmatprep.subr.mxu0 0.0
  %1855 = vmatpush2.msra.mxu0 0.0
  %1856 = vmatprep.subr.mxu0 0.0
  %1857 = vmatpush2.msra.mxu0 0.0
  %v1858 = vand.u32 %v889, 4294901760
  %1859 = vmatprep.subr.mxu0 %v1858
  %v1860 = vand.u32 %v888, 4294901760
  %1861 = vmatpush2.msra.mxu0 %v1860
  %v1862 = vand.u32 %v883, 4294901760
  %1863 = vmatprep.subr.mxu0 %v1862
  %v1864 = vand.u32 %v882, 4294901760
  %1865 = vmatpush2.msra.mxu0 %v1864
  %v1866 = vand.u32 %v896, 4294901760
  %1867 = vmatprep.mubr.f32.mxu0 %v1866
  %v1868 = vand.u32 %v782, 4294901760
  %1869 = vmatmul.mubr.f32.gmra.mxu0 %v1868
  %v1870 = vpop.f32.mrf.mxu0
  %v1871 = vadd.f32 %v1754, %v1870
  %v1872 = vpop.f32.mrf.mxu0
  %v1873 = vadd.f32 %v1756, %v1872
  %v1874 = vand.u32 %v899, 4294901760
  %1875 = vmatprep.mubr.f32.mxu0 %v1874
  %v1876 = vand.u32 %v784, 4294901760
  %1877 = vmatmul.mubr.f32.gmra.mxu0 %v1876
  %v1878 = vpop.f32.mrf.mxu0
  %v1879 = vadd.f32 %v1762, %v1878
  %v1880 = vpop.f32.mrf.mxu0
  %v1881 = vadd.f32 %v1764, %v1880
  %1882 = vdwg.mxu0
  %v1883 = vand.u32 %v879, 4294901760
  %1884 = vmatprep.subr.mxu0 %v1883
  %v1885 = vand.u32 %v878, 4294901760
  %1886 = vmatpush1.msra.mxu0 %v1885
  %v1887 = vand.u32 %v873, 4294901760
  %1888 = vmatprep.subr.mxu0 %v1887
  %v1889 = vand.u32 %v872, 4294901760
  %1890 = vmatpush1.msra.mxu0 %v1889
  %v1891 = vand.u32 %v867, 4294901760
  %1892 = vmatprep.subr.mxu0 %v1891
  %v1893 = vand.u32 %v866, 4294901760
  %1894 = vmatpush1.msra.mxu0 %v1893
  %v1895 = vand.u32 %v861, 4294901760
  %1896 = vmatprep.subr.mxu0 %v1895
  %v1897 = vand.u32 %v860, 4294901760
  %1898 = vmatpush1.msra.mxu0 %v1897
  %v1899 = vand.u32 %v855, 4294901760
  %1900 = vmatprep.subr.mxu0 %v1899
  %v1901 = vand.u32 %v854, 4294901760
  %1902 = vmatpush1.msra.mxu0 %v1901
  %v1903 = vand.u32 %v849, 4294901760
  %1904 = vmatprep.subr.mxu0 %v1903
  %v1905 = vand.u32 %v848, 4294901760
  %1906 = vmatpush1.msra.mxu0 %v1905
  %v1907 = vand.u32 %v843, 4294901760
  %1908 = vmatprep.subr.mxu0 %v1907
  %v1909 = vand.u32 %v842, 4294901760
  %1910 = vmatpush1.msra.mxu0 %v1909
  %v1911 = vand.u32 %v837, 4294901760
  %1912 = vmatprep.subr.mxu0 %v1911
  %v1913 = vand.u32 %v836, 4294901760
  %1914 = vmatpush1.msra.mxu0 %v1913
  %v1915 = vand.u32 %v831, 4294901760
  %1916 = vmatprep.subr.mxu0 %v1915
  %v1917 = vand.u32 %v830, 4294901760
  %1918 = vmatpush1.msra.mxu0 %v1917
  %v1919 = vand.u32 %v825, 4294901760
  %1920 = vmatprep.subr.mxu0 %v1919
  %v1921 = vand.u32 %v824, 4294901760
  %1922 = vmatpush1.msra.mxu0 %v1921
  %v1923 = vand.u32 %v819, 4294901760
  %1924 = vmatprep.subr.mxu0 %v1923
  %v1925 = vand.u32 %v818, 4294901760
  %1926 = vmatpush1.msra.mxu0 %v1925
  %v1927 = vand.u32 %v813, 4294901760
  %1928 = vmatprep.subr.mxu0 %v1927
  %v1929 = vand.u32 %v812, 4294901760
  %1930 = vmatpush1.msra.mxu0 %v1929
  %v1931 = vand.u32 %v807, 4294901760
  %1932 = vmatprep.subr.mxu0 %v1931
  %v1933 = vand.u32 %v806, 4294901760
  %1934 = vmatpush1.msra.mxu0 %v1933
  %v1935 = vand.u32 %v801, 4294901760
  %1936 = vmatprep.subr.mxu0 %v1935
  %v1937 = vand.u32 %v800, 4294901760
  %1938 = vmatpush1.msra.mxu0 %v1937
  %v1939 = vand.u32 %v795, 4294901760
  %1940 = vmatprep.subr.mxu0 %v1939
  %v1941 = vand.u32 %v794, 4294901760
  %1942 = vmatpush1.msra.mxu0 %v1941
  %v1943 = vand.u32 %v789, 4294901760
  %1944 = vmatprep.subr.mxu0 %v1943
  %v1945 = vand.u32 %v788, 4294901760
  %1946 = vmatpush1.msra.mxu0 %v1945
  %1947 = vmatprep.subr.mxu0 0.0
  %1948 = vmatpush2.msra.mxu0 0.0
  %1949 = vmatprep.subr.mxu0 0.0
  %1950 = vmatpush2.msra.mxu0 0.0
  %1951 = vmatprep.subr.mxu0 0.0
  %1952 = vmatpush2.msra.mxu0 0.0
  %1953 = vmatprep.subr.mxu0 0.0
  %1954 = vmatpush2.msra.mxu0 0.0
  %1955 = vmatprep.subr.mxu0 0.0
  %1956 = vmatpush2.msra.mxu0 0.0
  %1957 = vmatprep.subr.mxu0 0.0
  %1958 = vmatpush2.msra.mxu0 0.0
  %1959 = vmatprep.subr.mxu0 0.0
  %1960 = vmatpush2.msra.mxu0 0.0
  %1961 = vmatprep.subr.mxu0 0.0
  %1962 = vmatpush2.msra.mxu0 0.0
  %1963 = vmatprep.subr.mxu0 0.0
  %1964 = vmatpush2.msra.mxu0 0.0
  %1965 = vmatprep.subr.mxu0 0.0
  %1966 = vmatpush2.msra.mxu0 0.0
  %1967 = vmatprep.subr.mxu0 0.0
  %1968 = vmatpush2.msra.mxu0 0.0
  %1969 = vmatprep.subr.mxu0 0.0
  %1970 = vmatpush2.msra.mxu0 0.0
  %1971 = vmatprep.subr.mxu0 0.0
  %1972 = vmatpush2.msra.mxu0 0.0
  %1973 = vmatprep.subr.mxu0 0.0
  %1974 = vmatpush2.msra.mxu0 0.0
  %v1975 = vand.u32 %v891, 4294901760
  %1976 = vmatprep.subr.mxu0 %v1975
  %v1977 = vand.u32 %v890, 4294901760
  %1978 = vmatpush2.msra.mxu0 %v1977
  %v1979 = vand.u32 %v885, 4294901760
  %1980 = vmatprep.subr.mxu0 %v1979
  %v1981 = vand.u32 %v884, 4294901760
  %1982 = vmatpush2.msra.mxu0 %v1981
  %v1983 = vand.u32 %v896, 4294901760
  %v1984 = vsub.f32 %v896, %v1983
  %v1985 = vand.u32 %v1984, 4294901760
  %v1986 = vsub.f32 %v1984, %v1985
  %v1987 = vand.u32 %v1986, 4294901760
  %1988 = vmatprep.mubr.f32.mxu0 %v1987
  %v1989 = vand.u32 %v782, 4294901760
  %v1990 = vsub.f32 %v782, %v1989
  %v1991 = vand.u32 %v1990, 4294901760
  %v1992 = vsub.f32 %v1990, %v1991
  %v1993 = vand.u32 %v1992, 4294901760
  %1994 = vmatmul.mubr.f32.gmra.mxu0 %v1993
  %v1995 = vpop.f32.mrf.mxu0
  %v1996 = vadd.f32 0.0, %v1995
  %v1997 = vpop.f32.mrf.mxu0
  %v1998 = vadd.f32 0.0, %v1997
  %v1999 = vand.u32 %v899, 4294901760
  %v2000 = vsub.f32 %v899, %v1999
  %v2001 = vand.u32 %v2000, 4294901760
  %v2002 = vsub.f32 %v2000, %v2001
  %v2003 = vand.u32 %v2002, 4294901760
  %2004 = vmatprep.mubr.f32.mxu0 %v2003
  %v2005 = vand.u32 %v784, 4294901760
  %v2006 = vsub.f32 %v784, %v2005
  %v2007 = vand.u32 %v2006, 4294901760
  %v2008 = vsub.f32 %v2006, %v2007
  %v2009 = vand.u32 %v2008, 4294901760
  %2010 = vmatmul.mubr.f32.gmra.mxu0 %v2009
  %v2011 = vpop.f32.mrf.mxu0
  %v2012 = vadd.f32 0.0, %v2011
  %v2013 = vpop.f32.mrf.mxu0
  %v2014 = vadd.f32 0.0, %v2013
  %2015 = vdwg.mxu0
  %v2016 = vand.u32 %v879, 4294901760
  %v2017 = vsub.f32 %v879, %v2016
  %v2018 = vand.u32 %v2017, 4294901760
  %v2019 = vsub.f32 %v2017, %v2018
  %v2020 = vand.u32 %v2019, 4294901760
  %2021 = vmatprep.subr.mxu0 %v2020
  %v2022 = vand.u32 %v878, 4294901760
  %v2023 = vsub.f32 %v878, %v2022
  %v2024 = vand.u32 %v2023, 4294901760
  %v2025 = vsub.f32 %v2023, %v2024
  %v2026 = vand.u32 %v2025, 4294901760
  %2027 = vmatpush1.msra.mxu0 %v2026
  %v2028 = vand.u32 %v873, 4294901760
  %v2029 = vsub.f32 %v873, %v2028
  %v2030 = vand.u32 %v2029, 4294901760
  %v2031 = vsub.f32 %v2029, %v2030
  %v2032 = vand.u32 %v2031, 4294901760
  %2033 = vmatprep.subr.mxu0 %v2032
  %v2034 = vand.u32 %v872, 4294901760
  %v2035 = vsub.f32 %v872, %v2034
  %v2036 = vand.u32 %v2035, 4294901760
  %v2037 = vsub.f32 %v2035, %v2036
  %v2038 = vand.u32 %v2037, 4294901760
  %2039 = vmatpush1.msra.mxu0 %v2038
  %v2040 = vand.u32 %v867, 4294901760
  %v2041 = vsub.f32 %v867, %v2040
  %v2042 = vand.u32 %v2041, 4294901760
  %v2043 = vsub.f32 %v2041, %v2042
  %v2044 = vand.u32 %v2043, 4294901760
  %2045 = vmatprep.subr.mxu0 %v2044
  %v2046 = vand.u32 %v866, 4294901760
  %v2047 = vsub.f32 %v866, %v2046
  %v2048 = vand.u32 %v2047, 4294901760
  %v2049 = vsub.f32 %v2047, %v2048
  %v2050 = vand.u32 %v2049, 4294901760
  %2051 = vmatpush1.msra.mxu0 %v2050
  %v2052 = vand.u32 %v861, 4294901760
  %v2053 = vsub.f32 %v861, %v2052
  %v2054 = vand.u32 %v2053, 4294901760
  %v2055 = vsub.f32 %v2053, %v2054
  %v2056 = vand.u32 %v2055, 4294901760
  %2057 = vmatprep.subr.mxu0 %v2056
  %v2058 = vand.u32 %v860, 4294901760
  %v2059 = vsub.f32 %v860, %v2058
  %v2060 = vand.u32 %v2059, 4294901760
  %v2061 = vsub.f32 %v2059, %v2060
  %v2062 = vand.u32 %v2061, 4294901760
  %2063 = vmatpush1.msra.mxu0 %v2062
  %v2064 = vand.u32 %v855, 4294901760
  %v2065 = vsub.f32 %v855, %v2064
  %v2066 = vand.u32 %v2065, 4294901760
  %v2067 = vsub.f32 %v2065, %v2066
  %v2068 = vand.u32 %v2067, 4294901760
  %2069 = vmatprep.subr.mxu0 %v2068
  %v2070 = vand.u32 %v854, 4294901760
  %v2071 = vsub.f32 %v854, %v2070
  %v2072 = vand.u32 %v2071, 4294901760
  %v2073 = vsub.f32 %v2071, %v2072
  %v2074 = vand.u32 %v2073, 4294901760
  %2075 = vmatpush1.msra.mxu0 %v2074
  %v2076 = vand.u32 %v849, 4294901760
  %v2077 = vsub.f32 %v849, %v2076
  %v2078 = vand.u32 %v2077, 4294901760
  %v2079 = vsub.f32 %v2077, %v2078
  %v2080 = vand.u32 %v2079, 4294901760
  %2081 = vmatprep.subr.mxu0 %v2080
  %v2082 = vand.u32 %v848, 4294901760
  %v2083 = vsub.f32 %v848, %v2082
  %v2084 = vand.u32 %v2083, 4294901760
  %v2085 = vsub.f32 %v2083, %v2084
  %v2086 = vand.u32 %v2085, 4294901760
  %2087 = vmatpush1.msra.mxu0 %v2086
  %v2088 = vand.u32 %v843, 4294901760
  %v2089 = vsub.f32 %v843, %v2088
  %v2090 = vand.u32 %v2089, 4294901760
  %v2091 = vsub.f32 %v2089, %v2090
  %v2092 = vand.u32 %v2091, 4294901760
  %2093 = vmatprep.subr.mxu0 %v2092
  %v2094 = vand.u32 %v842, 4294901760
  %v2095 = vsub.f32 %v842, %v2094
  %v2096 = vand.u32 %v2095, 4294901760
  %v2097 = vsub.f32 %v2095, %v2096
  %v2098 = vand.u32 %v2097, 4294901760
  %2099 = vmatpush1.msra.mxu0 %v2098
  %v2100 = vand.u32 %v837, 4294901760
  %v2101 = vsub.f32 %v837, %v2100
  %v2102 = vand.u32 %v2101, 4294901760
  %v2103 = vsub.f32 %v2101, %v2102
  %v2104 = vand.u32 %v2103, 4294901760
  %2105 = vmatprep.subr.mxu0 %v2104
  %v2106 = vand.u32 %v836, 4294901760
  %v2107 = vsub.f32 %v836, %v2106
  %v2108 = vand.u32 %v2107, 4294901760
  %v2109 = vsub.f32 %v2107, %v2108
  %v2110 = vand.u32 %v2109, 4294901760
  %2111 = vmatpush1.msra.mxu0 %v2110
  %v2112 = vand.u32 %v831, 4294901760
  %v2113 = vsub.f32 %v831, %v2112
  %v2114 = vand.u32 %v2113, 4294901760
  %v2115 = vsub.f32 %v2113, %v2114
  %v2116 = vand.u32 %v2115, 4294901760
  %2117 = vmatprep.subr.mxu0 %v2116
  %v2118 = vand.u32 %v830, 4294901760
  %v2119 = vsub.f32 %v830, %v2118
  %v2120 = vand.u32 %v2119, 4294901760
  %v2121 = vsub.f32 %v2119, %v2120
  %v2122 = vand.u32 %v2121, 4294901760
  %2123 = vmatpush1.msra.mxu0 %v2122
  %v2124 = vand.u32 %v825, 4294901760
  %v2125 = vsub.f32 %v825, %v2124
  %v2126 = vand.u32 %v2125, 4294901760
  %v2127 = vsub.f32 %v2125, %v2126
  %v2128 = vand.u32 %v2127, 4294901760
  %2129 = vmatprep.subr.mxu0 %v2128
  %v2130 = vand.u32 %v824, 4294901760
  %v2131 = vsub.f32 %v824, %v2130
  %v2132 = vand.u32 %v2131, 4294901760
  %v2133 = vsub.f32 %v2131, %v2132
  %v2134 = vand.u32 %v2133, 4294901760
  %2135 = vmatpush1.msra.mxu0 %v2134
  %v2136 = vand.u32 %v819, 4294901760
  %v2137 = vsub.f32 %v819, %v2136
  %v2138 = vand.u32 %v2137, 4294901760
  %v2139 = vsub.f32 %v2137, %v2138
  %v2140 = vand.u32 %v2139, 4294901760
  %2141 = vmatprep.subr.mxu0 %v2140
  %v2142 = vand.u32 %v818, 4294901760
  %v2143 = vsub.f32 %v818, %v2142
  %v2144 = vand.u32 %v2143, 4294901760
  %v2145 = vsub.f32 %v2143, %v2144
  %v2146 = vand.u32 %v2145, 4294901760
  %2147 = vmatpush1.msra.mxu0 %v2146
  %v2148 = vand.u32 %v813, 4294901760
  %v2149 = vsub.f32 %v813, %v2148
  %v2150 = vand.u32 %v2149, 4294901760
  %v2151 = vsub.f32 %v2149, %v2150
  %v2152 = vand.u32 %v2151, 4294901760
  %2153 = vmatprep.subr.mxu0 %v2152
  %v2154 = vand.u32 %v812, 4294901760
  %v2155 = vsub.f32 %v812, %v2154
  %v2156 = vand.u32 %v2155, 4294901760
  %v2157 = vsub.f32 %v2155, %v2156
  %v2158 = vand.u32 %v2157, 4294901760
  %2159 = vmatpush1.msra.mxu0 %v2158
  %v2160 = vand.u32 %v807, 4294901760
  %v2161 = vsub.f32 %v807, %v2160
  %v2162 = vand.u32 %v2161, 4294901760
  %v2163 = vsub.f32 %v2161, %v2162
  %v2164 = vand.u32 %v2163, 4294901760
  %2165 = vmatprep.subr.mxu0 %v2164
  %v2166 = vand.u32 %v806, 4294901760
  %v2167 = vsub.f32 %v806, %v2166
  %v2168 = vand.u32 %v2167, 4294901760
  %v2169 = vsub.f32 %v2167, %v2168
  %v2170 = vand.u32 %v2169, 4294901760
  %2171 = vmatpush1.msra.mxu0 %v2170
  %v2172 = vand.u32 %v801, 4294901760
  %v2173 = vsub.f32 %v801, %v2172
  %v2174 = vand.u32 %v2173, 4294901760
  %v2175 = vsub.f32 %v2173, %v2174
  %v2176 = vand.u32 %v2175, 4294901760
  %2177 = vmatprep.subr.mxu0 %v2176
  %v2178 = vand.u32 %v800, 4294901760
  %v2179 = vsub.f32 %v800, %v2178
  %v2180 = vand.u32 %v2179, 4294901760
  %v2181 = vsub.f32 %v2179, %v2180
  %v2182 = vand.u32 %v2181, 4294901760
  %2183 = vmatpush1.msra.mxu0 %v2182
  %v2184 = vand.u32 %v795, 4294901760
  %v2185 = vsub.f32 %v795, %v2184
  %v2186 = vand.u32 %v2185, 4294901760
  %v2187 = vsub.f32 %v2185, %v2186
  %v2188 = vand.u32 %v2187, 4294901760
  %2189 = vmatprep.subr.mxu0 %v2188
  %v2190 = vand.u32 %v794, 4294901760
  %v2191 = vsub.f32 %v794, %v2190
  %v2192 = vand.u32 %v2191, 4294901760
  %v2193 = vsub.f32 %v2191, %v2192
  %v2194 = vand.u32 %v2193, 4294901760
  %2195 = vmatpush1.msra.mxu0 %v2194
  %v2196 = vand.u32 %v789, 4294901760
  %v2197 = vsub.f32 %v789, %v2196
  %v2198 = vand.u32 %v2197, 4294901760
  %v2199 = vsub.f32 %v2197, %v2198
  %v2200 = vand.u32 %v2199, 4294901760
  %2201 = vmatprep.subr.mxu0 %v2200
  %v2202 = vand.u32 %v788, 4294901760
  %v2203 = vsub.f32 %v788, %v2202
  %v2204 = vand.u32 %v2203, 4294901760
  %v2205 = vsub.f32 %v2203, %v2204
  %v2206 = vand.u32 %v2205, 4294901760
  %2207 = vmatpush1.msra.mxu0 %v2206
  %2208 = vmatprep.subr.mxu0 0.0
  %2209 = vmatpush2.msra.mxu0 0.0
  %2210 = vmatprep.subr.mxu0 0.0
  %2211 = vmatpush2.msra.mxu0 0.0
  %2212 = vmatprep.subr.mxu0 0.0
  %2213 = vmatpush2.msra.mxu0 0.0
  %2214 = vmatprep.subr.mxu0 0.0
  %2215 = vmatpush2.msra.mxu0 0.0
  %2216 = vmatprep.subr.mxu0 0.0
  %2217 = vmatpush2.msra.mxu0 0.0
  %2218 = vmatprep.subr.mxu0 0.0
  %2219 = vmatpush2.msra.mxu0 0.0
  %2220 = vmatprep.subr.mxu0 0.0
  %2221 = vmatpush2.msra.mxu0 0.0
  %2222 = vmatprep.subr.mxu0 0.0
  %2223 = vmatpush2.msra.mxu0 0.0
  %2224 = vmatprep.subr.mxu0 0.0
  %2225 = vmatpush2.msra.mxu0 0.0
  %2226 = vmatprep.subr.mxu0 0.0
  %2227 = vmatpush2.msra.mxu0 0.0
  %2228 = vmatprep.subr.mxu0 0.0
  %2229 = vmatpush2.msra.mxu0 0.0
  %2230 = vmatprep.subr.mxu0 0.0
  %2231 = vmatpush2.msra.mxu0 0.0
  %2232 = vmatprep.subr.mxu0 0.0
  %2233 = vmatpush2.msra.mxu0 0.0
  %2234 = vmatprep.subr.mxu0 0.0
  %2235 = vmatpush2.msra.mxu0 0.0
  %v2236 = vand.u32 %v891, 4294901760
  %v2237 = vsub.f32 %v891, %v2236
  %v2238 = vand.u32 %v2237, 4294901760
  %v2239 = vsub.f32 %v2237, %v2238
  %v2240 = vand.u32 %v2239, 4294901760
  %2241 = vmatprep.subr.mxu0 %v2240
  %v2242 = vand.u32 %v890, 4294901760
  %v2243 = vsub.f32 %v890, %v2242
  %v2244 = vand.u32 %v2243, 4294901760
  %v2245 = vsub.f32 %v2243, %v2244
  %v2246 = vand.u32 %v2245, 4294901760
  %2247 = vmatpush2.msra.mxu0 %v2246
  %v2248 = vand.u32 %v885, 4294901760
  %v2249 = vsub.f32 %v885, %v2248
  %v2250 = vand.u32 %v2249, 4294901760
  %v2251 = vsub.f32 %v2249, %v2250
  %v2252 = vand.u32 %v2251, 4294901760
  %2253 = vmatprep.subr.mxu0 %v2252
  %v2254 = vand.u32 %v884, 4294901760
  %v2255 = vsub.f32 %v884, %v2254
  %v2256 = vand.u32 %v2255, 4294901760
  %v2257 = vsub.f32 %v2255, %v2256
  %v2258 = vand.u32 %v2257, 4294901760
  %2259 = vmatpush2.msra.mxu0 %v2258
  %v2260 = vand.u32 %v896, 4294901760
  %2261 = vmatprep.mubr.f32.mxu0 %v2260
  %v2262 = vand.u32 %v782, 4294901760
  %2263 = vmatmul.mubr.f32.gmra.mxu0 %v2262
  %v2264 = vpop.f32.mrf.mxu0
  %v2265 = vadd.f32 %v1996, %v2264
  %v2266 = vpop.f32.mrf.mxu0
  %v2267 = vadd.f32 %v1998, %v2266
  %v2268 = vand.u32 %v899, 4294901760
  %2269 = vmatprep.mubr.f32.mxu0 %v2268
  %v2270 = vand.u32 %v784, 4294901760
  %2271 = vmatmul.mubr.f32.gmra.mxu0 %v2270
  %v2272 = vpop.f32.mrf.mxu0
  %v2273 = vadd.f32 %v2012, %v2272
  %v2274 = vpop.f32.mrf.mxu0
  %v2275 = vadd.f32 %v2014, %v2274
  %2276 = vdwg.mxu0
  %v2277 = vand.u32 %v879, 4294901760
  %v2278 = vsub.f32 %v879, %v2277
  %2279 = vmatprep.subr.mxu0 %v2278
  %v2280 = vand.u32 %v878, 4294901760
  %v2281 = vsub.f32 %v878, %v2280
  %2282 = vmatpush1.msra.mxu0 %v2281
  %v2283 = vand.u32 %v873, 4294901760
  %v2284 = vsub.f32 %v873, %v2283
  %2285 = vmatprep.subr.mxu0 %v2284
  %v2286 = vand.u32 %v872, 4294901760
  %v2287 = vsub.f32 %v872, %v2286
  %2288 = vmatpush1.msra.mxu0 %v2287
  %v2289 = vand.u32 %v867, 4294901760
  %v2290 = vsub.f32 %v867, %v2289
  %2291 = vmatprep.subr.mxu0 %v2290
  %v2292 = vand.u32 %v866, 4294901760
  %v2293 = vsub.f32 %v866, %v2292
  %2294 = vmatpush1.msra.mxu0 %v2293
  %v2295 = vand.u32 %v861, 4294901760
  %v2296 = vsub.f32 %v861, %v2295
  %2297 = vmatprep.subr.mxu0 %v2296
  %v2298 = vand.u32 %v860, 4294901760
  %v2299 = vsub.f32 %v860, %v2298
  %2300 = vmatpush1.msra.mxu0 %v2299
  %v2301 = vand.u32 %v855, 4294901760
  %v2302 = vsub.f32 %v855, %v2301
  %2303 = vmatprep.subr.mxu0 %v2302
  %v2304 = vand.u32 %v854, 4294901760
  %v2305 = vsub.f32 %v854, %v2304
  %2306 = vmatpush1.msra.mxu0 %v2305
  %v2307 = vand.u32 %v849, 4294901760
  %v2308 = vsub.f32 %v849, %v2307
  %2309 = vmatprep.subr.mxu0 %v2308
  %v2310 = vand.u32 %v848, 4294901760
  %v2311 = vsub.f32 %v848, %v2310
  %2312 = vmatpush1.msra.mxu0 %v2311
  %v2313 = vand.u32 %v843, 4294901760
  %v2314 = vsub.f32 %v843, %v2313
  %2315 = vmatprep.subr.mxu0 %v2314
  %v2316 = vand.u32 %v842, 4294901760
  %v2317 = vsub.f32 %v842, %v2316
  %2318 = vmatpush1.msra.mxu0 %v2317
  %v2319 = vand.u32 %v837, 4294901760
  %v2320 = vsub.f32 %v837, %v2319
  %2321 = vmatprep.subr.mxu0 %v2320
  %v2322 = vand.u32 %v836, 4294901760
  %v2323 = vsub.f32 %v836, %v2322
  %2324 = vmatpush1.msra.mxu0 %v2323
  %v2325 = vand.u32 %v831, 4294901760
  %v2326 = vsub.f32 %v831, %v2325
  %2327 = vmatprep.subr.mxu0 %v2326
  %v2328 = vand.u32 %v830, 4294901760
  %v2329 = vsub.f32 %v830, %v2328
  %2330 = vmatpush1.msra.mxu0 %v2329
  %v2331 = vand.u32 %v825, 4294901760
  %v2332 = vsub.f32 %v825, %v2331
  %2333 = vmatprep.subr.mxu0 %v2332
  %v2334 = vand.u32 %v824, 4294901760
  %v2335 = vsub.f32 %v824, %v2334
  %2336 = vmatpush1.msra.mxu0 %v2335
  %v2337 = vand.u32 %v819, 4294901760
  %v2338 = vsub.f32 %v819, %v2337
  %2339 = vmatprep.subr.mxu0 %v2338
  %v2340 = vand.u32 %v818, 4294901760
  %v2341 = vsub.f32 %v818, %v2340
  %2342 = vmatpush1.msra.mxu0 %v2341
  %v2343 = vand.u32 %v813, 4294901760
  %v2344 = vsub.f32 %v813, %v2343
  %2345 = vmatprep.subr.mxu0 %v2344
  %v2346 = vand.u32 %v812, 4294901760
  %v2347 = vsub.f32 %v812, %v2346
  %2348 = vmatpush1.msra.mxu0 %v2347
  %v2349 = vand.u32 %v807, 4294901760
  %v2350 = vsub.f32 %v807, %v2349
  %2351 = vmatprep.subr.mxu0 %v2350
  %v2352 = vand.u32 %v806, 4294901760
  %v2353 = vsub.f32 %v806, %v2352
  %2354 = vmatpush1.msra.mxu0 %v2353
  %v2355 = vand.u32 %v801, 4294901760
  %v2356 = vsub.f32 %v801, %v2355
  %2357 = vmatprep.subr.mxu0 %v2356
  %v2358 = vand.u32 %v800, 4294901760
  %v2359 = vsub.f32 %v800, %v2358
  %2360 = vmatpush1.msra.mxu0 %v2359
  %v2361 = vand.u32 %v795, 4294901760
  %v2362 = vsub.f32 %v795, %v2361
  %2363 = vmatprep.subr.mxu0 %v2362
  %v2364 = vand.u32 %v794, 4294901760
  %v2365 = vsub.f32 %v794, %v2364
  %2366 = vmatpush1.msra.mxu0 %v2365
  %v2367 = vand.u32 %v789, 4294901760
  %v2368 = vsub.f32 %v789, %v2367
  %2369 = vmatprep.subr.mxu0 %v2368
  %v2370 = vand.u32 %v788, 4294901760
  %v2371 = vsub.f32 %v788, %v2370
  %2372 = vmatpush1.msra.mxu0 %v2371
  %2373 = vmatprep.subr.mxu0 0.0
  %2374 = vmatpush2.msra.mxu0 0.0
  %2375 = vmatprep.subr.mxu0 0.0
  %2376 = vmatpush2.msra.mxu0 0.0
  %2377 = vmatprep.subr.mxu0 0.0
  %2378 = vmatpush2.msra.mxu0 0.0
  %2379 = vmatprep.subr.mxu0 0.0
  %2380 = vmatpush2.msra.mxu0 0.0
  %2381 = vmatprep.subr.mxu0 0.0
  %2382 = vmatpush2.msra.mxu0 0.0
  %2383 = vmatprep.subr.mxu0 0.0
  %2384 = vmatpush2.msra.mxu0 0.0
  %2385 = vmatprep.subr.mxu0 0.0
  %2386 = vmatpush2.msra.mxu0 0.0
  %2387 = vmatprep.subr.mxu0 0.0
  %2388 = vmatpush2.msra.mxu0 0.0
  %2389 = vmatprep.subr.mxu0 0.0
  %2390 = vmatpush2.msra.mxu0 0.0
  %2391 = vmatprep.subr.mxu0 0.0
  %2392 = vmatpush2.msra.mxu0 0.0
  %2393 = vmatprep.subr.mxu0 0.0
  %2394 = vmatpush2.msra.mxu0 0.0
  %2395 = vmatprep.subr.mxu0 0.0
  %2396 = vmatpush2.msra.mxu0 0.0
  %2397 = vmatprep.subr.mxu0 0.0
  %2398 = vmatpush2.msra.mxu0 0.0
  %2399 = vmatprep.subr.mxu0 0.0
  %2400 = vmatpush2.msra.mxu0 0.0
  %v2401 = vand.u32 %v891, 4294901760
  %v2402 = vsub.f32 %v891, %v2401
  %2403 = vmatprep.subr.mxu0 %v2402
  %v2404 = vand.u32 %v890, 4294901760
  %v2405 = vsub.f32 %v890, %v2404
  %2406 = vmatpush2.msra.mxu0 %v2405
  %v2407 = vand.u32 %v885, 4294901760
  %v2408 = vsub.f32 %v885, %v2407
  %2409 = vmatprep.subr.mxu0 %v2408
  %v2410 = vand.u32 %v884, 4294901760
  %v2411 = vsub.f32 %v884, %v2410
  %2412 = vmatpush2.msra.mxu0 %v2411
  %v2413 = vand.u32 %v896, 4294901760
  %v2414 = vsub.f32 %v896, %v2413
  %2415 = vmatprep.mubr.f32.mxu0 %v2414
  %v2416 = vand.u32 %v782, 4294901760
  %v2417 = vsub.f32 %v782, %v2416
  %2418 = vmatmul.mubr.f32.gmra.mxu0 %v2417
  %v2419 = vpop.f32.mrf.mxu0
  %v2420 = vadd.f32 %v2265, %v2419
  %v2421 = vpop.f32.mrf.mxu0
  %v2422 = vadd.f32 %v2267, %v2421
  %v2423 = vand.u32 %v899, 4294901760
  %v2424 = vsub.f32 %v899, %v2423
  %2425 = vmatprep.mubr.f32.mxu0 %v2424
  %v2426 = vand.u32 %v784, 4294901760
  %v2427 = vsub.f32 %v784, %v2426
  %2428 = vmatmul.mubr.f32.gmra.mxu0 %v2427
  %v2429 = vpop.f32.mrf.mxu0
  %v2430 = vadd.f32 %v2273, %v2429
  %v2431 = vpop.f32.mrf.mxu0
  %v2432 = vadd.f32 %v2275, %v2431
  %2433 = vdwg.mxu0
  %v2434 = vand.u32 %v879, 4294901760
  %2435 = vmatprep.subr.mxu0 %v2434
  %v2436 = vand.u32 %v878, 4294901760
  %2437 = vmatpush1.msra.mxu0 %v2436
  %v2438 = vand.u32 %v873, 4294901760
  %2439 = vmatprep.subr.mxu0 %v2438
  %v2440 = vand.u32 %v872, 4294901760
  %2441 = vmatpush1.msra.mxu0 %v2440
  %v2442 = vand.u32 %v867, 4294901760
  %2443 = vmatprep.subr.mxu0 %v2442
  %v2444 = vand.u32 %v866, 4294901760
  %2445 = vmatpush1.msra.mxu0 %v2444
  %v2446 = vand.u32 %v861, 4294901760
  %2447 = vmatprep.subr.mxu0 %v2446
  %v2448 = vand.u32 %v860, 4294901760
  %2449 = vmatpush1.msra.mxu0 %v2448
  %v2450 = vand.u32 %v855, 4294901760
  %2451 = vmatprep.subr.mxu0 %v2450
  %v2452 = vand.u32 %v854, 4294901760
  %2453 = vmatpush1.msra.mxu0 %v2452
  %v2454 = vand.u32 %v849, 4294901760
  %2455 = vmatprep.subr.mxu0 %v2454
  %v2456 = vand.u32 %v848, 4294901760
  %2457 = vmatpush1.msra.mxu0 %v2456
  %v2458 = vand.u32 %v843, 4294901760
  %2459 = vmatprep.subr.mxu0 %v2458
  %v2460 = vand.u32 %v842, 4294901760
  %2461 = vmatpush1.msra.mxu0 %v2460
  %v2462 = vand.u32 %v837, 4294901760
  %2463 = vmatprep.subr.mxu0 %v2462
  %v2464 = vand.u32 %v836, 4294901760
  %2465 = vmatpush1.msra.mxu0 %v2464
  %v2466 = vand.u32 %v831, 4294901760
  %2467 = vmatprep.subr.mxu0 %v2466
  %v2468 = vand.u32 %v830, 4294901760
  %2469 = vmatpush1.msra.mxu0 %v2468
  %v2470 = vand.u32 %v825, 4294901760
  %2471 = vmatprep.subr.mxu0 %v2470
  %v2472 = vand.u32 %v824, 4294901760
  %2473 = vmatpush1.msra.mxu0 %v2472
  %v2474 = vand.u32 %v819, 4294901760
  %2475 = vmatprep.subr.mxu0 %v2474
  %v2476 = vand.u32 %v818, 4294901760
  %2477 = vmatpush1.msra.mxu0 %v2476
  %v2478 = vand.u32 %v813, 4294901760
  %2479 = vmatprep.subr.mxu0 %v2478
  %v2480 = vand.u32 %v812, 4294901760
  %2481 = vmatpush1.msra.mxu0 %v2480
  %v2482 = vand.u32 %v807, 4294901760
  %2483 = vmatprep.subr.mxu0 %v2482
  %v2484 = vand.u32 %v806, 4294901760
  %2485 = vmatpush1.msra.mxu0 %v2484
  %v2486 = vand.u32 %v801, 4294901760
  %2487 = vmatprep.subr.mxu0 %v2486
  %v2488 = vand.u32 %v800, 4294901760
  %2489 = vmatpush1.msra.mxu0 %v2488
  %v2490 = vand.u32 %v795, 4294901760
  %2491 = vmatprep.subr.mxu0 %v2490
  %v2492 = vand.u32 %v794, 4294901760
  %2493 = vmatpush1.msra.mxu0 %v2492
  %v2494 = vand.u32 %v789, 4294901760
  %2495 = vmatprep.subr.mxu0 %v2494
  %v2496 = vand.u32 %v788, 4294901760
  %2497 = vmatpush1.msra.mxu0 %v2496
  %2498 = vmatprep.subr.mxu0 0.0
  %2499 = vmatpush2.msra.mxu0 0.0
  %2500 = vmatprep.subr.mxu0 0.0
  %2501 = vmatpush2.msra.mxu0 0.0
  %2502 = vmatprep.subr.mxu0 0.0
  %2503 = vmatpush2.msra.mxu0 0.0
  %2504 = vmatprep.subr.mxu0 0.0
  %2505 = vmatpush2.msra.mxu0 0.0
  %2506 = vmatprep.subr.mxu0 0.0
  %2507 = vmatpush2.msra.mxu0 0.0
  %2508 = vmatprep.subr.mxu0 0.0
  %2509 = vmatpush2.msra.mxu0 0.0
  %2510 = vmatprep.subr.mxu0 0.0
  %2511 = vmatpush2.msra.mxu0 0.0
  %2512 = vmatprep.subr.mxu0 0.0
  %2513 = vmatpush2.msra.mxu0 0.0
  %2514 = vmatprep.subr.mxu0 0.0
  %2515 = vmatpush2.msra.mxu0 0.0
  %2516 = vmatprep.subr.mxu0 0.0
  %2517 = vmatpush2.msra.mxu0 0.0
  %2518 = vmatprep.subr.mxu0 0.0
  %2519 = vmatpush2.msra.mxu0 0.0
  %2520 = vmatprep.subr.mxu0 0.0
  %2521 = vmatpush2.msra.mxu0 0.0
  %2522 = vmatprep.subr.mxu0 0.0
  %2523 = vmatpush2.msra.mxu0 0.0
  %2524 = vmatprep.subr.mxu0 0.0
  %2525 = vmatpush2.msra.mxu0 0.0
  %v2526 = vand.u32 %v891, 4294901760
  %2527 = vmatprep.subr.mxu0 %v2526
  %v2528 = vand.u32 %v890, 4294901760
  %2529 = vmatpush2.msra.mxu0 %v2528
  %v2530 = vand.u32 %v885, 4294901760
  %2531 = vmatprep.subr.mxu0 %v2530
  %v2532 = vand.u32 %v884, 4294901760
  %2533 = vmatpush2.msra.mxu0 %v2532
  %v2534 = vand.u32 %v896, 4294901760
  %v2535 = vsub.f32 %v896, %v2534
  %v2536 = vand.u32 %v2535, 4294901760
  %2537 = vmatprep.mubr.f32.mxu0 %v2536
  %v2538 = vand.u32 %v782, 4294901760
  %v2539 = vsub.f32 %v782, %v2538
  %v2540 = vand.u32 %v2539, 4294901760
  %2541 = vmatmul.mubr.f32.gmra.mxu0 %v2540
  %v2542 = vpop.f32.mrf.mxu0
  %v2543 = vadd.f32 %v2420, %v2542
  %v2544 = vpop.f32.mrf.mxu0
  %v2545 = vadd.f32 %v2422, %v2544
  %v2546 = vand.u32 %v899, 4294901760
  %v2547 = vsub.f32 %v899, %v2546
  %v2548 = vand.u32 %v2547, 4294901760
  %2549 = vmatprep.mubr.f32.mxu0 %v2548
  %v2550 = vand.u32 %v784, 4294901760
  %v2551 = vsub.f32 %v784, %v2550
  %v2552 = vand.u32 %v2551, 4294901760
  %2553 = vmatmul.mubr.f32.gmra.mxu0 %v2552
  %v2554 = vpop.f32.mrf.mxu0
  %v2555 = vadd.f32 %v2430, %v2554
  %v2556 = vpop.f32.mrf.mxu0
  %v2557 = vadd.f32 %v2432, %v2556
  %2558 = vdwg.mxu0
  %v2559 = vand.u32 %v879, 4294901760
  %v2560 = vsub.f32 %v879, %v2559
  %v2561 = vand.u32 %v2560, 4294901760
  %2562 = vmatprep.subr.mxu0 %v2561
  %v2563 = vand.u32 %v878, 4294901760
  %v2564 = vsub.f32 %v878, %v2563
  %v2565 = vand.u32 %v2564, 4294901760
  %2566 = vmatpush1.msra.mxu0 %v2565
  %v2567 = vand.u32 %v873, 4294901760
  %v2568 = vsub.f32 %v873, %v2567
  %v2569 = vand.u32 %v2568, 4294901760
  %2570 = vmatprep.subr.mxu0 %v2569
  %v2571 = vand.u32 %v872, 4294901760
  %v2572 = vsub.f32 %v872, %v2571
  %v2573 = vand.u32 %v2572, 4294901760
  %2574 = vmatpush1.msra.mxu0 %v2573
  %v2575 = vand.u32 %v867, 4294901760
  %v2576 = vsub.f32 %v867, %v2575
  %v2577 = vand.u32 %v2576, 4294901760
  %2578 = vmatprep.subr.mxu0 %v2577
  %v2579 = vand.u32 %v866, 4294901760
  %v2580 = vsub.f32 %v866, %v2579
  %v2581 = vand.u32 %v2580, 4294901760
  %2582 = vmatpush1.msra.mxu0 %v2581
  %v2583 = vand.u32 %v861, 4294901760
  %v2584 = vsub.f32 %v861, %v2583
  %v2585 = vand.u32 %v2584, 4294901760
  %2586 = vmatprep.subr.mxu0 %v2585
  %v2587 = vand.u32 %v860, 4294901760
  %v2588 = vsub.f32 %v860, %v2587
  %v2589 = vand.u32 %v2588, 4294901760
  %2590 = vmatpush1.msra.mxu0 %v2589
  %v2591 = vand.u32 %v855, 4294901760
  %v2592 = vsub.f32 %v855, %v2591
  %v2593 = vand.u32 %v2592, 4294901760
  %2594 = vmatprep.subr.mxu0 %v2593
  %v2595 = vand.u32 %v854, 4294901760
  %v2596 = vsub.f32 %v854, %v2595
  %v2597 = vand.u32 %v2596, 4294901760
  %2598 = vmatpush1.msra.mxu0 %v2597
  %v2599 = vand.u32 %v849, 4294901760
  %v2600 = vsub.f32 %v849, %v2599
  %v2601 = vand.u32 %v2600, 4294901760
  %2602 = vmatprep.subr.mxu0 %v2601
  %v2603 = vand.u32 %v848, 4294901760
  %v2604 = vsub.f32 %v848, %v2603
  %v2605 = vand.u32 %v2604, 4294901760
  %2606 = vmatpush1.msra.mxu0 %v2605
  %v2607 = vand.u32 %v843, 4294901760
  %v2608 = vsub.f32 %v843, %v2607
  %v2609 = vand.u32 %v2608, 4294901760
  %2610 = vmatprep.subr.mxu0 %v2609
  %v2611 = vand.u32 %v842, 4294901760
  %v2612 = vsub.f32 %v842, %v2611
  %v2613 = vand.u32 %v2612, 4294901760
  %2614 = vmatpush1.msra.mxu0 %v2613
  %v2615 = vand.u32 %v837, 4294901760
  %v2616 = vsub.f32 %v837, %v2615
  %v2617 = vand.u32 %v2616, 4294901760
  %2618 = vmatprep.subr.mxu0 %v2617
  %v2619 = vand.u32 %v836, 4294901760
  %v2620 = vsub.f32 %v836, %v2619
  %v2621 = vand.u32 %v2620, 4294901760
  %2622 = vmatpush1.msra.mxu0 %v2621
  %v2623 = vand.u32 %v831, 4294901760
  %v2624 = vsub.f32 %v831, %v2623
  %v2625 = vand.u32 %v2624, 4294901760
  %2626 = vmatprep.subr.mxu0 %v2625
  %v2627 = vand.u32 %v830, 4294901760
  %v2628 = vsub.f32 %v830, %v2627
  %v2629 = vand.u32 %v2628, 4294901760
  %2630 = vmatpush1.msra.mxu0 %v2629
  %v2631 = vand.u32 %v825, 4294901760
  %v2632 = vsub.f32 %v825, %v2631
  %v2633 = vand.u32 %v2632, 4294901760
  %2634 = vmatprep.subr.mxu0 %v2633
  %v2635 = vand.u32 %v824, 4294901760
  %v2636 = vsub.f32 %v824, %v2635
  %v2637 = vand.u32 %v2636, 4294901760
  %2638 = vmatpush1.msra.mxu0 %v2637
  %v2639 = vand.u32 %v819, 4294901760
  %v2640 = vsub.f32 %v819, %v2639
  %v2641 = vand.u32 %v2640, 4294901760
  %2642 = vmatprep.subr.mxu0 %v2641
  %v2643 = vand.u32 %v818, 4294901760
  %v2644 = vsub.f32 %v818, %v2643
  %v2645 = vand.u32 %v2644, 4294901760
  %2646 = vmatpush1.msra.mxu0 %v2645
  %v2647 = vand.u32 %v813, 4294901760
  %v2648 = vsub.f32 %v813, %v2647
  %v2649 = vand.u32 %v2648, 4294901760
  %2650 = vmatprep.subr.mxu0 %v2649
  %v2651 = vand.u32 %v812, 4294901760
  %v2652 = vsub.f32 %v812, %v2651
  %v2653 = vand.u32 %v2652, 4294901760
  %2654 = vmatpush1.msra.mxu0 %v2653
  %v2655 = vand.u32 %v807, 4294901760
  %v2656 = vsub.f32 %v807, %v2655
  %v2657 = vand.u32 %v2656, 4294901760
  %2658 = vmatprep.subr.mxu0 %v2657
  %v2659 = vand.u32 %v806, 4294901760
  %v2660 = vsub.f32 %v806, %v2659
  %v2661 = vand.u32 %v2660, 4294901760
  %2662 = vmatpush1.msra.mxu0 %v2661
  %v2663 = vand.u32 %v801, 4294901760
  %v2664 = vsub.f32 %v801, %v2663
  %v2665 = vand.u32 %v2664, 4294901760
  %2666 = vmatprep.subr.mxu0 %v2665
  %v2667 = vand.u32 %v800, 4294901760
  %v2668 = vsub.f32 %v800, %v2667
  %v2669 = vand.u32 %v2668, 4294901760
  %2670 = vmatpush1.msra.mxu0 %v2669
  %v2671 = vand.u32 %v795, 4294901760
  %v2672 = vsub.f32 %v795, %v2671
  %v2673 = vand.u32 %v2672, 4294901760
  %2674 = vmatprep.subr.mxu0 %v2673
  %v2675 = vand.u32 %v794, 4294901760
  %v2676 = vsub.f32 %v794, %v2675
  %v2677 = vand.u32 %v2676, 4294901760
  %2678 = vmatpush1.msra.mxu0 %v2677
  %v2679 = vand.u32 %v789, 4294901760
  %v2680 = vsub.f32 %v789, %v2679
  %v2681 = vand.u32 %v2680, 4294901760
  %2682 = vmatprep.subr.mxu0 %v2681
  %v2683 = vand.u32 %v788, 4294901760
  %v2684 = vsub.f32 %v788, %v2683
  %v2685 = vand.u32 %v2684, 4294901760
  %2686 = vmatpush1.msra.mxu0 %v2685
  %2687 = vmatprep.subr.mxu0 0.0
  %2688 = vmatpush2.msra.mxu0 0.0
  %2689 = vmatprep.subr.mxu0 0.0
  %2690 = vmatpush2.msra.mxu0 0.0
  %2691 = vmatprep.subr.mxu0 0.0
  %2692 = vmatpush2.msra.mxu0 0.0
  %2693 = vmatprep.subr.mxu0 0.0
  %2694 = vmatpush2.msra.mxu0 0.0
  %2695 = vmatprep.subr.mxu0 0.0
  %2696 = vmatpush2.msra.mxu0 0.0
  %2697 = vmatprep.subr.mxu0 0.0
  %2698 = vmatpush2.msra.mxu0 0.0
  %2699 = vmatprep.subr.mxu0 0.0
  %2700 = vmatpush2.msra.mxu0 0.0
  %2701 = vmatprep.subr.mxu0 0.0
  %2702 = vmatpush2.msra.mxu0 0.0
  %2703 = vmatprep.subr.mxu0 0.0
  %2704 = vmatpush2.msra.mxu0 0.0
  %2705 = vmatprep.subr.mxu0 0.0
  %2706 = vmatpush2.msra.mxu0 0.0
  %2707 = vmatprep.subr.mxu0 0.0
  %2708 = vmatpush2.msra.mxu0 0.0
  %2709 = vmatprep.subr.mxu0 0.0
  %2710 = vmatpush2.msra.mxu0 0.0
  %2711 = vmatprep.subr.mxu0 0.0
  %2712 = vmatpush2.msra.mxu0 0.0
  %2713 = vmatprep.subr.mxu0 0.0
  %2714 = vmatpush2.msra.mxu0 0.0
  %v2715 = vand.u32 %v891, 4294901760
  %v2716 = vsub.f32 %v891, %v2715
  %v2717 = vand.u32 %v2716, 4294901760
  %2718 = vmatprep.subr.mxu0 %v2717
  %v2719 = vand.u32 %v890, 4294901760
  %v2720 = vsub.f32 %v890, %v2719
  %v2721 = vand.u32 %v2720, 4294901760
  %2722 = vmatpush2.msra.mxu0 %v2721
  %v2723 = vand.u32 %v885, 4294901760
  %v2724 = vsub.f32 %v885, %v2723
  %v2725 = vand.u32 %v2724, 4294901760
  %2726 = vmatprep.subr.mxu0 %v2725
  %v2727 = vand.u32 %v884, 4294901760
  %v2728 = vsub.f32 %v884, %v2727
  %v2729 = vand.u32 %v2728, 4294901760
  %2730 = vmatpush2.msra.mxu0 %v2729
  %v2731 = vand.u32 %v896, 4294901760
  %2732 = vmatprep.mubr.f32.mxu0 %v2731
  %v2733 = vand.u32 %v782, 4294901760
  %2734 = vmatmul.mubr.f32.gmra.mxu0 %v2733
  %v2735 = vpop.f32.mrf.mxu0
  %v2736 = vadd.f32 %v2543, %v2735
  %v2737 = vpop.f32.mrf.mxu0
  %v2738 = vadd.f32 %v2545, %v2737
  %v2739 = vand.u32 %v899, 4294901760
  %2740 = vmatprep.mubr.f32.mxu0 %v2739
  %v2741 = vand.u32 %v784, 4294901760
  %2742 = vmatmul.mubr.f32.gmra.mxu0 %v2741
  %v2743 = vpop.f32.mrf.mxu0
  %v2744 = vadd.f32 %v2555, %v2743
  %v2745 = vpop.f32.mrf.mxu0
  %v2746 = vadd.f32 %v2557, %v2745
  %2747 = vdwg.mxu0
  %v2748 = vand.u32 %v879, 4294901760
  %2749 = vmatprep.subr.mxu0 %v2748
  %v2750 = vand.u32 %v878, 4294901760
  %2751 = vmatpush1.msra.mxu0 %v2750
  %v2752 = vand.u32 %v873, 4294901760
  %2753 = vmatprep.subr.mxu0 %v2752
  %v2754 = vand.u32 %v872, 4294901760
  %2755 = vmatpush1.msra.mxu0 %v2754
  %v2756 = vand.u32 %v867, 4294901760
  %2757 = vmatprep.subr.mxu0 %v2756
  %v2758 = vand.u32 %v866, 4294901760
  %2759 = vmatpush1.msra.mxu0 %v2758
  %v2760 = vand.u32 %v861, 4294901760
  %2761 = vmatprep.subr.mxu0 %v2760
  %v2762 = vand.u32 %v860, 4294901760
  %2763 = vmatpush1.msra.mxu0 %v2762
  %v2764 = vand.u32 %v855, 4294901760
  %2765 = vmatprep.subr.mxu0 %v2764
  %v2766 = vand.u32 %v854, 4294901760
  %2767 = vmatpush1.msra.mxu0 %v2766
  %v2768 = vand.u32 %v849, 4294901760
  %2769 = vmatprep.subr.mxu0 %v2768
  %v2770 = vand.u32 %v848, 4294901760
  %2771 = vmatpush1.msra.mxu0 %v2770
  %v2772 = vand.u32 %v843, 4294901760
  %2773 = vmatprep.subr.mxu0 %v2772
  %v2774 = vand.u32 %v842, 4294901760
  %2775 = vmatpush1.msra.mxu0 %v2774
  %v2776 = vand.u32 %v837, 4294901760
  %2777 = vmatprep.subr.mxu0 %v2776
  %v2778 = vand.u32 %v836, 4294901760
  %2779 = vmatpush1.msra.mxu0 %v2778
  %v2780 = vand.u32 %v831, 4294901760
  %2781 = vmatprep.subr.mxu0 %v2780
  %v2782 = vand.u32 %v830, 4294901760
  %2783 = vmatpush1.msra.mxu0 %v2782
  %v2784 = vand.u32 %v825, 4294901760
  %2785 = vmatprep.subr.mxu0 %v2784
  %v2786 = vand.u32 %v824, 4294901760
  %2787 = vmatpush1.msra.mxu0 %v2786
  %v2788 = vand.u32 %v819, 4294901760
  %2789 = vmatprep.subr.mxu0 %v2788
  %v2790 = vand.u32 %v818, 4294901760
  %2791 = vmatpush1.msra.mxu0 %v2790
  %v2792 = vand.u32 %v813, 4294901760
  %2793 = vmatprep.subr.mxu0 %v2792
  %v2794 = vand.u32 %v812, 4294901760
  %2795 = vmatpush1.msra.mxu0 %v2794
  %v2796 = vand.u32 %v807, 4294901760
  %2797 = vmatprep.subr.mxu0 %v2796
  %v2798 = vand.u32 %v806, 4294901760
  %2799 = vmatpush1.msra.mxu0 %v2798
  %v2800 = vand.u32 %v801, 4294901760
  %2801 = vmatprep.subr.mxu0 %v2800
  %v2802 = vand.u32 %v800, 4294901760
  %2803 = vmatpush1.msra.mxu0 %v2802
  %v2804 = vand.u32 %v795, 4294901760
  %2805 = vmatprep.subr.mxu0 %v2804
  %v2806 = vand.u32 %v794, 4294901760
  %2807 = vmatpush1.msra.mxu0 %v2806
  %v2808 = vand.u32 %v789, 4294901760
  %2809 = vmatprep.subr.mxu0 %v2808
  %v2810 = vand.u32 %v788, 4294901760
  %2811 = vmatpush1.msra.mxu0 %v2810
  %2812 = vmatprep.subr.mxu0 0.0
  %2813 = vmatpush2.msra.mxu0 0.0
  %2814 = vmatprep.subr.mxu0 0.0
  %2815 = vmatpush2.msra.mxu0 0.0
  %2816 = vmatprep.subr.mxu0 0.0
  %2817 = vmatpush2.msra.mxu0 0.0
  %2818 = vmatprep.subr.mxu0 0.0
  %2819 = vmatpush2.msra.mxu0 0.0
  %2820 = vmatprep.subr.mxu0 0.0
  %2821 = vmatpush2.msra.mxu0 0.0
  %2822 = vmatprep.subr.mxu0 0.0
  %2823 = vmatpush2.msra.mxu0 0.0
  %2824 = vmatprep.subr.mxu0 0.0
  %2825 = vmatpush2.msra.mxu0 0.0
  %2826 = vmatprep.subr.mxu0 0.0
  %2827 = vmatpush2.msra.mxu0 0.0
  %2828 = vmatprep.subr.mxu0 0.0
  %2829 = vmatpush2.msra.mxu0 0.0
  %2830 = vmatprep.subr.mxu0 0.0
  %2831 = vmatpush2.msra.mxu0 0.0
  %2832 = vmatprep.subr.mxu0 0.0
  %2833 = vmatpush2.msra.mxu0 0.0
  %2834 = vmatprep.subr.mxu0 0.0
  %2835 = vmatpush2.msra.mxu0 0.0
  %2836 = vmatprep.subr.mxu0 0.0
  %2837 = vmatpush2.msra.mxu0 0.0
  %2838 = vmatprep.subr.mxu0 0.0
  %2839 = vmatpush2.msra.mxu0 0.0
  %v2840 = vand.u32 %v891, 4294901760
  %2841 = vmatprep.subr.mxu0 %v2840
  %v2842 = vand.u32 %v890, 4294901760
  %2843 = vmatpush2.msra.mxu0 %v2842
  %v2844 = vand.u32 %v885, 4294901760
  %2845 = vmatprep.subr.mxu0 %v2844
  %v2846 = vand.u32 %v884, 4294901760
  %2847 = vmatpush2.msra.mxu0 %v2846
  %v2848 = vand.u32 %v896, 4294901760
  %2849 = vmatprep.mubr.f32.mxu0 %v2848
  %v2850 = vand.u32 %v782, 4294901760
  %2851 = vmatmul.mubr.f32.gmra.mxu0 %v2850
  %v2852 = vpop.f32.mrf.mxu0
  %v2853 = vadd.f32 %v2736, %v2852
  %v2854 = vpop.f32.mrf.mxu0
  %v2855 = vadd.f32 %v2738, %v2854
  %v2856 = vand.u32 %v899, 4294901760
  %2857 = vmatprep.mubr.f32.mxu0 %v2856
  %v2858 = vand.u32 %v784, 4294901760
  %2859 = vmatmul.mubr.f32.gmra.mxu0 %v2858
  %v2860 = vpop.f32.mrf.mxu0
  %v2861 = vadd.f32 %v2744, %v2860
  %v2862 = vpop.f32.mrf.mxu0
  %v2863 = vadd.f32 %v2746, %v2862
  %2864 = vdwg.mxu0
  %v2865 = vand.u32 %v881, 4294901760
  %2866 = vmatprep.subr.mxu0 %v2865
  %v2867 = vand.u32 %v880, 4294901760
  %2868 = vmatpush1.msra.mxu0 %v2867
  %v2869 = vand.u32 %v875, 4294901760
  %2870 = vmatprep.subr.mxu0 %v2869
  %v2871 = vand.u32 %v874, 4294901760
  %2872 = vmatpush1.msra.mxu0 %v2871
  %v2873 = vand.u32 %v869, 4294901760
  %2874 = vmatprep.subr.mxu0 %v2873
  %v2875 = vand.u32 %v868, 4294901760
  %2876 = vmatpush1.msra.mxu0 %v2875
  %v2877 = vand.u32 %v863, 4294901760
  %2878 = vmatprep.subr.mxu0 %v2877
  %v2879 = vand.u32 %v862, 4294901760
  %2880 = vmatpush1.msra.mxu0 %v2879
  %v2881 = vand.u32 %v857, 4294901760
  %2882 = vmatprep.subr.mxu0 %v2881
  %v2883 = vand.u32 %v856, 4294901760
  %2884 = vmatpush1.msra.mxu0 %v2883
  %v2885 = vand.u32 %v851, 4294901760
  %2886 = vmatprep.subr.mxu0 %v2885
  %v2887 = vand.u32 %v850, 4294901760
  %2888 = vmatpush1.msra.mxu0 %v2887
  %v2889 = vand.u32 %v845, 4294901760
  %2890 = vmatprep.subr.mxu0 %v2889
  %v2891 = vand.u32 %v844, 4294901760
  %2892 = vmatpush1.msra.mxu0 %v2891
  %v2893 = vand.u32 %v839, 4294901760
  %2894 = vmatprep.subr.mxu0 %v2893
  %v2895 = vand.u32 %v838, 4294901760
  %2896 = vmatpush1.msra.mxu0 %v2895
  %v2897 = vand.u32 %v833, 4294901760
  %2898 = vmatprep.subr.mxu0 %v2897
  %v2899 = vand.u32 %v832, 4294901760
  %2900 = vmatpush1.msra.mxu0 %v2899
  %v2901 = vand.u32 %v827, 4294901760
  %2902 = vmatprep.subr.mxu0 %v2901
  %v2903 = vand.u32 %v826, 4294901760
  %2904 = vmatpush1.msra.mxu0 %v2903
  %v2905 = vand.u32 %v821, 4294901760
  %2906 = vmatprep.subr.mxu0 %v2905
  %v2907 = vand.u32 %v820, 4294901760
  %2908 = vmatpush1.msra.mxu0 %v2907
  %v2909 = vand.u32 %v815, 4294901760
  %2910 = vmatprep.subr.mxu0 %v2909
  %v2911 = vand.u32 %v814, 4294901760
  %2912 = vmatpush1.msra.mxu0 %v2911
  %v2913 = vand.u32 %v809, 4294901760
  %2914 = vmatprep.subr.mxu0 %v2913
  %v2915 = vand.u32 %v808, 4294901760
  %2916 = vmatpush1.msra.mxu0 %v2915
  %v2917 = vand.u32 %v803, 4294901760
  %2918 = vmatprep.subr.mxu0 %v2917
  %v2919 = vand.u32 %v802, 4294901760
  %2920 = vmatpush1.msra.mxu0 %v2919
  %v2921 = vand.u32 %v797, 4294901760
  %2922 = vmatprep.subr.mxu0 %v2921
  %v2923 = vand.u32 %v796, 4294901760
  %2924 = vmatpush1.msra.mxu0 %v2923
  %v2925 = vand.u32 %v791, 4294901760
  %2926 = vmatprep.subr.mxu0 %v2925
  %v2927 = vand.u32 %v790, 4294901760
  %2928 = vmatpush1.msra.mxu0 %v2927
  %2929 = vmatprep.subr.mxu0 0.0
  %2930 = vmatpush2.msra.mxu0 0.0
  %2931 = vmatprep.subr.mxu0 0.0
  %2932 = vmatpush2.msra.mxu0 0.0
  %2933 = vmatprep.subr.mxu0 0.0
  %2934 = vmatpush2.msra.mxu0 0.0
  %2935 = vmatprep.subr.mxu0 0.0
  %2936 = vmatpush2.msra.mxu0 0.0
  %2937 = vmatprep.subr.mxu0 0.0
  %2938 = vmatpush2.msra.mxu0 0.0
  %2939 = vmatprep.subr.mxu0 0.0
  %2940 = vmatpush2.msra.mxu0 0.0
  %2941 = vmatprep.subr.mxu0 0.0
  %2942 = vmatpush2.msra.mxu0 0.0
  %2943 = vmatprep.subr.mxu0 0.0
  %2944 = vmatpush2.msra.mxu0 0.0
  %2945 = vmatprep.subr.mxu0 0.0
  %2946 = vmatpush2.msra.mxu0 0.0
  %2947 = vmatprep.subr.mxu0 0.0
  %2948 = vmatpush2.msra.mxu0 0.0
  %2949 = vmatprep.subr.mxu0 0.0
  %2950 = vmatpush2.msra.mxu0 0.0
  %2951 = vmatprep.subr.mxu0 0.0
  %2952 = vmatpush2.msra.mxu0 0.0
  %2953 = vmatprep.subr.mxu0 0.0
  %2954 = vmatpush2.msra.mxu0 0.0
  %2955 = vmatprep.subr.mxu0 0.0
  %2956 = vmatpush2.msra.mxu0 0.0
  %v2957 = vand.u32 %v893, 4294901760
  %2958 = vmatprep.subr.mxu0 %v2957
  %v2959 = vand.u32 %v892, 4294901760
  %2960 = vmatpush2.msra.mxu0 %v2959
  %v2961 = vand.u32 %v887, 4294901760
  %2962 = vmatprep.subr.mxu0 %v2961
  %v2963 = vand.u32 %v886, 4294901760
  %2964 = vmatpush2.msra.mxu0 %v2963
  %v2965 = vand.u32 %v896, 4294901760
  %v2966 = vsub.f32 %v896, %v2965
  %v2967 = vand.u32 %v2966, 4294901760
  %v2968 = vsub.f32 %v2966, %v2967
  %v2969 = vand.u32 %v2968, 4294901760
  %2970 = vmatprep.mubr.f32.mxu0 %v2969
  %v2971 = vand.u32 %v782, 4294901760
  %v2972 = vsub.f32 %v782, %v2971
  %v2973 = vand.u32 %v2972, 4294901760
  %v2974 = vsub.f32 %v2972, %v2973
  %v2975 = vand.u32 %v2974, 4294901760
  %2976 = vmatmul.mubr.f32.gmra.mxu0 %v2975
  %v2977 = vpop.f32.mrf.mxu0
  %v2978 = vadd.f32 0.0, %v2977
  %v2979 = vpop.f32.mrf.mxu0
  %v2980 = vadd.f32 0.0, %v2979
  %v2981 = vand.u32 %v899, 4294901760
  %v2982 = vsub.f32 %v899, %v2981
  %v2983 = vand.u32 %v2982, 4294901760
  %v2984 = vsub.f32 %v2982, %v2983
  %v2985 = vand.u32 %v2984, 4294901760
  %2986 = vmatprep.mubr.f32.mxu0 %v2985
  %v2987 = vand.u32 %v784, 4294901760
  %v2988 = vsub.f32 %v784, %v2987
  %v2989 = vand.u32 %v2988, 4294901760
  %v2990 = vsub.f32 %v2988, %v2989
  %v2991 = vand.u32 %v2990, 4294901760
  %2992 = vmatmul.mubr.f32.gmra.mxu0 %v2991
  %v2993 = vpop.f32.mrf.mxu0
  %v2994 = vadd.f32 0.0, %v2993
  %v2995 = vpop.f32.mrf.mxu0
  %v2996 = vadd.f32 0.0, %v2995
  %2997 = vdwg.mxu0
  %v2998 = vand.u32 %v881, 4294901760
  %v2999 = vsub.f32 %v881, %v2998
  %v3000 = vand.u32 %v2999, 4294901760
  %v3001 = vsub.f32 %v2999, %v3000
  %v3002 = vand.u32 %v3001, 4294901760
  %3003 = vmatprep.subr.mxu0 %v3002
  %v3004 = vand.u32 %v880, 4294901760
  %v3005 = vsub.f32 %v880, %v3004
  %v3006 = vand.u32 %v3005, 4294901760
  %v3007 = vsub.f32 %v3005, %v3006
  %v3008 = vand.u32 %v3007, 4294901760
  %3009 = vmatpush1.msra.mxu0 %v3008
  %v3010 = vand.u32 %v875, 4294901760
  %v3011 = vsub.f32 %v875, %v3010
  %v3012 = vand.u32 %v3011, 4294901760
  %v3013 = vsub.f32 %v3011, %v3012
  %v3014 = vand.u32 %v3013, 4294901760
  %3015 = vmatprep.subr.mxu0 %v3014
  %v3016 = vand.u32 %v874, 4294901760
  %v3017 = vsub.f32 %v874, %v3016
  %v3018 = vand.u32 %v3017, 4294901760
  %v3019 = vsub.f32 %v3017, %v3018
  %v3020 = vand.u32 %v3019, 4294901760
  %3021 = vmatpush1.msra.mxu0 %v3020
  %v3022 = vand.u32 %v869, 4294901760
  %v3023 = vsub.f32 %v869, %v3022
  %v3024 = vand.u32 %v3023, 4294901760
  %v3025 = vsub.f32 %v3023, %v3024
  %v3026 = vand.u32 %v3025, 4294901760
  %3027 = vmatprep.subr.mxu0 %v3026
  %v3028 = vand.u32 %v868, 4294901760
  %v3029 = vsub.f32 %v868, %v3028
  %v3030 = vand.u32 %v3029, 4294901760
  %v3031 = vsub.f32 %v3029, %v3030
  %v3032 = vand.u32 %v3031, 4294901760
  %3033 = vmatpush1.msra.mxu0 %v3032
  %v3034 = vand.u32 %v863, 4294901760
  %v3035 = vsub.f32 %v863, %v3034
  %v3036 = vand.u32 %v3035, 4294901760
  %v3037 = vsub.f32 %v3035, %v3036
  %v3038 = vand.u32 %v3037, 4294901760
  %3039 = vmatprep.subr.mxu0 %v3038
  %v3040 = vand.u32 %v862, 4294901760
  %v3041 = vsub.f32 %v862, %v3040
  %v3042 = vand.u32 %v3041, 4294901760
  %v3043 = vsub.f32 %v3041, %v3042
  %v3044 = vand.u32 %v3043, 4294901760
  %3045 = vmatpush1.msra.mxu0 %v3044
  %v3046 = vand.u32 %v857, 4294901760
  %v3047 = vsub.f32 %v857, %v3046
  %v3048 = vand.u32 %v3047, 4294901760
  %v3049 = vsub.f32 %v3047, %v3048
  %v3050 = vand.u32 %v3049, 4294901760
  %3051 = vmatprep.subr.mxu0 %v3050
  %v3052 = vand.u32 %v856, 4294901760
  %v3053 = vsub.f32 %v856, %v3052
  %v3054 = vand.u32 %v3053, 4294901760
  %v3055 = vsub.f32 %v3053, %v3054
  %v3056 = vand.u32 %v3055, 4294901760
  %3057 = vmatpush1.msra.mxu0 %v3056
  %v3058 = vand.u32 %v851, 4294901760
  %v3059 = vsub.f32 %v851, %v3058
  %v3060 = vand.u32 %v3059, 4294901760
  %v3061 = vsub.f32 %v3059, %v3060
  %v3062 = vand.u32 %v3061, 4294901760
  %3063 = vmatprep.subr.mxu0 %v3062
  %v3064 = vand.u32 %v850, 4294901760
  %v3065 = vsub.f32 %v850, %v3064
  %v3066 = vand.u32 %v3065, 4294901760
  %v3067 = vsub.f32 %v3065, %v3066
  %v3068 = vand.u32 %v3067, 4294901760
  %3069 = vmatpush1.msra.mxu0 %v3068
  %v3070 = vand.u32 %v845, 4294901760
  %v3071 = vsub.f32 %v845, %v3070
  %v3072 = vand.u32 %v3071, 4294901760
  %v3073 = vsub.f32 %v3071, %v3072
  %v3074 = vand.u32 %v3073, 4294901760
  %3075 = vmatprep.subr.mxu0 %v3074
  %v3076 = vand.u32 %v844, 4294901760
  %v3077 = vsub.f32 %v844, %v3076
  %v3078 = vand.u32 %v3077, 4294901760
  %v3079 = vsub.f32 %v3077, %v3078
  %v3080 = vand.u32 %v3079, 4294901760
  %3081 = vmatpush1.msra.mxu0 %v3080
  %v3082 = vand.u32 %v839, 4294901760
  %v3083 = vsub.f32 %v839, %v3082
  %v3084 = vand.u32 %v3083, 4294901760
  %v3085 = vsub.f32 %v3083, %v3084
  %v3086 = vand.u32 %v3085, 4294901760
  %3087 = vmatprep.subr.mxu0 %v3086
  %v3088 = vand.u32 %v838, 4294901760
  %v3089 = vsub.f32 %v838, %v3088
  %v3090 = vand.u32 %v3089, 4294901760
  %v3091 = vsub.f32 %v3089, %v3090
  %v3092 = vand.u32 %v3091, 4294901760
  %3093 = vmatpush1.msra.mxu0 %v3092
  %v3094 = vand.u32 %v833, 4294901760
  %v3095 = vsub.f32 %v833, %v3094
  %v3096 = vand.u32 %v3095, 4294901760
  %v3097 = vsub.f32 %v3095, %v3096
  %v3098 = vand.u32 %v3097, 4294901760
  %3099 = vmatprep.subr.mxu0 %v3098
  %v3100 = vand.u32 %v832, 4294901760
  %v3101 = vsub.f32 %v832, %v3100
  %v3102 = vand.u32 %v3101, 4294901760
  %v3103 = vsub.f32 %v3101, %v3102
  %v3104 = vand.u32 %v3103, 4294901760
  %3105 = vmatpush1.msra.mxu0 %v3104
  %v3106 = vand.u32 %v827, 4294901760
  %v3107 = vsub.f32 %v827, %v3106
  %v3108 = vand.u32 %v3107, 4294901760
  %v3109 = vsub.f32 %v3107, %v3108
  %v3110 = vand.u32 %v3109, 4294901760
  %3111 = vmatprep.subr.mxu0 %v3110
  %v3112 = vand.u32 %v826, 4294901760
  %v3113 = vsub.f32 %v826, %v3112
  %v3114 = vand.u32 %v3113, 4294901760
  %v3115 = vsub.f32 %v3113, %v3114
  %v3116 = vand.u32 %v3115, 4294901760
  %3117 = vmatpush1.msra.mxu0 %v3116
  %v3118 = vand.u32 %v821, 4294901760
  %v3119 = vsub.f32 %v821, %v3118
  %v3120 = vand.u32 %v3119, 4294901760
  %v3121 = vsub.f32 %v3119, %v3120
  %v3122 = vand.u32 %v3121, 4294901760
  %3123 = vmatprep.subr.mxu0 %v3122
  %v3124 = vand.u32 %v820, 4294901760
  %v3125 = vsub.f32 %v820, %v3124
  %v3126 = vand.u32 %v3125, 4294901760
  %v3127 = vsub.f32 %v3125, %v3126
  %v3128 = vand.u32 %v3127, 4294901760
  %3129 = vmatpush1.msra.mxu0 %v3128
  %v3130 = vand.u32 %v815, 4294901760
  %v3131 = vsub.f32 %v815, %v3130
  %v3132 = vand.u32 %v3131, 4294901760
  %v3133 = vsub.f32 %v3131, %v3132
  %v3134 = vand.u32 %v3133, 4294901760
  %3135 = vmatprep.subr.mxu0 %v3134
  %v3136 = vand.u32 %v814, 4294901760
  %v3137 = vsub.f32 %v814, %v3136
  %v3138 = vand.u32 %v3137, 4294901760
  %v3139 = vsub.f32 %v3137, %v3138
  %v3140 = vand.u32 %v3139, 4294901760
  %3141 = vmatpush1.msra.mxu0 %v3140
  %v3142 = vand.u32 %v809, 4294901760
  %v3143 = vsub.f32 %v809, %v3142
  %v3144 = vand.u32 %v3143, 4294901760
  %v3145 = vsub.f32 %v3143, %v3144
  %v3146 = vand.u32 %v3145, 4294901760
  %3147 = vmatprep.subr.mxu0 %v3146
  %v3148 = vand.u32 %v808, 4294901760
  %v3149 = vsub.f32 %v808, %v3148
  %v3150 = vand.u32 %v3149, 4294901760
  %v3151 = vsub.f32 %v3149, %v3150
  %v3152 = vand.u32 %v3151, 4294901760
  %3153 = vmatpush1.msra.mxu0 %v3152
  %v3154 = vand.u32 %v803, 4294901760
  %v3155 = vsub.f32 %v803, %v3154
  %v3156 = vand.u32 %v3155, 4294901760
  %v3157 = vsub.f32 %v3155, %v3156
  %v3158 = vand.u32 %v3157, 4294901760
  %3159 = vmatprep.subr.mxu0 %v3158
  %v3160 = vand.u32 %v802, 4294901760
  %v3161 = vsub.f32 %v802, %v3160
  %v3162 = vand.u32 %v3161, 4294901760
  %v3163 = vsub.f32 %v3161, %v3162
  %v3164 = vand.u32 %v3163, 4294901760
  %3165 = vmatpush1.msra.mxu0 %v3164
  %v3166 = vand.u32 %v797, 4294901760
  %v3167 = vsub.f32 %v797, %v3166
  %v3168 = vand.u32 %v3167, 4294901760
  %v3169 = vsub.f32 %v3167, %v3168
  %v3170 = vand.u32 %v3169, 4294901760
  %3171 = vmatprep.subr.mxu0 %v3170
  %v3172 = vand.u32 %v796, 4294901760
  %v3173 = vsub.f32 %v796, %v3172
  %v3174 = vand.u32 %v3173, 4294901760
  %v3175 = vsub.f32 %v3173, %v3174
  %v3176 = vand.u32 %v3175, 4294901760
  %3177 = vmatpush1.msra.mxu0 %v3176
  %v3178 = vand.u32 %v791, 4294901760
  %v3179 = vsub.f32 %v791, %v3178
  %v3180 = vand.u32 %v3179, 4294901760
  %v3181 = vsub.f32 %v3179, %v3180
  %v3182 = vand.u32 %v3181, 4294901760
  %3183 = vmatprep.subr.mxu0 %v3182
  %v3184 = vand.u32 %v790, 4294901760
  %v3185 = vsub.f32 %v790, %v3184
  %v3186 = vand.u32 %v3185, 4294901760
  %v3187 = vsub.f32 %v3185, %v3186
  %v3188 = vand.u32 %v3187, 4294901760
  %3189 = vmatpush1.msra.mxu0 %v3188
  %3190 = vmatprep.subr.mxu0 0.0
  %3191 = vmatpush2.msra.mxu0 0.0
  %3192 = vmatprep.subr.mxu0 0.0
  %3193 = vmatpush2.msra.mxu0 0.0
  %3194 = vmatprep.subr.mxu0 0.0
  %3195 = vmatpush2.msra.mxu0 0.0
  %3196 = vmatprep.subr.mxu0 0.0
  %3197 = vmatpush2.msra.mxu0 0.0
  %3198 = vmatprep.subr.mxu0 0.0
  %3199 = vmatpush2.msra.mxu0 0.0
  %3200 = vmatprep.subr.mxu0 0.0
  %3201 = vmatpush2.msra.mxu0 0.0
  %3202 = vmatprep.subr.mxu0 0.0
  %3203 = vmatpush2.msra.mxu0 0.0
  %3204 = vmatprep.subr.mxu0 0.0
  %3205 = vmatpush2.msra.mxu0 0.0
  %3206 = vmatprep.subr.mxu0 0.0
  %3207 = vmatpush2.msra.mxu0 0.0
  %3208 = vmatprep.subr.mxu0 0.0
  %3209 = vmatpush2.msra.mxu0 0.0
  %3210 = vmatprep.subr.mxu0 0.0
  %3211 = vmatpush2.msra.mxu0 0.0
  %3212 = vmatprep.subr.mxu0 0.0
  %3213 = vmatpush2.msra.mxu0 0.0
  %3214 = vmatprep.subr.mxu0 0.0
  %3215 = vmatpush2.msra.mxu0 0.0
  %3216 = vmatprep.subr.mxu0 0.0
  %3217 = vmatpush2.msra.mxu0 0.0
  %v3218 = vand.u32 %v893, 4294901760
  %v3219 = vsub.f32 %v893, %v3218
  %v3220 = vand.u32 %v3219, 4294901760
  %v3221 = vsub.f32 %v3219, %v3220
  %v3222 = vand.u32 %v3221, 4294901760
  %3223 = vmatprep.subr.mxu0 %v3222
  %v3224 = vand.u32 %v892, 4294901760
  %v3225 = vsub.f32 %v892, %v3224
  %v3226 = vand.u32 %v3225, 4294901760
  %v3227 = vsub.f32 %v3225, %v3226
  %v3228 = vand.u32 %v3227, 4294901760
  %3229 = vmatpush2.msra.mxu0 %v3228
  %v3230 = vand.u32 %v887, 4294901760
  %v3231 = vsub.f32 %v887, %v3230
  %v3232 = vand.u32 %v3231, 4294901760
  %v3233 = vsub.f32 %v3231, %v3232
  %v3234 = vand.u32 %v3233, 4294901760
  %3235 = vmatprep.subr.mxu0 %v3234
  %v3236 = vand.u32 %v886, 4294901760
  %v3237 = vsub.f32 %v886, %v3236
  %v3238 = vand.u32 %v3237, 4294901760
  %v3239 = vsub.f32 %v3237, %v3238
  %v3240 = vand.u32 %v3239, 4294901760
  %3241 = vmatpush2.msra.mxu0 %v3240
  %v3242 = vand.u32 %v896, 4294901760
  %3243 = vmatprep.mubr.f32.mxu0 %v3242
  %v3244 = vand.u32 %v782, 4294901760
  %3245 = vmatmul.mubr.f32.gmra.mxu0 %v3244
  %v3246 = vpop.f32.mrf.mxu0
  %v3247 = vadd.f32 %v2978, %v3246
  %v3248 = vpop.f32.mrf.mxu0
  %v3249 = vadd.f32 %v2980, %v3248
  %v3250 = vand.u32 %v899, 4294901760
  %3251 = vmatprep.mubr.f32.mxu0 %v3250
  %v3252 = vand.u32 %v784, 4294901760
  %3253 = vmatmul.mubr.f32.gmra.mxu0 %v3252
  %v3254 = vpop.f32.mrf.mxu0
  %v3255 = vadd.f32 %v2994, %v3254
  %v3256 = vpop.f32.mrf.mxu0
  %v3257 = vadd.f32 %v2996, %v3256
  %3258 = vdwg.mxu0
  %v3259 = vand.u32 %v881, 4294901760
  %v3260 = vsub.f32 %v881, %v3259
  %3261 = vmatprep.subr.mxu0 %v3260
  %v3262 = vand.u32 %v880, 4294901760
  %v3263 = vsub.f32 %v880, %v3262
  %3264 = vmatpush1.msra.mxu0 %v3263
  %v3265 = vand.u32 %v875, 4294901760
  %v3266 = vsub.f32 %v875, %v3265
  %3267 = vmatprep.subr.mxu0 %v3266
  %v3268 = vand.u32 %v874, 4294901760
  %v3269 = vsub.f32 %v874, %v3268
  %3270 = vmatpush1.msra.mxu0 %v3269
  %v3271 = vand.u32 %v869, 4294901760
  %v3272 = vsub.f32 %v869, %v3271
  %3273 = vmatprep.subr.mxu0 %v3272
  %v3274 = vand.u32 %v868, 4294901760
  %v3275 = vsub.f32 %v868, %v3274
  %3276 = vmatpush1.msra.mxu0 %v3275
  %v3277 = vand.u32 %v863, 4294901760
  %v3278 = vsub.f32 %v863, %v3277
  %3279 = vmatprep.subr.mxu0 %v3278
  %v3280 = vand.u32 %v862, 4294901760
  %v3281 = vsub.f32 %v862, %v3280
  %3282 = vmatpush1.msra.mxu0 %v3281
  %v3283 = vand.u32 %v857, 4294901760
  %v3284 = vsub.f32 %v857, %v3283
  %3285 = vmatprep.subr.mxu0 %v3284
  %v3286 = vand.u32 %v856, 4294901760
  %v3287 = vsub.f32 %v856, %v3286
  %3288 = vmatpush1.msra.mxu0 %v3287
  %v3289 = vand.u32 %v851, 4294901760
  %v3290 = vsub.f32 %v851, %v3289
  %3291 = vmatprep.subr.mxu0 %v3290
  %v3292 = vand.u32 %v850, 4294901760
  %v3293 = vsub.f32 %v850, %v3292
  %3294 = vmatpush1.msra.mxu0 %v3293
  %v3295 = vand.u32 %v845, 4294901760
  %v3296 = vsub.f32 %v845, %v3295
  %3297 = vmatprep.subr.mxu0 %v3296
  %v3298 = vand.u32 %v844, 4294901760
  %v3299 = vsub.f32 %v844, %v3298
  %3300 = vmatpush1.msra.mxu0 %v3299
  %v3301 = vand.u32 %v839, 4294901760
  %v3302 = vsub.f32 %v839, %v3301
  %3303 = vmatprep.subr.mxu0 %v3302
  %v3304 = vand.u32 %v838, 4294901760
  %v3305 = vsub.f32 %v838, %v3304
  %3306 = vmatpush1.msra.mxu0 %v3305
  %v3307 = vand.u32 %v833, 4294901760
  %v3308 = vsub.f32 %v833, %v3307
  %3309 = vmatprep.subr.mxu0 %v3308
  %v3310 = vand.u32 %v832, 4294901760
  %v3311 = vsub.f32 %v832, %v3310
  %3312 = vmatpush1.msra.mxu0 %v3311
  %v3313 = vand.u32 %v827, 4294901760
  %v3314 = vsub.f32 %v827, %v3313
  %3315 = vmatprep.subr.mxu0 %v3314
  %v3316 = vand.u32 %v826, 4294901760
  %v3317 = vsub.f32 %v826, %v3316
  %3318 = vmatpush1.msra.mxu0 %v3317
  %v3319 = vand.u32 %v821, 4294901760
  %v3320 = vsub.f32 %v821, %v3319
  %3321 = vmatprep.subr.mxu0 %v3320
  %v3322 = vand.u32 %v820, 4294901760
  %v3323 = vsub.f32 %v820, %v3322
  %3324 = vmatpush1.msra.mxu0 %v3323
  %v3325 = vand.u32 %v815, 4294901760
  %v3326 = vsub.f32 %v815, %v3325
  %3327 = vmatprep.subr.mxu0 %v3326
  %v3328 = vand.u32 %v814, 4294901760
  %v3329 = vsub.f32 %v814, %v3328
  %3330 = vmatpush1.msra.mxu0 %v3329
  %v3331 = vand.u32 %v809, 4294901760
  %v3332 = vsub.f32 %v809, %v3331
  %3333 = vmatprep.subr.mxu0 %v3332
  %v3334 = vand.u32 %v808, 4294901760
  %v3335 = vsub.f32 %v808, %v3334
  %3336 = vmatpush1.msra.mxu0 %v3335
  %v3337 = vand.u32 %v803, 4294901760
  %v3338 = vsub.f32 %v803, %v3337
  %3339 = vmatprep.subr.mxu0 %v3338
  %v3340 = vand.u32 %v802, 4294901760
  %v3341 = vsub.f32 %v802, %v3340
  %3342 = vmatpush1.msra.mxu0 %v3341
  %v3343 = vand.u32 %v797, 4294901760
  %v3344 = vsub.f32 %v797, %v3343
  %3345 = vmatprep.subr.mxu0 %v3344
  %v3346 = vand.u32 %v796, 4294901760
  %v3347 = vsub.f32 %v796, %v3346
  %3348 = vmatpush1.msra.mxu0 %v3347
  %v3349 = vand.u32 %v791, 4294901760
  %v3350 = vsub.f32 %v791, %v3349
  %3351 = vmatprep.subr.mxu0 %v3350
  %v3352 = vand.u32 %v790, 4294901760
  %v3353 = vsub.f32 %v790, %v3352
  %3354 = vmatpush1.msra.mxu0 %v3353
  %3355 = vmatprep.subr.mxu0 0.0
  %3356 = vmatpush2.msra.mxu0 0.0
  %3357 = vmatprep.subr.mxu0 0.0
  %3358 = vmatpush2.msra.mxu0 0.0
  %3359 = vmatprep.subr.mxu0 0.0
  %3360 = vmatpush2.msra.mxu0 0.0
  %3361 = vmatprep.subr.mxu0 0.0
  %3362 = vmatpush2.msra.mxu0 0.0
  %3363 = vmatprep.subr.mxu0 0.0
  %3364 = vmatpush2.msra.mxu0 0.0
  %3365 = vmatprep.subr.mxu0 0.0
  %3366 = vmatpush2.msra.mxu0 0.0
  %3367 = vmatprep.subr.mxu0 0.0
  %3368 = vmatpush2.msra.mxu0 0.0
  %3369 = vmatprep.subr.mxu0 0.0
  %3370 = vmatpush2.msra.mxu0 0.0
  %3371 = vmatprep.subr.mxu0 0.0
  %3372 = vmatpush2.msra.mxu0 0.0
  %3373 = vmatprep.subr.mxu0 0.0
  %3374 = vmatpush2.msra.mxu0 0.0
  %3375 = vmatprep.subr.mxu0 0.0
  %3376 = vmatpush2.msra.mxu0 0.0
  %3377 = vmatprep.subr.mxu0 0.0
  %3378 = vmatpush2.msra.mxu0 0.0
  %3379 = vmatprep.subr.mxu0 0.0
  %3380 = vmatpush2.msra.mxu0 0.0
  %3381 = vmatprep.subr.mxu0 0.0
  %3382 = vmatpush2.msra.mxu0 0.0
  %v3383 = vand.u32 %v893, 4294901760
  %v3384 = vsub.f32 %v893, %v3383
  %3385 = vmatprep.subr.mxu0 %v3384
  %v3386 = vand.u32 %v892, 4294901760
  %v3387 = vsub.f32 %v892, %v3386
  %3388 = vmatpush2.msra.mxu0 %v3387
  %v3389 = vand.u32 %v887, 4294901760
  %v3390 = vsub.f32 %v887, %v3389
  %3391 = vmatprep.subr.mxu0 %v3390
  %v3392 = vand.u32 %v886, 4294901760
  %v3393 = vsub.f32 %v886, %v3392
  %3394 = vmatpush2.msra.mxu0 %v3393
  %v3395 = vand.u32 %v896, 4294901760
  %v3396 = vsub.f32 %v896, %v3395
  %3397 = vmatprep.mubr.f32.mxu0 %v3396
  %v3398 = vand.u32 %v782, 4294901760
  %v3399 = vsub.f32 %v782, %v3398
  %3400 = vmatmul.mubr.f32.gmra.mxu0 %v3399
  %v3401 = vpop.f32.mrf.mxu0
  %v3402 = vadd.f32 %v3247, %v3401
  %v3403 = vpop.f32.mrf.mxu0
  %v3404 = vadd.f32 %v3249, %v3403
  %v3405 = vand.u32 %v899, 4294901760
  %v3406 = vsub.f32 %v899, %v3405
  %3407 = vmatprep.mubr.f32.mxu0 %v3406
  %v3408 = vand.u32 %v784, 4294901760
  %v3409 = vsub.f32 %v784, %v3408
  %3410 = vmatmul.mubr.f32.gmra.mxu0 %v3409
  %v3411 = vpop.f32.mrf.mxu0
  %v3412 = vadd.f32 %v3255, %v3411
  %v3413 = vpop.f32.mrf.mxu0
  %v3414 = vadd.f32 %v3257, %v3413
  %3415 = vdwg.mxu0
  %v3416 = vand.u32 %v881, 4294901760
  %3417 = vmatprep.subr.mxu0 %v3416
  %v3418 = vand.u32 %v880, 4294901760
  %3419 = vmatpush1.msra.mxu0 %v3418
  %v3420 = vand.u32 %v875, 4294901760
  %3421 = vmatprep.subr.mxu0 %v3420
  %v3422 = vand.u32 %v874, 4294901760
  %3423 = vmatpush1.msra.mxu0 %v3422
  %v3424 = vand.u32 %v869, 4294901760
  %3425 = vmatprep.subr.mxu0 %v3424
  %v3426 = vand.u32 %v868, 4294901760
  %3427 = vmatpush1.msra.mxu0 %v3426
  %v3428 = vand.u32 %v863, 4294901760
  %3429 = vmatprep.subr.mxu0 %v3428
  %v3430 = vand.u32 %v862, 4294901760
  %3431 = vmatpush1.msra.mxu0 %v3430
  %v3432 = vand.u32 %v857, 4294901760
  %3433 = vmatprep.subr.mxu0 %v3432
  %v3434 = vand.u32 %v856, 4294901760
  %3435 = vmatpush1.msra.mxu0 %v3434
  %v3436 = vand.u32 %v851, 4294901760
  %3437 = vmatprep.subr.mxu0 %v3436
  %v3438 = vand.u32 %v850, 4294901760
  %3439 = vmatpush1.msra.mxu0 %v3438
  %v3440 = vand.u32 %v845, 4294901760
  %3441 = vmatprep.subr.mxu0 %v3440
  %v3442 = vand.u32 %v844, 4294901760
  %3443 = vmatpush1.msra.mxu0 %v3442
  %v3444 = vand.u32 %v839, 4294901760
  %3445 = vmatprep.subr.mxu0 %v3444
  %v3446 = vand.u32 %v838, 4294901760
  %3447 = vmatpush1.msra.mxu0 %v3446
  %v3448 = vand.u32 %v833, 4294901760
  %3449 = vmatprep.subr.mxu0 %v3448
  %v3450 = vand.u32 %v832, 4294901760
  %3451 = vmatpush1.msra.mxu0 %v3450
  %v3452 = vand.u32 %v827, 4294901760
  %3453 = vmatprep.subr.mxu0 %v3452
  %v3454 = vand.u32 %v826, 4294901760
  %3455 = vmatpush1.msra.mxu0 %v3454
  %v3456 = vand.u32 %v821, 4294901760
  %3457 = vmatprep.subr.mxu0 %v3456
  %v3458 = vand.u32 %v820, 4294901760
  %3459 = vmatpush1.msra.mxu0 %v3458
  %v3460 = vand.u32 %v815, 4294901760
  %3461 = vmatprep.subr.mxu0 %v3460
  %v3462 = vand.u32 %v814, 4294901760
  %3463 = vmatpush1.msra.mxu0 %v3462
  %v3464 = vand.u32 %v809, 4294901760
  %3465 = vmatprep.subr.mxu0 %v3464
  %v3466 = vand.u32 %v808, 4294901760
  %3467 = vmatpush1.msra.mxu0 %v3466
  %v3468 = vand.u32 %v803, 4294901760
  %3469 = vmatprep.subr.mxu0 %v3468
  %v3470 = vand.u32 %v802, 4294901760
  %3471 = vmatpush1.msra.mxu0 %v3470
  %v3472 = vand.u32 %v797, 4294901760
  %3473 = vmatprep.subr.mxu0 %v3472
  %v3474 = vand.u32 %v796, 4294901760
  %3475 = vmatpush1.msra.mxu0 %v3474
  %v3476 = vand.u32 %v791, 4294901760
  %3477 = vmatprep.subr.mxu0 %v3476
  %v3478 = vand.u32 %v790, 4294901760
  %3479 = vmatpush1.msra.mxu0 %v3478
  %3480 = vmatprep.subr.mxu0 0.0
  %3481 = vmatpush2.msra.mxu0 0.0
  %3482 = vmatprep.subr.mxu0 0.0
  %3483 = vmatpush2.msra.mxu0 0.0
  %3484 = vmatprep.subr.mxu0 0.0
  %3485 = vmatpush2.msra.mxu0 0.0
  %3486 = vmatprep.subr.mxu0 0.0
  %3487 = vmatpush2.msra.mxu0 0.0
  %3488 = vmatprep.subr.mxu0 0.0
  %3489 = vmatpush2.msra.mxu0 0.0
  %3490 = vmatprep.subr.mxu0 0.0
  %3491 = vmatpush2.msra.mxu0 0.0
  %3492 = vmatprep.subr.mxu0 0.0
  %3493 = vmatpush2.msra.mxu0 0.0
  %3494 = vmatprep.subr.mxu0 0.0
  %3495 = vmatpush2.msra.mxu0 0.0
  %3496 = vmatprep.subr.mxu0 0.0
  %3497 = vmatpush2.msra.mxu0 0.0
  %3498 = vmatprep.subr.mxu0 0.0
  %3499 = vmatpush2.msra.mxu0 0.0
  %3500 = vmatprep.subr.mxu0 0.0
  %3501 = vmatpush2.msra.mxu0 0.0
  %3502 = vmatprep.subr.mxu0 0.0
  %3503 = vmatpush2.msra.mxu0 0.0
  %3504 = vmatprep.subr.mxu0 0.0
  %3505 = vmatpush2.msra.mxu0 0.0
  %3506 = vmatprep.subr.mxu0 0.0
  %3507 = vmatpush2.msra.mxu0 0.0
  %v3508 = vand.u32 %v893, 4294901760
  %3509 = vmatprep.subr.mxu0 %v3508
  %v3510 = vand.u32 %v892, 4294901760
  %3511 = vmatpush2.msra.mxu0 %v3510
  %v3512 = vand.u32 %v887, 4294901760
  %3513 = vmatprep.subr.mxu0 %v3512
  %v3514 = vand.u32 %v886, 4294901760
  %3515 = vmatpush2.msra.mxu0 %v3514
  %v3516 = vand.u32 %v896, 4294901760
  %v3517 = vsub.f32 %v896, %v3516
  %v3518 = vand.u32 %v3517, 4294901760
  %3519 = vmatprep.mubr.f32.mxu0 %v3518
  %v3520 = vand.u32 %v782, 4294901760
  %v3521 = vsub.f32 %v782, %v3520
  %v3522 = vand.u32 %v3521, 4294901760
  %3523 = vmatmul.mubr.f32.gmra.mxu0 %v3522
  %v3524 = vpop.f32.mrf.mxu0
  %v3525 = vadd.f32 %v3402, %v3524
  %v3526 = vpop.f32.mrf.mxu0
  %v3527 = vadd.f32 %v3404, %v3526
  %v3528 = vand.u32 %v899, 4294901760
  %v3529 = vsub.f32 %v899, %v3528
  %v3530 = vand.u32 %v3529, 4294901760
  %3531 = vmatprep.mubr.f32.mxu0 %v3530
  %v3532 = vand.u32 %v784, 4294901760
  %v3533 = vsub.f32 %v784, %v3532
  %v3534 = vand.u32 %v3533, 4294901760
  %3535 = vmatmul.mubr.f32.gmra.mxu0 %v3534
  %v3536 = vpop.f32.mrf.mxu0
  %v3537 = vadd.f32 %v3412, %v3536
  %v3538 = vpop.f32.mrf.mxu0
  %v3539 = vadd.f32 %v3414, %v3538
  %3540 = vdwg.mxu0
  %v3541 = vand.u32 %v881, 4294901760
  %v3542 = vsub.f32 %v881, %v3541
  %v3543 = vand.u32 %v3542, 4294901760
  %3544 = vmatprep.subr.mxu0 %v3543
  %v3545 = vand.u32 %v880, 4294901760
  %v3546 = vsub.f32 %v880, %v3545
  %v3547 = vand.u32 %v3546, 4294901760
  %3548 = vmatpush1.msra.mxu0 %v3547
  %v3549 = vand.u32 %v875, 4294901760
  %v3550 = vsub.f32 %v875, %v3549
  %v3551 = vand.u32 %v3550, 4294901760
  %3552 = vmatprep.subr.mxu0 %v3551
  %v3553 = vand.u32 %v874, 4294901760
  %v3554 = vsub.f32 %v874, %v3553
  %v3555 = vand.u32 %v3554, 4294901760
  %3556 = vmatpush1.msra.mxu0 %v3555
  %v3557 = vand.u32 %v869, 4294901760
  %v3558 = vsub.f32 %v869, %v3557
  %v3559 = vand.u32 %v3558, 4294901760
  %3560 = vmatprep.subr.mxu0 %v3559
  %v3561 = vand.u32 %v868, 4294901760
  %v3562 = vsub.f32 %v868, %v3561
  %v3563 = vand.u32 %v3562, 4294901760
  %3564 = vmatpush1.msra.mxu0 %v3563
  %v3565 = vand.u32 %v863, 4294901760
  %v3566 = vsub.f32 %v863, %v3565
  %v3567 = vand.u32 %v3566, 4294901760
  %3568 = vmatprep.subr.mxu0 %v3567
  %v3569 = vand.u32 %v862, 4294901760
  %v3570 = vsub.f32 %v862, %v3569
  %v3571 = vand.u32 %v3570, 4294901760
  %3572 = vmatpush1.msra.mxu0 %v3571
  %v3573 = vand.u32 %v857, 4294901760
  %v3574 = vsub.f32 %v857, %v3573
  %v3575 = vand.u32 %v3574, 4294901760
  %3576 = vmatprep.subr.mxu0 %v3575
  %v3577 = vand.u32 %v856, 4294901760
  %v3578 = vsub.f32 %v856, %v3577
  %v3579 = vand.u32 %v3578, 4294901760
  %3580 = vmatpush1.msra.mxu0 %v3579
  %v3581 = vand.u32 %v851, 4294901760
  %v3582 = vsub.f32 %v851, %v3581
  %v3583 = vand.u32 %v3582, 4294901760
  %3584 = vmatprep.subr.mxu0 %v3583
  %v3585 = vand.u32 %v850, 4294901760
  %v3586 = vsub.f32 %v850, %v3585
  %v3587 = vand.u32 %v3586, 4294901760
  %3588 = vmatpush1.msra.mxu0 %v3587
  %v3589 = vand.u32 %v845, 4294901760
  %v3590 = vsub.f32 %v845, %v3589
  %v3591 = vand.u32 %v3590, 4294901760
  %3592 = vmatprep.subr.mxu0 %v3591
  %v3593 = vand.u32 %v844, 4294901760
  %v3594 = vsub.f32 %v844, %v3593
  %v3595 = vand.u32 %v3594, 4294901760
  %3596 = vmatpush1.msra.mxu0 %v3595
  %v3597 = vand.u32 %v839, 4294901760
  %v3598 = vsub.f32 %v839, %v3597
  %v3599 = vand.u32 %v3598, 4294901760
  %3600 = vmatprep.subr.mxu0 %v3599
  %v3601 = vand.u32 %v838, 4294901760
  %v3602 = vsub.f32 %v838, %v3601
  %v3603 = vand.u32 %v3602, 4294901760
  %3604 = vmatpush1.msra.mxu0 %v3603
  %v3605 = vand.u32 %v833, 4294901760
  %v3606 = vsub.f32 %v833, %v3605
  %v3607 = vand.u32 %v3606, 4294901760
  %3608 = vmatprep.subr.mxu0 %v3607
  %v3609 = vand.u32 %v832, 4294901760
  %v3610 = vsub.f32 %v832, %v3609
  %v3611 = vand.u32 %v3610, 4294901760
  %3612 = vmatpush1.msra.mxu0 %v3611
  %v3613 = vand.u32 %v827, 4294901760
  %v3614 = vsub.f32 %v827, %v3613
  %v3615 = vand.u32 %v3614, 4294901760
  %3616 = vmatprep.subr.mxu0 %v3615
  %v3617 = vand.u32 %v826, 4294901760
  %v3618 = vsub.f32 %v826, %v3617
  %v3619 = vand.u32 %v3618, 4294901760
  %3620 = vmatpush1.msra.mxu0 %v3619
  %v3621 = vand.u32 %v821, 4294901760
  %v3622 = vsub.f32 %v821, %v3621
  %v3623 = vand.u32 %v3622, 4294901760
  %3624 = vmatprep.subr.mxu0 %v3623
  %v3625 = vand.u32 %v820, 4294901760
  %v3626 = vsub.f32 %v820, %v3625
  %v3627 = vand.u32 %v3626, 4294901760
  %3628 = vmatpush1.msra.mxu0 %v3627
  %v3629 = vand.u32 %v815, 4294901760
  %v3630 = vsub.f32 %v815, %v3629
  %v3631 = vand.u32 %v3630, 4294901760
  %3632 = vmatprep.subr.mxu0 %v3631
  %v3633 = vand.u32 %v814, 4294901760
  %v3634 = vsub.f32 %v814, %v3633
  %v3635 = vand.u32 %v3634, 4294901760
  %3636 = vmatpush1.msra.mxu0 %v3635
  %v3637 = vand.u32 %v809, 4294901760
  %v3638 = vsub.f32 %v809, %v3637
  %v3639 = vand.u32 %v3638, 4294901760
  %3640 = vmatprep.subr.mxu0 %v3639
  %v3641 = vand.u32 %v808, 4294901760
  %v3642 = vsub.f32 %v808, %v3641
  %v3643 = vand.u32 %v3642, 4294901760
  %3644 = vmatpush1.msra.mxu0 %v3643
  %v3645 = vand.u32 %v803, 4294901760
  %v3646 = vsub.f32 %v803, %v3645
  %v3647 = vand.u32 %v3646, 4294901760
  %3648 = vmatprep.subr.mxu0 %v3647
  %v3649 = vand.u32 %v802, 4294901760
  %v3650 = vsub.f32 %v802, %v3649
  %v3651 = vand.u32 %v3650, 4294901760
  %3652 = vmatpush1.msra.mxu0 %v3651
  %v3653 = vand.u32 %v797, 4294901760
  %v3654 = vsub.f32 %v797, %v3653
  %v3655 = vand.u32 %v3654, 4294901760
  %3656 = vmatprep.subr.mxu0 %v3655
  %v3657 = vand.u32 %v796, 4294901760
  %v3658 = vsub.f32 %v796, %v3657
  %v3659 = vand.u32 %v3658, 4294901760
  %3660 = vmatpush1.msra.mxu0 %v3659
  %v3661 = vand.u32 %v791, 4294901760
  %v3662 = vsub.f32 %v791, %v3661
  %v3663 = vand.u32 %v3662, 4294901760
  %3664 = vmatprep.subr.mxu0 %v3663
  %v3665 = vand.u32 %v790, 4294901760
  %v3666 = vsub.f32 %v790, %v3665
  %v3667 = vand.u32 %v3666, 4294901760
  %3668 = vmatpush1.msra.mxu0 %v3667
  %3669 = vmatprep.subr.mxu0 0.0
  %3670 = vmatpush2.msra.mxu0 0.0
  %3671 = vmatprep.subr.mxu0 0.0
  %3672 = vmatpush2.msra.mxu0 0.0
  %3673 = vmatprep.subr.mxu0 0.0
  %3674 = vmatpush2.msra.mxu0 0.0
  %3675 = vmatprep.subr.mxu0 0.0
  %3676 = vmatpush2.msra.mxu0 0.0
  %3677 = vmatprep.subr.mxu0 0.0
  %3678 = vmatpush2.msra.mxu0 0.0
  %3679 = vmatprep.subr.mxu0 0.0
  %3680 = vmatpush2.msra.mxu0 0.0
  %3681 = vmatprep.subr.mxu0 0.0
  %3682 = vmatpush2.msra.mxu0 0.0
  %3683 = vmatprep.subr.mxu0 0.0
  %3684 = vmatpush2.msra.mxu0 0.0
  %3685 = vmatprep.subr.mxu0 0.0
  %3686 = vmatpush2.msra.mxu0 0.0
  %3687 = vmatprep.subr.mxu0 0.0
  %3688 = vmatpush2.msra.mxu0 0.0
  %3689 = vmatprep.subr.mxu0 0.0
  %3690 = vmatpush2.msra.mxu0 0.0
  %3691 = vmatprep.subr.mxu0 0.0
  %3692 = vmatpush2.msra.mxu0 0.0
  %3693 = vmatprep.subr.mxu0 0.0
  %3694 = vmatpush2.msra.mxu0 0.0
  %3695 = vmatprep.subr.mxu0 0.0
  %3696 = vmatpush2.msra.mxu0 0.0
  %v3697 = vand.u32 %v893, 4294901760
  %v3698 = vsub.f32 %v893, %v3697
  %v3699 = vand.u32 %v3698, 4294901760
  %3700 = vmatprep.subr.mxu0 %v3699
  %v3701 = vand.u32 %v892, 4294901760
  %v3702 = vsub.f32 %v892, %v3701
  %v3703 = vand.u32 %v3702, 4294901760
  %3704 = vmatpush2.msra.mxu0 %v3703
  %v3705 = vand.u32 %v887, 4294901760
  %v3706 = vsub.f32 %v887, %v3705
  %v3707 = vand.u32 %v3706, 4294901760
  %3708 = vmatprep.subr.mxu0 %v3707
  %v3709 = vand.u32 %v886, 4294901760
  %v3710 = vsub.f32 %v886, %v3709
  %v3711 = vand.u32 %v3710, 4294901760
  %3712 = vmatpush2.msra.mxu0 %v3711
  %v3713 = vand.u32 %v896, 4294901760
  %3714 = vmatprep.mubr.f32.mxu0 %v3713
  %v3715 = vand.u32 %v782, 4294901760
  %3716 = vmatmul.mubr.f32.gmra.mxu0 %v3715
  %v3717 = vpop.f32.mrf.mxu0
  %v3718 = vadd.f32 %v3525, %v3717
  %v3719 = vpop.f32.mrf.mxu0
  %v3720 = vadd.f32 %v3527, %v3719
  %v3721 = vand.u32 %v899, 4294901760
  %3722 = vmatprep.mubr.f32.mxu0 %v3721
  %v3723 = vand.u32 %v784, 4294901760
  %3724 = vmatmul.mubr.f32.gmra.mxu0 %v3723
  %v3725 = vpop.f32.mrf.mxu0
  %v3726 = vadd.f32 %v3537, %v3725
  %v3727 = vpop.f32.mrf.mxu0
  %v3728 = vadd.f32 %v3539, %v3727
  %3729 = vdwg.mxu0
  %v3730 = vand.u32 %v881, 4294901760
  %3731 = vmatprep.subr.mxu0 %v3730
  %v3732 = vand.u32 %v880, 4294901760
  %3733 = vmatpush1.msra.mxu0 %v3732
  %v3734 = vand.u32 %v875, 4294901760
  %3735 = vmatprep.subr.mxu0 %v3734
  %v3736 = vand.u32 %v874, 4294901760
  %3737 = vmatpush1.msra.mxu0 %v3736
  %v3738 = vand.u32 %v869, 4294901760
  %3739 = vmatprep.subr.mxu0 %v3738
  %v3740 = vand.u32 %v868, 4294901760
  %3741 = vmatpush1.msra.mxu0 %v3740
  %v3742 = vand.u32 %v863, 4294901760
  %3743 = vmatprep.subr.mxu0 %v3742
  %v3744 = vand.u32 %v862, 4294901760
  %3745 = vmatpush1.msra.mxu0 %v3744
  %v3746 = vand.u32 %v857, 4294901760
  %3747 = vmatprep.subr.mxu0 %v3746
  %v3748 = vand.u32 %v856, 4294901760
  %3749 = vmatpush1.msra.mxu0 %v3748
  %v3750 = vand.u32 %v851, 4294901760
  %3751 = vmatprep.subr.mxu0 %v3750
  %v3752 = vand.u32 %v850, 4294901760
  %3753 = vmatpush1.msra.mxu0 %v3752
  %v3754 = vand.u32 %v845, 4294901760
  %3755 = vmatprep.subr.mxu0 %v3754
  %v3756 = vand.u32 %v844, 4294901760
  %3757 = vmatpush1.msra.mxu0 %v3756
  %v3758 = vand.u32 %v839, 4294901760
  %3759 = vmatprep.subr.mxu0 %v3758
  %v3760 = vand.u32 %v838, 4294901760
  %3761 = vmatpush1.msra.mxu0 %v3760
  %v3762 = vand.u32 %v833, 4294901760
  %3763 = vmatprep.subr.mxu0 %v3762
  %v3764 = vand.u32 %v832, 4294901760
  %3765 = vmatpush1.msra.mxu0 %v3764
  %v3766 = vand.u32 %v827, 4294901760
  %3767 = vmatprep.subr.mxu0 %v3766
  %v3768 = vand.u32 %v826, 4294901760
  %3769 = vmatpush1.msra.mxu0 %v3768
  %v3770 = vand.u32 %v821, 4294901760
  %3771 = vmatprep.subr.mxu0 %v3770
  %v3772 = vand.u32 %v820, 4294901760
  %3773 = vmatpush1.msra.mxu0 %v3772
  %v3774 = vand.u32 %v815, 4294901760
  %3775 = vmatprep.subr.mxu0 %v3774
  %v3776 = vand.u32 %v814, 4294901760
  %3777 = vmatpush1.msra.mxu0 %v3776
  %v3778 = vand.u32 %v809, 4294901760
  %3779 = vmatprep.subr.mxu0 %v3778
  %v3780 = vand.u32 %v808, 4294901760
  %3781 = vmatpush1.msra.mxu0 %v3780
  %v3782 = vand.u32 %v803, 4294901760
  %3783 = vmatprep.subr.mxu0 %v3782
  %v3784 = vand.u32 %v802, 4294901760
  %3785 = vmatpush1.msra.mxu0 %v3784
  %v3786 = vand.u32 %v797, 4294901760
  %3787 = vmatprep.subr.mxu0 %v3786
  %v3788 = vand.u32 %v796, 4294901760
  %3789 = vmatpush1.msra.mxu0 %v3788
  %v3790 = vand.u32 %v791, 4294901760
  %3791 = vmatprep.subr.mxu0 %v3790
  %v3792 = vand.u32 %v790, 4294901760
  %3793 = vmatpush1.msra.mxu0 %v3792
  %3794 = vmatprep.subr.mxu0 0.0
  %3795 = vmatpush2.msra.mxu0 0.0
  %3796 = vmatprep.subr.mxu0 0.0
  %3797 = vmatpush2.msra.mxu0 0.0
  %3798 = vmatprep.subr.mxu0 0.0
  %3799 = vmatpush2.msra.mxu0 0.0
  %3800 = vmatprep.subr.mxu0 0.0
  %3801 = vmatpush2.msra.mxu0 0.0
  %3802 = vmatprep.subr.mxu0 0.0
  %3803 = vmatpush2.msra.mxu0 0.0
  %3804 = vmatprep.subr.mxu0 0.0
  %3805 = vmatpush2.msra.mxu0 0.0
  %3806 = vmatprep.subr.mxu0 0.0
  %3807 = vmatpush2.msra.mxu0 0.0
  %3808 = vmatprep.subr.mxu0 0.0
  %3809 = vmatpush2.msra.mxu0 0.0
  %3810 = vmatprep.subr.mxu0 0.0
  %3811 = vmatpush2.msra.mxu0 0.0
  %3812 = vmatprep.subr.mxu0 0.0
  %3813 = vmatpush2.msra.mxu0 0.0
  %3814 = vmatprep.subr.mxu0 0.0
  %3815 = vmatpush2.msra.mxu0 0.0
  %3816 = vmatprep.subr.mxu0 0.0
  %3817 = vmatpush2.msra.mxu0 0.0
  %3818 = vmatprep.subr.mxu0 0.0
  %3819 = vmatpush2.msra.mxu0 0.0
  %3820 = vmatprep.subr.mxu0 0.0
  %3821 = vmatpush2.msra.mxu0 0.0
  %v3822 = vand.u32 %v893, 4294901760
  %3823 = vmatprep.subr.mxu0 %v3822
  %v3824 = vand.u32 %v892, 4294901760
  %3825 = vmatpush2.msra.mxu0 %v3824
  %v3826 = vand.u32 %v887, 4294901760
  %3827 = vmatprep.subr.mxu0 %v3826
  %v3828 = vand.u32 %v886, 4294901760
  %3829 = vmatpush2.msra.mxu0 %v3828
  %v3830 = vand.u32 %v896, 4294901760
  %3831 = vmatprep.mubr.f32.mxu0 %v3830
  %v3832 = vand.u32 %v782, 4294901760
  %3833 = vmatmul.mubr.f32.gmra.mxu0 %v3832
  %v3834 = vpop.f32.mrf.mxu0
  %v3835 = vadd.f32 %v3718, %v3834
  %v3836 = vpop.f32.mrf.mxu0
  %v3837 = vadd.f32 %v3720, %v3836
  %v3838 = vand.u32 %v899, 4294901760
  %3839 = vmatprep.mubr.f32.mxu0 %v3838
  %v3840 = vand.u32 %v784, 4294901760
  %3841 = vmatmul.mubr.f32.gmra.mxu0 %v3840
  %v3842 = vpop.f32.mrf.mxu0
  %v3843 = vadd.f32 %v3726, %v3842
  %v3844 = vpop.f32.mrf.mxu0
  %v3845 = vadd.f32 %v3728, %v3844
  %3846 = vdwg.mxu0
  %v3847 = vadd.f32 %v1871, %v1873
  %v3848 = vadd.f32 %v3847, %v2853
  %v3849 = vadd.f32 %v3848, %v2855
  %v3850 = vadd.f32 %v3849, %v3835
  %v3851 = vadd.f32 %v3850, %v3837
  %3852 = vadd.xlane.f32.xlu0 %v3851
  %v3853 = vpop.xlane.xlu0 %3852
  %vm3854 = vcmask 1041408
  %v3855 = vsel %vm3854, %v1879, 0.0
  %v3856 = vsel %vm3854, %v1881, 0.0
  %v3857 = vadd.f32 %v3855, %v3856
  %v3858 = vsel %vm3854, %v2861, 0.0
  %v3859 = vadd.f32 %v3857, %v3858
  %v3860 = vsel %vm3854, %v2863, 0.0
  %v3861 = vadd.f32 %v3859, %v3860
  %v3862 = vsel %vm3854, %v3843, 0.0
  %v3863 = vadd.f32 %v3861, %v3862
  %v3864 = vsel %vm3854, %v3845, 0.0
  %v3865 = vadd.f32 %v3863, %v3864
  %3866 = vadd.xlane.f32.xlu0 %v3865
  %v3867 = vpop.xlane.xlu0 %3866
  %v3868 = vmul.f32 %v3853, 0.0015432099
  %v3869 = vmul.f32 %v3867, 0.0015432099
  %v3870 = vmul.f32 %v1871, %v1871
  %v3871 = vmul.f32 %v1873, %v1873
  %v3872 = vmul.f32 %v2853, %v2853
  %v3873 = vmul.f32 %v2855, %v2855
  %v3874 = vmul.f32 %v3835, %v3835
  %v3875 = vmul.f32 %v3837, %v3837
  %v3876 = vmul.f32 %v1879, %v1879
  %v3877 = vmul.f32 %v1881, %v1881
  %v3878 = vmul.f32 %v2861, %v2861
  %v3879 = vmul.f32 %v2863, %v2863
  %v3880 = vmul.f32 %v3843, %v3843
  %v3881 = vmul.f32 %v3845, %v3845
  %v3882 = vadd.f32 %v3870, %v3871
  %v3883 = vadd.f32 %v3882, %v3872
  %v3884 = vadd.f32 %v3883, %v3873
  %v3885 = vadd.f32 %v3884, %v3874
  %v3886 = vadd.f32 %v3885, %v3875
  %3887 = vadd.xlane.f32.xlu0 %v3886
  %v3888 = vpop.xlane.xlu0 %3887
  %v3889 = vsel %vm3854, %v3876, 0.0
  %v3890 = vsel %vm3854, %v3877, 0.0
  %v3891 = vadd.f32 %v3889, %v3890
  %v3892 = vsel %vm3854, %v3878, 0.0
  %v3893 = vadd.f32 %v3891, %v3892
  %v3894 = vsel %vm3854, %v3879, 0.0
  %v3895 = vadd.f32 %v3893, %v3894
  %v3896 = vsel %vm3854, %v3880, 0.0
  %v3897 = vadd.f32 %v3895, %v3896
  %v3898 = vsel %vm3854, %v3881, 0.0
  %v3899 = vadd.f32 %v3897, %v3898
  %3900 = vadd.xlane.f32.xlu0 %v3899
  %v3901 = vpop.xlane.xlu0 %3900
  %v3902 = vmul.f32 %v3888, 0.0015432099
  %v3903 = vmul.f32 %v3901, 0.0015432099
  %v3904 = vmul.f32 %v3868, %v3868
  %v3905 = vmul.f32 %v3869, %v3869
  %v3906 = vsub.f32 %v3902, %v3904
  %v3907 = vsub.f32 %v3903, %v3905
  %v3908 = vld [vmem:[%s2] sm:$0xff]
  %v3909 = vld [vmem:[%s2 + $0x8] sm:$0x3]
  %v3910 = vadd.f32 %v3906, 1e-05
  %v3911 = vadd.f32 %v3907, 1e-05
  %v3912 = vrsqrt.pop %v3910
  %v3913 = vrsqrt.pop %v3911
  %v3914 = vmul.f32 %v3908, %v3912
  %v3915 = vmul.f32 %v3909, %v3913
  %v3916 = vmul.f32 %v3868, %v3914
  %v3917 = vmul.f32 %v3869, %v3915
  %3920 = vrot.lane.b32.xlu0 %v3916, 1
  %v3921 = vpop.permute.xlu0 %3920
  %3922 = vrot.lane.b32.xlu0 %v3917, 1
  %v3923 = vpop.permute.xlu0 %3922
  %v3926 = vsub.f32 %v3908, %v3921
  %v3927 = vsub.f32 %v3909, %v3923
  %3929 = vset.pattern.permute.xlu0 0
  %3930 = vperm.xlu0 %3929, %v3914
  %v3931 = vpop.permute.xlu0 %3930
  %3934 = vset.pattern.permute.xlu0 0
  %3935 = vperm.xlu0 %3934, %v3915
  %v3936 = vpop.permute.xlu0 %3935
  %v3938 = vmul.f32 %v1871, %v3931
  %v3939 = vmul.f32 %v1873, %v3931
  %v3940 = vmul.f32 %v2853, %v3931
  %v3941 = vmul.f32 %v2855, %v3931
  %v3942 = vmul.f32 %v3835, %v3931
  %v3943 = vmul.f32 %v3837, %v3931
  %v3944 = vmul.f32 %v1879, %v3936
  %v3945 = vmul.f32 %v1881, %v3936
  %v3946 = vmul.f32 %v2861, %v3936
  %v3947 = vmul.f32 %v2863, %v3936
  %v3948 = vmul.f32 %v3843, %v3936
  %v3949 = vmul.f32 %v3845, %v3936
  %3951 = vset.pattern.permute.xlu0 1
  %3952 = vperm.xlu0 %3951, %v3926
  %v3953 = vpop.permute.xlu0 %3952
  %3956 = vset.pattern.permute.xlu0 1
  %3957 = vperm.xlu0 %3956, %v3927
  %v3958 = vpop.permute.xlu0 %3957
  %v3960 = vadd.f32 %v3938, %v3953
  %v3961 = vadd.f32 %v3939, %v3953
  %v3962 = vadd.f32 %v3940, %v3953
  %v3963 = vadd.f32 %v3941, %v3953
  %v3964 = vadd.f32 %v3942, %v3953
  %v3965 = vadd.f32 %v3943, %v3953
  %v3966 = vadd.f32 %v3944, %v3958
  %v3967 = vadd.f32 %v3945, %v3958
  %v3968 = vadd.f32 %v3946, %v3958
  %v3969 = vadd.f32 %v3947, %v3958
  %v3970 = vadd.f32 %v3948, %v3958
  %v3971 = vadd.f32 %v3949, %v3958
  %v3972 = vmax.f32 %v3960, 0.0
  %v3973 = vmax.f32 %v3961, 0.0
  %v3974 = vmax.f32 %v3962, 0.0
  %v3975 = vmax.f32 %v3963, 0.0
  %v3976 = vmax.f32 %v3964, 0.0
  %v3977 = vmax.f32 %v3965, 0.0
  %v3978 = vmax.f32 %v3966, 0.0
  %v3979 = vmax.f32 %v3967, 0.0
  %v3980 = vmax.f32 %v3968, 0.0
  %v3981 = vmax.f32 %v3969, 0.0
  %v3982 = vmax.f32 %v3970, 0.0
  %v3983 = vmax.f32 %v3971, 0.0
  %3984 = vst [vmem:[%s3] sm:$0xff] %v3972
  %3985 = vst [vmem:[%s3 + $0x8] sm:$0xff] %v3973
  %3986 = vst [vmem:[%s3 + $0x10] sm:$0xff] %v3974
  %3987 = vst [vmem:[%s3 + $0x18] sm:$0xff] %v3975
  %3988 = vst [vmem:[%s3 + $0x20] sm:$0xff] %v3976
  %3989 = vst [vmem:[%s3 + $0x28] sm:$0xff] %v3977
  %3990 = vst [vmem:[%s3 + $0x30] sm:$0x3] %v3978
  %3991 = vst [vmem:[%s3 + $0x38] sm:$0x3] %v3979
  %3992 = vst [vmem:[%s3 + $0x40] sm:$0x3] %v3980
  %3993 = vst [vmem:[%s3 + $0x48] sm:$0x3] %v3981
  %3994 = vst [vmem:[%s3 + $0x50] sm:$0x3] %v3982
  %3995 = vst [vmem:[%s3 + $0x58] sm:$0x3] %v3983
  // Predicated region
  $region14: #{bn_after_conv_transpose.1} parent=0 // pred_check
    _
  $region15: #{bn_after_conv_transpose.1} parent=0 // pred_check_branch
    %3997 = sbr.rel (0) target = $region17
  $region16: #{bn_after_conv_transpose.1} parent=0 // pred_region
    _
  $region17: #{bn_after_conv_transpose.1} parent=0 // pred_fallthru
    _
  // Predicated region
  $region18: #{bn_after_conv_transpose.1} parent=0 // pred_check
    _
  $region19: #{bn_after_conv_transpose.1} parent=0 // pred_check_branch
    %3999 = sbr.rel (0) target = $region21
  $region20: #{bn_after_conv_transpose.1} parent=0 // pred_region
    _
  $region21: #{bn_after_conv_transpose.1} parent=0 // pred_fallthru
    _

</llo_original>
